<compile_context>
chip_gen: v7x
topology: tpu7x:2x2x1
jax: 0.10.0
libtpu: 0.0.40
codegen_flags: <defaults>
</compile_context>

<pallas_src>
import numpy as np
import jax
import jax.numpy as jnp
from jax.experimental import pallas as pl
from jax.experimental.pallas import tpu as pltpu


def _round_up(x, m):
    return (x + m - 1) // m * m


def _cbp_kernel(x_ref, y_ref, m1_ref, m2_ref, fwd_ref, inv_ref, o_ref,
                pxy_ref, acc_ref):
    t = pl.program_id(1)
    tb = x_ref.shape[0]
    tk = fwd_ref.shape[1] // 2
    d = o_ref.shape[1]
    inv_d = 1.0 / d

    @pl.when(t == 0)
    def _init():
        # Count sketches as MXU matmuls (bf16 operands; sketch matrix is exactly
        # 0/+-1 so the matmul is lossless).  Runs once per batch tile; px/py are
        # cached in VMEM for every frequency tile.
        px = jnp.dot(x_ref[...], m1_ref[...], preferred_element_type=jnp.float32)
        py = jnp.dot(y_ref[...], m2_ref[...], preferred_element_type=jnp.float32)
        pxy_ref[:tb, :] = px.astype(pxy_ref.dtype)
        pxy_ref[tb:, :] = py.astype(pxy_ref.dtype)

        # Exact DC / Nyquist epilogue (f32, VPU+XLU only).  These two rfft bins are
        # handled here so the tiled spectrum covers only the lane-dense interior
        # bins -- no zero-padded half-tile of MXU/DMA work at small d.
        sx0 = jnp.sum(px, axis=-1, keepdims=True)
        sy0 = jnp.sum(py, axis=-1, keepdims=True)
        acc0 = inv_d * (sx0 * sy0)                       # (tb, 1) DC term
        if d % 2 == 0:
            sign = 1.0 - 2.0 * (
                jax.lax.broadcasted_iota(jnp.int32, (1, d), 1) % 2
            ).astype(jnp.float32)                        # (+1,-1,+1,...) over lanes
            sxn = jnp.sum(px * sign, axis=-1, keepdims=True)
            syn = jnp.sum(py * sign, axis=-1, keepdims=True)
            acc0 = acc0 + (inv_d * (sxn * syn)) * sign   # Nyquist rank-1 term
        acc_ref[...] = jnp.broadcast_to(acc0, acc_ref.shape)

    # Fused forward real-DFT for this interior-frequency tile:
    #   [px ; py] @ [C_t | -S_t] -> [fx_re | fx_im ; fy_re | fy_im]
    f = jnp.dot(pxy_ref[...], fwd_ref[...], preferred_element_type=jnp.float32)
    fx_re, fx_im = f[:tb, :tk], f[:tb, tk:]
    fy_re, fy_im = f[tb:, :tk], f[tb:, tk:]

    # ComplexMultiply_forward (kept in f32 on the VPU; v5e has no bf16 VPU path).
    z_re = fx_re * fy_re - fx_im * fy_im
    z_im = fx_re * fy_im + fx_im * fy_re

    # Weighted inverse real-DFT for this tile.  Hermitian-fold weight (2), the 1/d
    # irfft scale and the minus sign on the sin term are folded into inv_ref at build
    # time, so this is two accumulating MXU dots on static slices -- no concat/negate.
    acc_ref[...] += (
        jnp.dot(z_re.astype(inv_ref.dtype), inv_ref[:tk, :],
                preferred_element_type=jnp.float32)
        + jnp.dot(z_im.astype(inv_ref.dtype), inv_ref[tk:, :],
                  preferred_element_type=jnp.float32))

    @pl.when(t == pl.num_programs(1) - 1)
    def _finalize():
        o_ref[...] = acc_ref[...].astype(o_ref.dtype)


def compact_bilinear_pooling(x, y, h1, s1, h2, s2, output_size, *,
                             block_b=512, block_k=128,
                             compute_dtype=jnp.bfloat16):
    """x: (..., input1_size), y: (..., input2_size) -> (..., output_size), f32."""
    d = int(output_size)
    c1 = x.shape[-1]
    c2 = y.shape[-1]
    lead = x.shape[:-1]
    assert y.shape[:-1] == lead, "x and y must share leading dims"

    b = int(np.prod(lead)) if lead else 1
    xf = x.reshape(b, c1).astype(compute_dtype)
    yf = y.reshape(b, c2).astype(compute_dtype)

    # ---- batch tiling: pad rows, keep >=2 tiles so both v7x TCs get work ----
    tb = min(int(block_b), _round_up(b, 8))
    if b > 8 and _round_up(b, tb) // tb < 2:
        tb = _round_up((b + 1) // 2, 8)
    bp = _round_up(b, tb)
    if bp != b:
        xf = jnp.pad(xf, ((0, bp - b), (0, 0)))
        yf = jnp.pad(yf, ((0, bp - b), (0, 0)))

    # ---- frequency tiling over *interior* rfft bins only (DC/Nyquist in-kernel) ----
    tk = int(block_k)
    assert tk % 128 == 0, "block_k must be a multiple of 128 lanes"
    kint = (d - 1) // 2                      # bins k = 1 .. kint
    kp = max(tk, _round_up(max(kint, 1), tk))
    nkt = kp // tk

    # ---- dense count-sketch matrices (entries are exactly 0 / +-1) ----
    m1 = (jax.nn.one_hot(h1, d, dtype=jnp.float32)
          * s1[:, None].astype(jnp.float32)).astype(compute_dtype)
    m2 = (jax.nn.one_hot(h2, d, dtype=jnp.float32)
          * s2[:, None].astype(jnp.float32)).astype(compute_dtype)

    # ---- fused real-DFT bases (built once in float64, cast to the MXU dtype) ----
    n = np.arange(d)
    kvals = np.arange(1, kint + 1)
    ang = 2.0 * np.pi * np.outer(n, kvals) / d           # (d, kint)
    cosm = np.zeros((d, kp), np.float64); cosm[:, :kint] = np.cos(ang)
    sinm = np.zeros((d, kp), np.float64); sinm[:, :kint] = np.sin(ang)
    # Forward basis, per-tile layout [C_t | -S_t] -> (d, 2*kp).
    fwd = np.concatenate([cosm.reshape(d, nkt, tk), -sinm.reshape(d, nkt, tk)],
                         axis=2).reshape(d, 2 * kp)
    # Inverse basis with fold weight 2, 1/d scale and the sin minus sign folded in,
    # per-tile layout [Cw_t ; -Sw_t] -> (2*kp, d).
    cw = (2.0 / d) * cosm.T
    sw = (-2.0 / d) * sinm.T
    inv = np.concatenate([cw.reshape(nkt, tk, d), sw.reshape(nkt, tk, d)],
                         axis=1).reshape(2 * kp, d)
    fwd = jnp.asarray(fwd, dtype=compute_dtype)
    inv = jnp.asarray(inv, dtype=compute_dtype)

    # ---- VMEM budget: double-buffered streamed blocks + single-buffered residents ----
    esz = jnp.dtype(compute_dtype).itemsize
    streamed = (tb * (c1 + c2) + 4 * tk * d) * esz + tb * d * 4   # per pipeline buffer
    resident = (c1 + c2) * d * esz + 2 * tb * d * esz + tb * d * 4  # m1/m2 + pxy + acc
    vmem_need = 2 * streamed + resident
    try:
        phys = int(pltpu.get_tpu_info().vmem_capacity_bytes)
    except Exception:
        phys = 64 * 2 ** 20
    cap = max(int(0.75 * phys), 32 * 2 ** 20)
    vmem_limit = int(min(max(vmem_need + (8 << 20), 32 << 20), cap))

    grid_spec = pltpu.PrefetchScalarGridSpec(
        num_scalar_prefetch=0,
        grid=(bp // tb, nkt),
        in_specs=[
            pl.BlockSpec((tb, c1), lambda i, t: (i, 0)),           # x rows
            pl.BlockSpec((tb, c2), lambda i, t: (i, 0)),           # y rows
            pl.BlockSpec((c1, d), lambda i, t: (0, 0),             # sketch M1 (resident,
                         pipeline_mode=pl.Buffered(1)),            #  single-buffered)
            pl.BlockSpec((c2, d), lambda i, t: (0, 0),             # sketch M2
                         pipeline_mode=pl.Buffered(1)),
            pl.BlockSpec((d, 2 * tk), lambda i, t: (0, t)),        # forward DFT tile
            pl.BlockSpec((2 * tk, d), lambda i, t: (t, 0)),        # inverse DFT tile
        ],
        out_specs=pl.BlockSpec((tb, d), lambda i, t: (i, 0)),
        scratch_shapes=[
            pltpu.VMEM((2 * tb, d), compute_dtype),                # cached [px ; py]
            pltpu.VMEM((tb, d), jnp.float32),                      # output accumulator
        ],
    )

    out = pl.pallas_call(
        _cbp_kernel,
        out_shape=jax.ShapeDtypeStruct((bp, d), jnp.float32),
        grid_spec=grid_spec,
        compiler_params=pltpu.CompilerParams(
            dimension_semantics=("parallel", "arbitrary"),
            vmem_limit_bytes=vmem_limit,
        ),
    )(xf, yf, m1, m2, fwd, inv)

    out = out[:b]
    return out.reshape(*lead, d)


def _reference(x, y, h1, s1, h2, s2, d):
    # Pure-JAX reference: count sketch -> rfft -> complex multiply -> irfft.
    m1 = jax.nn.one_hot(h1, d, dtype=jnp.float32) * s1[:, None]
    m2 = jax.nn.one_hot(h2, d, dtype=jnp.float32) * s2[:, None]
    px = x.astype(jnp.float32) @ m1
    py = y.astype(jnp.float32) @ m2
    fx = jnp.fft.rfft(px, axis=-1)
    fy = jnp.fft.rfft(py, axis=-1)
    return jnp.fft.irfft(fx * fy, n=d, axis=-1)


if __name__ == "__main__":
    # Module config: input1_size=64, input2_size=96, output_size=256 (lane-dense),
    # leading dims (batch=2, 16x16 spatial) -> 512 rows = 2 batch tiles of 256, and
    # 127 interior half-spectrum bins -> a single lane-dense 128-bin frequency tile
    # (DC/Nyquist handled by the in-kernel epilogue).
    INPUT1, INPUT2, OUTPUT = 64, 96, 256
    B0, H, W = 2, 16, 16

    key = jax.random.PRNGKey(0)
    kx, ky, kh1, ks1, kh2, ks2 = jax.random.split(key, 6)

    x = jax.random.normal(kx, (B0, H, W, INPUT1), dtype=jnp.float32)
    y = jax.random.normal(ky, (B0, H, W, INPUT2), dtype=jnp.float32)

    # Deterministic sketch buffers (same roles as CountSketch.h / CountSketch.s).
    h1 = jax.random.randint(kh1, (INPUT1,), 0, OUTPUT, dtype=jnp.int32)
    s1 = (2 * jax.random.randint(ks1, (INPUT1,), 0, 2, dtype=jnp.int32) - 1).astype(jnp.float32)
    h2 = jax.random.randint(kh2, (INPUT2,), 0, OUTPUT, dtype=jnp.int32)
    s2 = (2 * jax.random.randint(ks2, (INPUT2,), 0, 2, dtype=jnp.int32) - 1).astype(jnp.float32)

    out = compact_bilinear_pooling(x, y, h1, s1, h2, s2, OUTPUT,
                                   block_b=512, block_k=128,
                                   compute_dtype=jnp.bfloat16)
    out = jax.block_until_ready(out)

    ref = _reference(x.reshape(-1, INPUT1), y.reshape(-1, INPUT2),
                     h1, s1, h2, s2, OUTPUT).reshape(B0, H, W, OUTPUT)
    ref = np.asarray(ref)
    # Spectral-domain result with bf16 MXU operands (f32 accumulation): scale the
    # absolute tolerance with the output magnitude so zero-crossing bins are not
    # judged by raw relative error.
    tol = 3e-2 * max(1.0, float(np.max(np.abs(ref))))
    np.testing.assert_allclose(np.asarray(out), ref, rtol=3e-2, atol=tol)

    print("KERNEL_OK")
</pallas_src>

<mosaic_0001>
module attributes {stable_mosaic.version = 11 : i64} {
  func.func @_cbp_kernel(%arg0: i32, %arg1: i32, %arg2: memref<256x64xbf16, #tpu.memory_space<vmem>>, %arg3: memref<256x96xbf16, #tpu.memory_space<vmem>>, %arg4: memref<64x256xbf16, #tpu.memory_space<vmem>>, %arg5: memref<96x256xbf16, #tpu.memory_space<vmem>>, %arg6: memref<256x256xbf16, #tpu.memory_space<vmem>>, %arg7: memref<256x256xbf16, #tpu.memory_space<vmem>>, %arg8: memref<256x256xf32, #tpu.memory_space<vmem>>, %arg9: memref<512x256xbf16, #tpu.memory_space<vmem>>, %arg10: memref<256x256xf32, #tpu.memory_space<vmem>>) attributes {dimension_semantics = [#tpu.dimension_semantics<parallel>, #tpu.dimension_semantics<arbitrary>], iteration_bounds = array<i64: 2, 1>, scalar_prefetch = 0 : i64, scratch_operands = 2 : i64, tpu.core_type = #tpu.core_type<tc>, window_params = [{transform_indices = @transform_0, window_bounds = array<i64: 256, 64>}, {transform_indices = @transform_1, window_bounds = array<i64: 256, 96>}, {pipeline_mode = #tpu.pipeline_mode<synchronous>, transform_indices = @transform_2, window_bounds = array<i64: 64, 256>}, {pipeline_mode = #tpu.pipeline_mode<synchronous>, transform_indices = @transform_3, window_bounds = array<i64: 96, 256>}, {transform_indices = @transform_4, window_bounds = array<i64: 256, 256>}, {transform_indices = @transform_5, window_bounds = array<i64: 256, 256>}, {transform_indices = @transform_6, window_bounds = array<i64: 256, 256>}]} {
    %c0_i32 = arith.constant 0 : i32
    %0 = arith.cmpi eq, %arg1, %c0_i32 : i32
    %1 = arith.extui %0 : i1 to i32
    %c0_i32_0 = arith.constant 0 : i32
    %2 = arith.cmpi ne, %1, %c0_i32_0 : i32
    scf.if %2 {
      %c0_15 = arith.constant 0 : index
      %c0_16 = arith.constant 0 : index
      %29 = vector.load %arg2[%c0_15, %c0_16] : memref<256x64xbf16, #tpu.memory_space<vmem>>, vector<256x64xbf16>
      %c0_17 = arith.constant 0 : index
      %c0_18 = arith.constant 0 : index
      %30 = vector.load %arg4[%c0_17, %c0_18] : memref<64x256xbf16, #tpu.memory_space<vmem>>, vector<64x256xbf16>
      %cst_19 = arith.constant dense<0.000000e+00> : vector<256x256xf32>
      %31 = tpu.matmul %29, %30, %cst_19 {dimension_numbers = #tpu.dot_dimension_numbers<[1], [0], [0], [1], [0, 0, 1, 1], [], []>} : vector<256x64xbf16>, vector<64x256xbf16>, vector<256x256xf32> -> vector<256x256xf32>
      %c0_20 = arith.constant 0 : index
      %c0_21 = arith.constant 0 : index
      %32 = vector.load %arg3[%c0_20, %c0_21] : memref<256x96xbf16, #tpu.memory_space<vmem>>, vector<256x96xbf16>
      %c0_22 = arith.constant 0 : index
      %c0_23 = arith.constant 0 : index
      %33 = vector.load %arg5[%c0_22, %c0_23] : memref<96x256xbf16, #tpu.memory_space<vmem>>, vector<96x256xbf16>
      %cst_24 = arith.constant dense<0.000000e+00> : vector<256x256xf32>
      %34 = tpu.matmul %32, %33, %cst_24 {dimension_numbers = #tpu.dot_dimension_numbers<[1], [0], [0], [1], [0, 0, 1, 1], [], []>} : vector<256x96xbf16>, vector<96x256xbf16>, vector<256x256xf32> -> vector<256x256xf32>
      %35 = arith.truncf %31 : vector<256x256xf32> to vector<256x256xbf16>
      %c0_25 = arith.constant 0 : index
      %c0_26 = arith.constant 0 : index
      %36 = vector.load %arg9[%c0_25, %c0_26] : memref<512x256xbf16, #tpu.memory_space<vmem>>, vector<256x256xbf16>
      tpu.vector_store %arg9[%c0_25, %c0_26], %35 {strides = array<i32>} : memref<512x256xbf16, #tpu.memory_space<vmem>>, vector<256x256xbf16>,
      %37 = arith.truncf %34 : vector<256x256xf32> to vector<256x256xbf16>
      %c256 = arith.constant 256 : index
      %c0_27 = arith.constant 0 : index
      %38 = vector.load %arg9[%c256, %c0_27] : memref<512x256xbf16, #tpu.memory_space<vmem>>, vector<256x256xbf16>
      tpu.vector_store %arg9[%c256, %c0_27], %37 {strides = array<i32>} : memref<512x256xbf16, #tpu.memory_space<vmem>>, vector<256x256xbf16>,
      %cst_28 = arith.constant dense<0.000000e+00> : vector<256xf32>
      %39 = vector.multi_reduction <add>, %31, %cst_28 [1] : vector<256x256xf32> to vector<256xf32>
      %40 = vector.shape_cast %39 : vector<256xf32> to vector<256x1xf32>
      %cst_29 = arith.constant dense<0.000000e+00> : vector<256xf32>
      %41 = vector.multi_reduction <add>, %34, %cst_29 [1] : vector<256x256xf32> to vector<256xf32>
      %42 = vector.shape_cast %41 : vector<256xf32> to vector<256x1xf32>
      %43 = arith.mulf %40, %42 : vector<256x1xf32>
      %cst_30 = arith.constant 3.906250e-03 : f32
      %44 = vector.broadcast %cst_30 : f32 to vector<256x1xf32>
      %45 = arith.mulf %44, %43 : vector<256x1xf32>
      %46 = tpu.iota {dimensions = array<i32: 1>} : vector<1x256xi32>
      %c2_i32 = arith.constant 2 : i32
      %c0_i32_31 = arith.constant 0 : i32
      %47 = arith.cmpi eq, %c2_i32, %c0_i32_31 : i32
      %c1_i32 = arith.constant 1 : i32
      %48 = arith.select %47, %c1_i32, %c2_i32 : i32
      %49 = vector.broadcast %48 : i32 to vector<1x256xi32>
      %50 = arith.remsi %46, %49 : vector<1x256xi32>
      %c0_i32_32 = arith.constant 0 : i32
      %51 = vector.broadcast %c0_i32_32 : i32 to vector<1x256xi32>
      %52 = arith.cmpi ne, %50, %51 : vector<1x256xi32>
      %c0_i32_33 = arith.constant 0 : i32
      %53 = vector.broadcast %c0_i32_33 : i32 to vector<1x256xi32>
      %54 = arith.cmpi slt, %50, %53 : vector<1x256xi32>
      %c0_i32_34 = arith.constant 0 : i32
      %55 = arith.cmpi slt, %48, %c0_i32_34 : i32
      %56 = vector.broadcast %55 : i1 to vector<1x256xi1>
      %57 = vector.broadcast %56 : vector<1x256xi1> to vector<1x256xi1>
      %58 = arith.xori %54, %57 : vector<1x256xi1>
      %59 = arith.andi %58, %52 : vector<1x256xi1>
      %60 = vector.broadcast %48 : i32 to vector<1x256xi32>
      %61 = arith.addi %50, %60 : vector<1x256xi32>
      %62 = arith.select %59, %61, %50 : vector<1x256xi1>, vector<1x256xi32>
      %63 = arith.sitofp %62 : vector<1x256xi32> to vector<1x256xf32>
      %cst_35 = arith.constant 2.000000e+00 : f32
      %64 = vector.broadcast %cst_35 : f32 to vector<1x256xf32>
      %65 = arith.mulf %64, %63 : vector<1x256xf32>
      %cst_36 = arith.constant 1.000000e+00 : f32
      %66 = vector.broadcast %cst_36 : f32 to vector<1x256xf32>
      %67 = arith.subf %66, %65 : vector<1x256xf32>
      %68 = vector.broadcast %67 : vector<1x256xf32> to vector<256x256xf32>
      %69 = arith.mulf %31, %68 : vector<256x256xf32>
      %cst_37 = arith.constant dense<0.000000e+00> : vector<256xf32>
      %70 = vector.multi_reduction <add>, %69, %cst_37 [1] : vector<256x256xf32> to vector<256xf32>
      %71 = vector.shape_cast %70 : vector<256xf32> to vector<256x1xf32>
      %72 = vector.broadcast %67 : vector<1x256xf32> to vector<256x256xf32>
      %73 = arith.mulf %34, %72 : vector<256x256xf32>
      %cst_38 = arith.constant dense<0.000000e+00> : vector<256xf32>
      %74 = vector.multi_reduction <add>, %73, %cst_38 [1] : vector<256x256xf32> to vector<256xf32>
      %75 = vector.shape_cast %74 : vector<256xf32> to vector<256x1xf32>
      %76 = arith.mulf %71, %75 : vector<256x1xf32>
      %cst_39 = arith.constant 3.906250e-03 : f32
      %77 = vector.broadcast %cst_39 : f32 to vector<256x1xf32>
      %78 = arith.mulf %77, %76 : vector<256x1xf32>
      %79 = vector.broadcast %78 : vector<256x1xf32> to vector<256x256xf32>
      %80 = vector.broadcast %67 : vector<1x256xf32> to vector<256x256xf32>
      %81 = arith.mulf %79, %80 : vector<256x256xf32>
      %82 = vector.broadcast %45 : vector<256x1xf32> to vector<256x256xf32>
      %83 = arith.addf %82, %81 : vector<256x256xf32>
      %c0_40 = arith.constant 0 : index
      %c0_41 = arith.constant 0 : index
      %84 = vector.load %arg10[%c0_40, %c0_41] : memref<256x256xf32, #tpu.memory_space<vmem>>, vector<256x256xf32>
      tpu.vector_store %arg10[%c0_40, %c0_41], %83 {strides = array<i32>} : memref<256x256xf32, #tpu.memory_space<vmem>>, vector<256x256xf32>,
    } else {
    }
    %c0 = arith.constant 0 : index
    %c0_1 = arith.constant 0 : index
    %3 = vector.load %arg9[%c0, %c0_1] : memref<512x256xbf16, #tpu.memory_space<vmem>>, vector<512x256xbf16>
    %c0_2 = arith.constant 0 : index
    %c0_3 = arith.constant 0 : index
    %4 = vector.load %arg6[%c0_2, %c0_3] : memref<256x256xbf16, #tpu.memory_space<vmem>>, vector<256x256xbf16>
    %cst = arith.constant dense<0.000000e+00> : vector<512x256xf32>
    %5 = tpu.matmul %3, %4, %cst {dimension_numbers = #tpu.dot_dimension_numbers<[1], [0], [0], [1], [0, 0, 1, 1], [], []>} : vector<512x256xbf16>, vector<256x256xbf16>, vector<512x256xf32> -> vector<512x256xf32>
    %6 = vector.extract_strided_slice %5 {offsets = [0, 0], sizes = [256, 128], strides = [1, 1]} : vector<512x256xf32> to vector<256x128xf32>
    %7 = vector.extract_strided_slice %5 {offsets = [0, 128], sizes = [256, 128], strides = [1, 1]} : vector<512x256xf32> to vector<256x128xf32>
    %8 = vector.extract_strided_slice %5 {offsets = [256, 0], sizes = [256, 128], strides = [1, 1]} : vector<512x256xf32> to vector<256x128xf32>
    %9 = vector.extract_strided_slice %5 {offsets = [256, 128], sizes = [256, 128], strides = [1, 1]} : vector<512x256xf32> to vector<256x128xf32>
    %10 = arith.mulf %6, %8 : vector<256x128xf32>
    %11 = arith.mulf %7, %9 : vector<256x128xf32>
    %12 = arith.subf %10, %11 : vector<256x128xf32>
    %13 = arith.mulf %6, %9 : vector<256x128xf32>
    %14 = arith.mulf %7, %8 : vector<256x128xf32>
    %15 = arith.addf %13, %14 : vector<256x128xf32>
    %c0_4 = arith.constant 0 : index
    %c0_5 = arith.constant 0 : index
    %16 = vector.load %arg10[%c0_4, %c0_5] : memref<256x256xf32, #tpu.memory_space<vmem>>, vector<256x256xf32>
    %17 = arith.truncf %12 : vector<256x128xf32> to vector<256x128xbf16>
    %c0_6 = arith.constant 0 : index
    %c0_7 = arith.constant 0 : index
    %18 = vector.load %arg7[%c0_6, %c0_7] : memref<256x256xbf16, #tpu.memory_space<vmem>>, vector<128x256xbf16>
    %cst_8 = arith.constant dense<0.000000e+00> : vector<256x256xf32>
    %19 = tpu.matmul %17, %18, %cst_8 {dimension_numbers = #tpu.dot_dimension_numbers<[1], [0], [0], [1], [0, 0, 1, 1], [], []>} : vector<256x128xbf16>, vector<128x256xbf16>, vector<256x256xf32> -> vector<256x256xf32>
    %20 = arith.truncf %15 : vector<256x128xf32> to vector<256x128xbf16>
    %c128 = arith.constant 128 : index
    %c0_9 = arith.constant 0 : index
    %21 = vector.load %arg7[%c128, %c0_9] : memref<256x256xbf16, #tpu.memory_space<vmem>>, vector<128x256xbf16>
    %cst_10 = arith.constant dense<0.000000e+00> : vector<256x256xf32>
    %22 = tpu.matmul %20, %21, %cst_10 {dimension_numbers = #tpu.dot_dimension_numbers<[1], [0], [0], [1], [0, 0, 1, 1], [], []>} : vector<256x128xbf16>, vector<128x256xbf16>, vector<256x256xf32> -> vector<256x256xf32>
    %23 = arith.addf %19, %22 : vector<256x256xf32>
    %24 = arith.addf %16, %23 : vector<256x256xf32>
    %c0_11 = arith.constant 0 : index
    %c0_12 = arith.constant 0 : index
    %25 = vector.load %arg10[%c0_11, %c0_12] : memref<256x256xf32, #tpu.memory_space<vmem>>, vector<256x256xf32>
    tpu.vector_store %arg10[%c0_11, %c0_12], %24 {strides = array<i32>} : memref<256x256xf32, #tpu.memory_space<vmem>>, vector<256x256xf32>,
    %c0_i32_13 = arith.constant 0 : i32
    %26 = arith.cmpi eq, %arg1, %c0_i32_13 : i32
    %27 = arith.extui %26 : i1 to i32
    %c0_i32_14 = arith.constant 0 : i32
    %28 = arith.cmpi ne, %27, %c0_i32_14 : i32
    scf.if %28 {
      %c0_15 = arith.constant 0 : index
      %c0_16 = arith.constant 0 : index
      %29 = vector.load %arg10[%c0_15, %c0_16] : memref<256x256xf32, #tpu.memory_space<vmem>>, vector<256x256xf32>
      %c0_17 = arith.constant 0 : index
      %c0_18 = arith.constant 0 : index
      %30 = vector.load %arg8[%c0_17, %c0_18] : memref<256x256xf32, #tpu.memory_space<vmem>>, vector<256x256xf32>
      tpu.vector_store %arg8[%c0_17, %c0_18], %29 {strides = array<i32>} : memref<256x256xf32, #tpu.memory_space<vmem>>, vector<256x256xf32>,
    } else {
    }
    return
  }
  func.func @transform_0(%arg0: i32, %arg1: i32) -> (i32, i32) {
    %c0_i32 = arith.constant 0 : i32
    %c0_i32_0 = arith.constant 0 : i32
    return %arg0, %c0_i32 : i32, i32
  }
  func.func @transform_1(%arg0: i32, %arg1: i32) -> (i32, i32) {
    %c0_i32 = arith.constant 0 : i32
    %c0_i32_0 = arith.constant 0 : i32
    return %arg0, %c0_i32 : i32, i32
  }
  func.func @transform_2(%arg0: i32, %arg1: i32) -> (i32, i32) {
    %c0_i32 = arith.constant 0 : i32
    %c0_i32_0 = arith.constant 0 : i32
    %c0_i32_1 = arith.constant 0 : i32
    return %c0_i32, %c0_i32_0 : i32, i32
  }
  func.func @transform_3(%arg0: i32, %arg1: i32) -> (i32, i32) {
    %c0_i32 = arith.constant 0 : i32
    %c0_i32_0 = arith.constant 0 : i32
    %c0_i32_1 = arith.constant 0 : i32
    return %c0_i32, %c0_i32_0 : i32, i32
  }
  func.func @transform_4(%arg0: i32, %arg1: i32) -> (i32, i32) {
    %c0_i32 = arith.constant 0 : i32
    %c0_i32_0 = arith.constant 0 : i32
    return %c0_i32, %arg1 : i32, i32
  }
  func.func @transform_5(%arg0: i32, %arg1: i32) -> (i32, i32) {
    %c0_i32 = arith.constant 0 : i32
    %c0_i32_0 = arith.constant 0 : i32
    return %arg1, %c0_i32 : i32, i32
  }
  func.func @transform_6(%arg0: i32, %arg1: i32) -> (i32, i32) {
    %c0_i32 = arith.constant 0 : i32
    %c0_i32_0 = arith.constant 0 : i32
    return %arg0, %c0_i32 : i32, i32
  }
}

</mosaic_0001>

<llo_original>
// kernel: tpu_custom_call.1
$region0: #{tpu_custom_call.1}
  #allocation0 [shape = 'u32[]', space=smem, size = 0x4, offset = 0x4, fixed_abs, tag = 'smem constant byte address 0x4 - core index']
  #allocation1 [shape = 'u32[144,128]{1,0:T(1,128)}', space=vmem, size = 0x12000, scoped, tag = 'internal scratch']
  #allocation2 [shape = 'bf16[512,256]{1,0:T(16,128)(2,1)}', space=vmem, size = 0x40000, scoped, tag = 'scratch operand']
  #allocation3 [shape = 'f32[256,256]{1,0:T(8,128)}', space=vmem, size = 0x40000, scoped, tag = 'scratch operand']
  %s0 = inlined_call_operand.vmem [shape: bf16[512,64], index: 0, kind: input, shape index: {}]
  %s1 = inlined_call_operand.vmem [shape: bf16[512,96], index: 1, kind: input, shape index: {}]
  %s2 = inlined_call_operand.vmem [shape: bf16[64,256], index: 2, kind: input, shape index: {}]
  %s3 = inlined_call_operand.vmem [shape: bf16[96,256], index: 3, kind: input, shape index: {}]
  %s4 = inlined_call_operand.vmem [shape: bf16[256,256], index: 4, kind: input, shape index: {}]
  %s5 = inlined_call_operand.vmem [shape: bf16[256,256], index: 5, kind: input, shape index: {}]
  %s6 = inlined_call_operand.hbm [shape: f32[512,256], index: 6, kind: output, shape index: {}]
  %s7 = sld [smem:[#allocation0]]
  $region65: #{tpu_custom_call.1} parent=0
    _
  %s9 = ssub.s32 1, %s7
  %s10 = scalar_select 0, %s9, %s7
  $region1: #{tpu_custom_call.1} parent=0
    #allocation4 [shape = 'u8[524288]{0}', space=vmem, size = 0x80000, scoped, tag = 'output window, operand 0']
    #allocation5 [shape = 's32[2]{0}', space=sflag, size = 0x8, scoped, tag = 'scoped memory for tpu_custom_call.1']
    %11 = vsyncpa [#allocation5], 0
    %s12 = scalar_lea.sflag [#allocation5], 1
    %13 = vsyncpa %s12, 0
    loop: start=0, step=1, limit=4
    $region2: #{tpu_custom_call.1} parent=1 // loop_pre_header
      _
    $region3: #{tpu_custom_call.1} parent=1 // loop_header
      %s15 = sphi 0, %s19
      %p16 = scmp.ge.s32.totalorder %s15, 4
      %s22 = sphi 0, %s34
      %s23 = sphi 0, %s30
      %s24 = sphi 0, %s22
      %s25 = sphi 0, %s23
      %s26 = sphi 0, %s24
      %s27 = sphi 0, %s25
      %s37 = sphi 0, %s39
      %s40 = sphi 0, %s37
      %s41 = sphi 0, %s40
      %s57 = sphi 0, %s41
      %s63 = sphi 0, %s65
      %s66 = sphi 0, %s63
      %s67 = sphi 0, %s66
      %s83 = sphi 0, %s67
      %s87 = sphi 0, %s87
      %s89 = sphi 0, %s87
      %s90 = sphi 0, %s89
      %s104 = sphi 0, %s90
      %s108 = sphi 0, %s108
      %s110 = sphi 0, %s108
      %s111 = sphi 0, %s110
      %s125 = sphi 0, %s111
      %s131 = sphi 0, %s133
      %s134 = sphi 0, %s131
      %s135 = sphi 0, %s134
      %s151 = sphi 0, %s135
      %s157 = sphi 0, %s159
      %s160 = sphi 0, %s157
      %s161 = sphi 0, %s160
      %s177 = sphi 0, %s161
      %s183 = sphi 0, %s185
      %s186 = sphi 0, %s183
      %s187 = sphi 0, %s186
      %s203 = sphi 0, %s187
    $region4: #{tpu_custom_call.1} parent=1 // loop_header_branch
      %18 = sbr.rel (%p16) target = $region8
    $region5: #{tpu_custom_call.1} parent=1 // loop_body
      %s20 = ssub.s32 %s15, 1
      %s21 = ssub.s32 %s15, 2
      %s28 = sadd.s32 1, %s23
      %p29 = scmp.ge.s32.totalorder %s28, 1
      %s30 = scalar_select %p29, 0, %s28
      %s31 = sadd.s32 1, %s22
      %s32 = scalar_select %p29, %s31, %s22
      %p33 = scmp.ge.s32.totalorder %s32, 2
      %s34 = scalar_select %p33, 0, %s32
      %s35 = ssub.s32 %s22, %s34
      %p36 = scmp.eq.s32.totalorder %s35, 0
      %s38 = sadd.s32 %s37, 1
      %s39 = scalar_select %p36, %s37, %s38
      %p42 = pneg %p36
      %p43 = scmp.eq.s32.totalorder %s15, 1
      %p44 = por %p42, %p43
      %p45 = scmp.ne.s32.totalorder %s37, %s40
      %p46 = scmp.eq.s32.totalorder %s15, 0
      %p47 = por %p45, %p46
      %p48 = scmp.ne.s32.totalorder %s37, %s40
      %p49 = scmp.eq.s32.totalorder %s20, 1
      %p50 = por %p48, %p49
      %p51 = scmp.ne.s32.totalorder %s40, %s41
      %p52 = scmp.eq.s32.totalorder %s20, 0
      %p53 = por %p51, %p52
      %p54 = scmp.ne.s32.totalorder %s40, %s41
      %p55 = scmp.eq.s32.totalorder %s21, 1
      %p56 = por %p54, %p55
      %p58 = scmp.ne.s32.totalorder %s41, %s57
      %p59 = scmp.eq.s32.totalorder %s21, 0
      %p60 = por %p58, %p59
      %s61 = ssub.s32 %s22, %s34
      %p62 = scmp.eq.s32.totalorder %s61, 0
      %s64 = sadd.s32 %s63, 1
      %s65 = scalar_select %p62, %s63, %s64
      %p68 = pneg %p62
      %p69 = scmp.eq.s32.totalorder %s15, 1
      %p70 = por %p68, %p69
      %p71 = scmp.ne.s32.totalorder %s63, %s66
      %p72 = scmp.eq.s32.totalorder %s15, 0
      %p73 = por %p71, %p72
      %p74 = scmp.ne.s32.totalorder %s63, %s66
      %p75 = scmp.eq.s32.totalorder %s20, 1
      %p76 = por %p74, %p75
      %p77 = scmp.ne.s32.totalorder %s66, %s67
      %p78 = scmp.eq.s32.totalorder %s20, 0
      %p79 = por %p77, %p78
      %p80 = scmp.ne.s32.totalorder %s66, %s67
      %p81 = scmp.eq.s32.totalorder %s21, 1
      %p82 = por %p80, %p81
      %p84 = scmp.ne.s32.totalorder %s67, %s83
      %p85 = scmp.eq.s32.totalorder %s21, 0
      %p86 = por %p84, %p85
      %s88 = sadd.s32 %s87, 1
      %p91 = scmp.eq.s32.totalorder %s15, 1
      %p92 = scmp.ne.s32.totalorder %s87, %s89
      %p93 = scmp.eq.s32.totalorder %s15, 0
      %p94 = por %p92, %p93
      %p95 = scmp.ne.s32.totalorder %s87, %s89
      %p96 = scmp.eq.s32.totalorder %s20, 1
      %p97 = por %p95, %p96
      %p98 = scmp.ne.s32.totalorder %s89, %s90
      %p99 = scmp.eq.s32.totalorder %s20, 0
      %p100 = por %p98, %p99
      %p101 = scmp.ne.s32.totalorder %s89, %s90
      %p102 = scmp.eq.s32.totalorder %s21, 1
      %p103 = por %p101, %p102
      %p105 = scmp.ne.s32.totalorder %s90, %s104
      %p106 = scmp.eq.s32.totalorder %s21, 0
      %p107 = por %p105, %p106
      %s109 = sadd.s32 %s108, 1
      %p112 = scmp.eq.s32.totalorder %s15, 1
      %p113 = scmp.ne.s32.totalorder %s108, %s110
      %p114 = scmp.eq.s32.totalorder %s15, 0
      %p115 = por %p113, %p114
      %p116 = scmp.ne.s32.totalorder %s108, %s110
      %p117 = scmp.eq.s32.totalorder %s20, 1
      %p118 = por %p116, %p117
      %p119 = scmp.ne.s32.totalorder %s110, %s111
      %p120 = scmp.eq.s32.totalorder %s20, 0
      %p121 = por %p119, %p120
      %p122 = scmp.ne.s32.totalorder %s110, %s111
      %p123 = scmp.eq.s32.totalorder %s21, 1
      %p124 = por %p122, %p123
      %p126 = scmp.ne.s32.totalorder %s111, %s125
      %p127 = scmp.eq.s32.totalorder %s21, 0
      %p128 = por %p126, %p127
      %s129 = ssub.s32 %s23, %s30
      %p130 = scmp.eq.s32.totalorder %s129, 0
      %s132 = sadd.s32 %s131, 1
      %s133 = scalar_select %p130, %s131, %s132
      %p136 = pneg %p130
      %p137 = scmp.eq.s32.totalorder %s15, 1
      %p138 = por %p136, %p137
      %p139 = scmp.ne.s32.totalorder %s131, %s134
      %p140 = scmp.eq.s32.totalorder %s15, 0
      %p141 = por %p139, %p140
      %p142 = scmp.ne.s32.totalorder %s131, %s134
      %p143 = scmp.eq.s32.totalorder %s20, 1
      %p144 = por %p142, %p143
      %p145 = scmp.ne.s32.totalorder %s134, %s135
      %p146 = scmp.eq.s32.totalorder %s20, 0
      %p147 = por %p145, %p146
      %p148 = scmp.ne.s32.totalorder %s134, %s135
      %p149 = scmp.eq.s32.totalorder %s21, 1
      %p150 = por %p148, %p149
      %p152 = scmp.ne.s32.totalorder %s135, %s151
      %p153 = scmp.eq.s32.totalorder %s21, 0
      %p154 = por %p152, %p153
      %s155 = ssub.s32 %s23, %s30
      %p156 = scmp.eq.s32.totalorder %s155, 0
      %s158 = sadd.s32 %s157, 1
      %s159 = scalar_select %p156, %s157, %s158
      %p162 = pneg %p156
      %p163 = scmp.eq.s32.totalorder %s15, 1
      %p164 = por %p162, %p163
      %p165 = scmp.ne.s32.totalorder %s157, %s160
      %p166 = scmp.eq.s32.totalorder %s15, 0
      %p167 = por %p165, %p166
      %p168 = scmp.ne.s32.totalorder %s157, %s160
      %p169 = scmp.eq.s32.totalorder %s20, 1
      %p170 = por %p168, %p169
      %p171 = scmp.ne.s32.totalorder %s160, %s161
      %p172 = scmp.eq.s32.totalorder %s20, 0
      %p173 = por %p171, %p172
      %p174 = scmp.ne.s32.totalorder %s160, %s161
      %p175 = scmp.eq.s32.totalorder %s21, 1
      %p176 = por %p174, %p175
      %p178 = scmp.ne.s32.totalorder %s161, %s177
      %p179 = scmp.eq.s32.totalorder %s21, 0
      %p180 = por %p178, %p179
      %s181 = ssub.s32 %s22, %s34
      %p182 = scmp.eq.s32.totalorder %s181, 0
      %s184 = sadd.s32 %s183, 1
      %s185 = scalar_select %p182, %s183, %s184
      %p188 = pneg %p182
      %p189 = scmp.eq.s32.totalorder %s15, 1
      %p190 = por %p188, %p189
      %p191 = scmp.ne.s32.totalorder %s183, %s186
      %p192 = scmp.eq.s32.totalorder %s15, 0
      %p193 = por %p191, %p192
      %p194 = scmp.ne.s32.totalorder %s183, %s186
      %p195 = scmp.eq.s32.totalorder %s20, 1
      %p196 = por %p194, %p195
      %p197 = scmp.ne.s32.totalorder %s186, %s187
      %p198 = scmp.eq.s32.totalorder %s20, 0
      %p199 = por %p197, %p198
      %p200 = scmp.ne.s32.totalorder %s186, %s187
      %p201 = scmp.eq.s32.totalorder %s21, 1
      %p202 = por %p200, %p201
      %p204 = scmp.ne.s32.totalorder %s187, %s203
      %p205 = scmp.eq.s32.totalorder %s21, 0
      %p206 = por %p204, %p205
      %p207 = scmp.le.s32.totalorder 1, %s15
      %p208 = scmp.lt.s32.totalorder %s15, 3
      %p209 = pnand %p207, %p208
      %p210 = pneg %p209
      // Predicated region
      $region9: #{tpu_custom_call.1} parent=5 // pred_check
        _
      $region10: #{tpu_custom_call.1} parent=5 // pred_check_branch
        %212 = sbr.rel (%p209) target = $region12
      $region11: #{tpu_custom_call.1} parent=5 // pred_region
        %s213 = ssub.s32 %s15, 1
        // Predicated region
        $region13: #{tpu_custom_call.1} parent=11 // pred_check
          %p214 = pneg %p100
        $region14: #{tpu_custom_call.1} parent=11 // pred_check_branch
          %216 = sbr.rel (%p214) target = $region16
        $region15: #{tpu_custom_call.1} parent=11 // pred_region
          _
        $region16: #{tpu_custom_call.1} parent=11 // pred_fallthru
          _
        // Predicated region
        $region17: #{tpu_custom_call.1} parent=11 // pred_check
          %p217 = pneg %p121
        $region18: #{tpu_custom_call.1} parent=11 // pred_check_branch
          %219 = sbr.rel (%p217) target = $region20
        $region19: #{tpu_custom_call.1} parent=11 // pred_region
          _
        $region20: #{tpu_custom_call.1} parent=11 // pred_fallthru
          _
        // Predicated region
        $region21: #{tpu_custom_call.1} parent=11 // pred_check
          %p220 = pneg %p147
        $region22: #{tpu_custom_call.1} parent=11 // pred_check_branch
          %222 = sbr.rel (%p220) target = $region24
        $region23: #{tpu_custom_call.1} parent=11 // pred_region
          %s223 = smul.u32 2, %s25
          %p224 = scmp.lt.s32.totalorder %s223, 1
          %s225 = scalar_select %p224, %s223, 1
          %s226 = smul.addr %s225, 4
          %s227 = scalar_lea.vmem %s4, %s226
          %s228 = smul.u32 2, %s25
        $region24: #{tpu_custom_call.1} parent=11 // pred_fallthru
          _
        // Predicated region
        $region25: #{tpu_custom_call.1} parent=11 // pred_check
          %p229 = pneg %p173
        $region26: #{tpu_custom_call.1} parent=11 // pred_check_branch
          %231 = sbr.rel (%p229) target = $region28
        $region27: #{tpu_custom_call.1} parent=11 // pred_region
          %s232 = smul.u32 32, %s25
          %p233 = scmp.lt.s32.totalorder %s232, 31
          %s234 = scalar_select %p233, %s232, 31
          %s235 = smul.addr %s234, 2
          %s236 = smul.addr %s235, 4
          %s237 = scalar_lea.vmem %s5, %s236
          %s238 = smul.u32 32, %s25
        $region28: #{tpu_custom_call.1} parent=11 // pred_fallthru
          _
      $region12: #{tpu_custom_call.1} parent=5 // pred_fallthru
        _
      %p239 = scmp.lt.s32.totalorder %s15, 2
      // Predicated region
      $region29: #{tpu_custom_call.1} parent=5 // pred_check
        %p240 = pneg %p239
      $region30: #{tpu_custom_call.1} parent=5 // pred_check_branch
        %242 = sbr.rel (%p240) target = $region32
      $region31: #{tpu_custom_call.1} parent=5 // pred_region
        // Predicated region
        $region33: #{tpu_custom_call.1} parent=31 // pred_check
          %p243 = pneg %p47
        $region34: #{tpu_custom_call.1} parent=31 // pred_check_branch
          %245 = sbr.rel (%p243) target = $region36
        $region35: #{tpu_custom_call.1} parent=31 // pred_region
          %s246 = smul.u32 32, %s22
          %p247 = scmp.lt.s32.totalorder %s246, 63
          %s248 = scalar_select %p247, %s246, 63
          %s249 = smul.addr %s248, 4
          %s250 = scalar_lea.vmem %s0, %s249
          %s251 = smul.u32 32, %s22
        $region36: #{tpu_custom_call.1} parent=31 // pred_fallthru
          _
        // Predicated region
        $region37: #{tpu_custom_call.1} parent=31 // pred_check
          %p252 = pneg %p73
        $region38: #{tpu_custom_call.1} parent=31 // pred_check_branch
          %254 = sbr.rel (%p252) target = $region40
        $region39: #{tpu_custom_call.1} parent=31 // pred_region
          %s255 = smul.u32 32, %s22
          %p256 = scmp.lt.s32.totalorder %s255, 63
          %s257 = scalar_select %p256, %s255, 63
          %s258 = smul.addr %s257, 4
          %s259 = scalar_lea.vmem %s1, %s258
          %s260 = smul.u32 32, %s22
        $region40: #{tpu_custom_call.1} parent=31 // pred_fallthru
          _
      $region32: #{tpu_custom_call.1} parent=5 // pred_fallthru
        _
      %p261 = scmp.le.s32.totalorder 1, %s15
      %p262 = scmp.lt.s32.totalorder %s15, 3
      %p263 = pnand %p261, %p262
      %p264 = pneg %p263
      // Predicated region
      $region41: #{tpu_custom_call.1} parent=5 // pred_check
        _
      $region42: #{tpu_custom_call.1} parent=5 // pred_check_branch
        %266 = sbr.rel (%p263) target = $region44
      $region43: #{tpu_custom_call.1} parent=5 // pred_region
        %s267 = ssub.s32 %s15, 1
        %s268 = smul.u32 32, %s24
        %p269 = scmp.lt.s32.totalorder %s268, 63
        %s270 = scalar_select %p269, %s268, 63
        %s271 = smul.addr %s270, 4
        %s272 = scalar_lea.vmem %s0, %s271
        %p273 = pneg %p53
        %p274 = pneg %p50
        %s275 = smul.u32 32, %s24
        %p276 = scmp.lt.s32.totalorder %s275, 63
        %s277 = scalar_select %p276, %s275, 63
        %s278 = smul.addr %s277, 4
        %s279 = scalar_lea.vmem %s1, %s278
        %p280 = pneg %p79
        %p281 = pneg %p76
        %p282 = pneg %p100
        %p283 = pneg %p97
        %p284 = pneg %p121
        %p285 = pneg %p118
        %s286 = smul.u32 2, %s25
        %p287 = scmp.lt.s32.totalorder %s286, 1
        %s288 = scalar_select %p287, %s286, 1
        %s289 = smul.addr %s288, 4
        %s290 = scalar_lea.vmem %s4, %s289
        %p291 = pneg %p147
        %p292 = pneg %p144
        %s293 = smul.u32 32, %s25
        %p294 = scmp.lt.s32.totalorder %s293, 31
        %s295 = scalar_select %p294, %s293, 31
        %s296 = smul.addr %s295, 2
        %s297 = smul.addr %s296, 4
        %s298 = scalar_lea.vmem %s5, %s297
        %p299 = pneg %p173
        %p300 = pneg %p170
        %p301 = pneg %p199
        %p302 = pneg %p196
        %s303 = sand.u32 %s186, 1
        %s304 = scalar_lea.sflag [#allocation5], %s303
        %s305 = sand.u32 %s186, 1
        %s306 = smul.addr %s305, 512
        %s307 = scalar_lea.vmem [#allocation4], %s306
        %s308 = smul.u32 32, %s24
        %p309 = scmp.lt.s32.totalorder %s308, 63
        %s310 = scalar_select %p309, %s308, 63
        %s311 = smul.addr %s310, 4
        %s312 = scalar_lea.vmem %s0, %s311
        %s313 = smul.u32 32, %s24
        %s314 = smul.u32 32, %s24
        %p315 = scmp.lt.s32.totalorder %s314, 63
        %s316 = scalar_select %p315, %s314, 63
        %s317 = smul.addr %s316, 4
        %s318 = scalar_lea.vmem %s1, %s317
        %s319 = smul.u32 32, %s24
        %s320 = smul.u32 2, %s25
        %p321 = scmp.lt.s32.totalorder %s320, 1
        %s322 = scalar_select %p321, %s320, 1
        %s323 = smul.addr %s322, 4
        %s324 = scalar_lea.vmem %s4, %s323
        %s325 = smul.u32 2, %s25
        %s326 = smul.u32 32, %s25
        %p327 = scmp.lt.s32.totalorder %s326, 31
        %s328 = scalar_select %p327, %s326, 31
        %s329 = smul.addr %s328, 2
        %s330 = smul.addr %s329, 4
        %s331 = scalar_lea.vmem %s5, %s330
        %s332 = smul.u32 32, %s25
        %s333 = smul.u32 32, %s24
        %p335 = scmp.eq.s32.totalorder %s25, 0
        // Predicated region
        $region45: #{tpu_custom_call.1} parent=43 // pred_check
          %p336 = pneg %p335
        $region46: #{tpu_custom_call.1} parent=43 // pred_check_branch
          %338 = sbr.rel (%p336) target = $region48
        $region47: #{tpu_custom_call.1} parent=43 // pred_region
          %v339 = vld [vmem:[%s312] sm:$0xf]
          %v340 = vld [vmem:[%s312 + $0x4] sm:$0xf]
          %v341 = vld [vmem:[%s312 + $0x8] sm:$0xf]
          %v342 = vld [vmem:[%s312 + $0xc] sm:$0xf]
          %v343 = vld [vmem:[%s312 + $0x10] sm:$0xf]
          %v344 = vld [vmem:[%s312 + $0x14] sm:$0xf]
          %v345 = vld [vmem:[%s312 + $0x18] sm:$0xf]
          %v346 = vld [vmem:[%s312 + $0x1c] sm:$0xf]
          %v347 = vld [vmem:[%s312 + $0x20] sm:$0xf]
          %v348 = vld [vmem:[%s312 + $0x24] sm:$0xf]
          %v349 = vld [vmem:[%s312 + $0x28] sm:$0xf]
          %v350 = vld [vmem:[%s312 + $0x2c] sm:$0xf]
          %v351 = vld [vmem:[%s312 + $0x30] sm:$0xf]
          %v352 = vld [vmem:[%s312 + $0x34] sm:$0xf]
          %v353 = vld [vmem:[%s312 + $0x38] sm:$0xf]
          %v354 = vld [vmem:[%s312 + $0x3c] sm:$0xf]
          %v355 = vld [vmem:[%s312 + $0x40] sm:$0xf]
          %v356 = vld [vmem:[%s312 + $0x44] sm:$0xf]
          %v357 = vld [vmem:[%s312 + $0x48] sm:$0xf]
          %v358 = vld [vmem:[%s312 + $0x4c] sm:$0xf]
          %v359 = vld [vmem:[%s312 + $0x50] sm:$0xf]
          %v360 = vld [vmem:[%s312 + $0x54] sm:$0xf]
          %v361 = vld [vmem:[%s312 + $0x58] sm:$0xf]
          %v362 = vld [vmem:[%s312 + $0x5c] sm:$0xf]
          %v363 = vld [vmem:[%s312 + $0x60] sm:$0xf]
          %v364 = vld [vmem:[%s312 + $0x64] sm:$0xf]
          %v365 = vld [vmem:[%s312 + $0x68] sm:$0xf]
          %v366 = vld [vmem:[%s312 + $0x6c] sm:$0xf]
          %v367 = vld [vmem:[%s312 + $0x70] sm:$0xf]
          %v368 = vld [vmem:[%s312 + $0x74] sm:$0xf]
          %v369 = vld [vmem:[%s312 + $0x78] sm:$0xf]
          %v370 = vld [vmem:[%s312 + $0x7c] sm:$0xf]
          %v371 = vld [vmem:[%s2] sm:$0xff]
          %v372 = vld [vmem:[%s2 + $0x8] sm:$0xff]
          %v373 = vld [vmem:[%s2 + $0x10] sm:$0xff]
          %v374 = vld [vmem:[%s2 + $0x18] sm:$0xff]
          %v375 = vld [vmem:[%s2 + $0x20] sm:$0xff]
          %v376 = vld [vmem:[%s2 + $0x28] sm:$0xff]
          %v377 = vld [vmem:[%s2 + $0x30] sm:$0xff]
          %v378 = vld [vmem:[%s2 + $0x38] sm:$0xff]
          %v411 = vunpack.c.l.b16 %v339
          %v412 = vunpack.c.l.b16 %v340
          %v413 = vunpack.c.l.b16 %v341
          %v414 = vunpack.c.l.b16 %v342
          %v415 = vunpack.c.l.b16 %v343
          %v416 = vunpack.c.l.b16 %v344
          %v417 = vunpack.c.l.b16 %v345
          %v418 = vunpack.c.l.b16 %v346
          %v419 = vunpack.c.l.b16 %v347
          %v420 = vunpack.c.l.b16 %v348
          %v421 = vunpack.c.l.b16 %v349
          %v422 = vunpack.c.l.b16 %v350
          %v423 = vunpack.c.l.b16 %v351
          %v424 = vunpack.c.l.b16 %v352
          %v425 = vunpack.c.l.b16 %v353
          %v426 = vunpack.c.l.b16 %v354
          %v427 = vunpack.c.l.b16 %v355
          %v428 = vunpack.c.l.b16 %v356
          %v429 = vunpack.c.l.b16 %v357
          %v430 = vunpack.c.l.b16 %v358
          %v431 = vunpack.c.l.b16 %v359
          %v432 = vunpack.c.l.b16 %v360
          %v433 = vunpack.c.l.b16 %v361
          %v434 = vunpack.c.l.b16 %v362
          %v435 = vunpack.c.l.b16 %v363
          %v436 = vunpack.c.l.b16 %v364
          %v437 = vunpack.c.l.b16 %v365
          %v438 = vunpack.c.l.b16 %v366
          %v439 = vunpack.c.l.b16 %v367
          %v440 = vunpack.c.l.b16 %v368
          %v441 = vunpack.c.l.b16 %v369
          %v442 = vunpack.c.l.b16 %v370
          %v443 = vpack.c.b16 %v412, %v411
          %v444 = vpack.c.b16 %v414, %v413
          %v445 = vpack.c.b16 %v416, %v415
          %v446 = vpack.c.b16 %v418, %v417
          %v447 = vpack.c.b16 %v420, %v419
          %v448 = vpack.c.b16 %v422, %v421
          %v449 = vpack.c.b16 %v424, %v423
          %v450 = vpack.c.b16 %v426, %v425
          %v451 = vpack.c.b16 %v428, %v427
          %v452 = vpack.c.b16 %v430, %v429
          %v453 = vpack.c.b16 %v432, %v431
          %v454 = vpack.c.b16 %v434, %v433
          %v455 = vpack.c.b16 %v436, %v435
          %v456 = vpack.c.b16 %v438, %v437
          %v457 = vpack.c.b16 %v440, %v439
          %v458 = vpack.c.b16 %v442, %v441
          %v467 = vunpack.c.l.b16 %v371
          %v468 = vunpack.c.h.b16 %v371
          %v469 = vunpack.c.l.b16 %v372
          %v470 = vunpack.c.h.b16 %v372
          %v471 = vunpack.c.l.b16 %v373
          %v472 = vunpack.c.h.b16 %v373
          %v473 = vunpack.c.l.b16 %v374
          %v474 = vunpack.c.h.b16 %v374
          %v475 = vunpack.c.l.b16 %v375
          %v476 = vunpack.c.h.b16 %v375
          %v477 = vunpack.c.l.b16 %v376
          %v478 = vunpack.c.h.b16 %v376
          %v479 = vunpack.c.l.b16 %v377
          %v480 = vunpack.c.h.b16 %v377
          %v481 = vunpack.c.l.b16 %v378
          %v482 = vunpack.c.h.b16 %v378
          %v483 = vpack.c.b16 %v469, %v467
          %v484 = vpack.c.b16 %v470, %v468
          %v485 = vpack.c.b16 %v473, %v471
          %v486 = vpack.c.b16 %v474, %v472
          %v487 = vpack.c.b16 %v477, %v475
          %v488 = vpack.c.b16 %v478, %v476
          %v489 = vpack.c.b16 %v481, %v479
          %v490 = vpack.c.b16 %v482, %v480
          %vm499 = vcmask 523264
          %v501 = vsel %vm499, %v443, 0
          %v504 = vsel %vm499, %v444, 0
          %v507 = vsel %vm499, %v445, 0
          %v510 = vsel %vm499, %v446, 0
          %v513 = vsel %vm499, %v447, 0
          %v516 = vsel %vm499, %v448, 0
          %v519 = vsel %vm499, %v449, 0
          %v522 = vsel %vm499, %v450, 0
          %v525 = vsel %vm499, %v451, 0
          %v528 = vsel %vm499, %v452, 0
          %v531 = vsel %vm499, %v453, 0
          %v534 = vsel %vm499, %v454, 0
          %v537 = vsel %vm499, %v455, 0
          %v540 = vsel %vm499, %v456, 0
          %v543 = vsel %vm499, %v457, 0
          %v546 = vsel %vm499, %v458, 0
          %548 = vmatprep.subr.bf16.mxu0 %v484
          %549 = vmatpush1.bf16.msra.mxu0 %v483
          %550 = vmatprep.subr.bf16.mxu0 %v486
          %551 = vmatpush1.bf16.msra.mxu0 %v485
          %552 = vmatprep.subr.bf16.mxu0 %v488
          %553 = vmatpush1.bf16.msra.mxu0 %v487
          %554 = vmatprep.subr.bf16.mxu0 %v490
          %555 = vmatpush1.bf16.msra.mxu0 %v489
          %556 = vmatprep.subr.bf16.mxu0 0
          %557 = vmatpush1.bf16.msra.mxu0 0
          %558 = vmatprep.subr.bf16.mxu0 0
          %559 = vmatpush1.bf16.msra.mxu0 0
          %560 = vmatprep.subr.bf16.mxu0 0
          %561 = vmatpush1.bf16.msra.mxu0 0
          %562 = vmatprep.subr.bf16.mxu0 0
          %563 = vmatpush1.bf16.msra.mxu0 0
          %564 = vmatprep.subr.bf16.mxu0 0
          %565 = vmatpush1.bf16.msra.mxu0 0
          %566 = vmatprep.subr.bf16.mxu0 0
          %567 = vmatpush1.bf16.msra.mxu0 0
          %568 = vmatprep.subr.bf16.mxu0 0
          %569 = vmatpush1.bf16.msra.mxu0 0
          %570 = vmatprep.subr.bf16.mxu0 0
          %571 = vmatpush1.bf16.msra.mxu0 0
          %572 = vmatprep.subr.bf16.mxu0 0
          %573 = vmatpush1.bf16.msra.mxu0 0
          %574 = vmatprep.subr.bf16.mxu0 0
          %575 = vmatpush1.bf16.msra.mxu0 0
          %576 = vmatprep.subr.bf16.mxu0 0
          %577 = vmatpush1.bf16.msra.mxu0 0
          %578 = vmatprep.subr.bf16.mxu0 0
          %579 = vmatpush1.bf16.msra.mxu0 0
          %580 = vmatprep.mubr.bf16.mxu0 0
          %581 = vmatmul.mubr.bf16.gmra.mrb[0].mxu0 %v501
          %v582 = vpop.f32.mrb[0].mxu0
          %v583 = vadd.f32 0.0, %v582
          %v584 = vpop.f32.mrb[0].mxu0
          %v585 = vadd.f32 0.0, %v584
          %v586 = vpop.f32.mrb[0].mxu0
          %v587 = vadd.f32 0.0, %v586
          %v588 = vpop.f32.mrb[0].mxu0
          %v589 = vadd.f32 0.0, %v588
          %590 = vmatprep.mubr.bf16.mxu0 0
          %591 = vmatmul.mubr.bf16.gmra.mrb[0].mxu0 %v504
          %v592 = vpop.f32.mrb[0].mxu0
          %v593 = vadd.f32 0.0, %v592
          %v594 = vpop.f32.mrb[0].mxu0
          %v595 = vadd.f32 0.0, %v594
          %v596 = vpop.f32.mrb[0].mxu0
          %v597 = vadd.f32 0.0, %v596
          %v598 = vpop.f32.mrb[0].mxu0
          %v599 = vadd.f32 0.0, %v598
          %600 = vmatprep.mubr.bf16.mxu0 0
          %601 = vmatmul.mubr.bf16.gmra.mrb[0].mxu0 %v507
          %v602 = vpop.f32.mrb[0].mxu0
          %v603 = vadd.f32 0.0, %v602
          %v604 = vpop.f32.mrb[0].mxu0
          %v605 = vadd.f32 0.0, %v604
          %v606 = vpop.f32.mrb[0].mxu0
          %v607 = vadd.f32 0.0, %v606
          %v608 = vpop.f32.mrb[0].mxu0
          %v609 = vadd.f32 0.0, %v608
          %610 = vmatprep.mubr.bf16.mxu0 0
          %611 = vmatmul.mubr.bf16.gmra.mrb[0].mxu0 %v510
          %v612 = vpop.f32.mrb[0].mxu0
          %v613 = vadd.f32 0.0, %v612
          %v614 = vpop.f32.mrb[0].mxu0
          %v615 = vadd.f32 0.0, %v614
          %v616 = vpop.f32.mrb[0].mxu0
          %v617 = vadd.f32 0.0, %v616
          %v618 = vpop.f32.mrb[0].mxu0
          %v619 = vadd.f32 0.0, %v618
          %620 = vmatprep.mubr.bf16.mxu0 0
          %621 = vmatmul.mubr.bf16.gmra.mrb[0].mxu0 %v513
          %v622 = vpop.f32.mrb[0].mxu0
          %v623 = vadd.f32 0.0, %v622
          %v624 = vpop.f32.mrb[0].mxu0
          %v625 = vadd.f32 0.0, %v624
          %v626 = vpop.f32.mrb[0].mxu0
          %v627 = vadd.f32 0.0, %v626
          %v628 = vpop.f32.mrb[0].mxu0
          %v629 = vadd.f32 0.0, %v628
          %630 = vmatprep.mubr.bf16.mxu0 0
          %631 = vmatmul.mubr.bf16.gmra.mrb[0].mxu0 %v516
          %v632 = vpop.f32.mrb[0].mxu0
          %v633 = vadd.f32 0.0, %v632
          %v634 = vpop.f32.mrb[0].mxu0
          %v635 = vadd.f32 0.0, %v634
          %v636 = vpop.f32.mrb[0].mxu0
          %v637 = vadd.f32 0.0, %v636
          %v638 = vpop.f32.mrb[0].mxu0
          %v639 = vadd.f32 0.0, %v638
          %640 = vmatprep.mubr.bf16.mxu0 0
          %641 = vmatmul.mubr.bf16.gmra.mrb[0].mxu0 %v519
          %v642 = vpop.f32.mrb[0].mxu0
          %v643 = vadd.f32 0.0, %v642
          %v644 = vpop.f32.mrb[0].mxu0
          %v645 = vadd.f32 0.0, %v644
          %v646 = vpop.f32.mrb[0].mxu0
          %v647 = vadd.f32 0.0, %v646
          %v648 = vpop.f32.mrb[0].mxu0
          %v649 = vadd.f32 0.0, %v648
          %650 = vmatprep.mubr.bf16.mxu0 0
          %651 = vmatmul.mubr.bf16.gmra.mrb[0].mxu0 %v522
          %v652 = vpop.f32.mrb[0].mxu0
          %v653 = vadd.f32 0.0, %v652
          %v654 = vpop.f32.mrb[0].mxu0
          %v655 = vadd.f32 0.0, %v654
          %v656 = vpop.f32.mrb[0].mxu0
          %v657 = vadd.f32 0.0, %v656
          %v658 = vpop.f32.mrb[0].mxu0
          %v659 = vadd.f32 0.0, %v658
          %660 = vmatprep.mubr.bf16.mxu0 0
          %661 = vmatmul.mubr.bf16.gmra.mrb[0].mxu0 %v525
          %v662 = vpop.f32.mrb[0].mxu0
          %v663 = vadd.f32 0.0, %v662
          %v664 = vpop.f32.mrb[0].mxu0
          %v665 = vadd.f32 0.0, %v664
          %v666 = vpop.f32.mrb[0].mxu0
          %v667 = vadd.f32 0.0, %v666
          %v668 = vpop.f32.mrb[0].mxu0
          %v669 = vadd.f32 0.0, %v668
          %670 = vmatprep.mubr.bf16.mxu0 0
          %671 = vmatmul.mubr.bf16.gmra.mrb[0].mxu0 %v528
          %v672 = vpop.f32.mrb[0].mxu0
          %v673 = vadd.f32 0.0, %v672
          %v674 = vpop.f32.mrb[0].mxu0
          %v675 = vadd.f32 0.0, %v674
          %v676 = vpop.f32.mrb[0].mxu0
          %v677 = vadd.f32 0.0, %v676
          %v678 = vpop.f32.mrb[0].mxu0
          %v679 = vadd.f32 0.0, %v678
          %680 = vmatprep.mubr.bf16.mxu0 0
          %681 = vmatmul.mubr.bf16.gmra.mrb[0].mxu0 %v531
          %v682 = vpop.f32.mrb[0].mxu0
          %v683 = vadd.f32 0.0, %v682
          %v684 = vpop.f32.mrb[0].mxu0
          %v685 = vadd.f32 0.0, %v684
          %v686 = vpop.f32.mrb[0].mxu0
          %v687 = vadd.f32 0.0, %v686
          %v688 = vpop.f32.mrb[0].mxu0
          %v689 = vadd.f32 0.0, %v688
          %690 = vmatprep.mubr.bf16.mxu0 0
          %691 = vmatmul.mubr.bf16.gmra.mrb[0].mxu0 %v534
          %v692 = vpop.f32.mrb[0].mxu0
          %v693 = vadd.f32 0.0, %v692
          %v694 = vpop.f32.mrb[0].mxu0
          %v695 = vadd.f32 0.0, %v694
          %v696 = vpop.f32.mrb[0].mxu0
          %v697 = vadd.f32 0.0, %v696
          %v698 = vpop.f32.mrb[0].mxu0
          %v699 = vadd.f32 0.0, %v698
          %700 = vmatprep.mubr.bf16.mxu0 0
          %701 = vmatmul.mubr.bf16.gmra.mrb[0].mxu0 %v537
          %v702 = vpop.f32.mrb[0].mxu0
          %v703 = vadd.f32 0.0, %v702
          %v704 = vpop.f32.mrb[0].mxu0
          %v705 = vadd.f32 0.0, %v704
          %v706 = vpop.f32.mrb[0].mxu0
          %v707 = vadd.f32 0.0, %v706
          %v708 = vpop.f32.mrb[0].mxu0
          %v709 = vadd.f32 0.0, %v708
          %710 = vmatprep.mubr.bf16.mxu0 0
          %711 = vmatmul.mubr.bf16.gmra.mrb[0].mxu0 %v540
          %v712 = vpop.f32.mrb[0].mxu0
          %v713 = vadd.f32 0.0, %v712
          %v714 = vpop.f32.mrb[0].mxu0
          %v715 = vadd.f32 0.0, %v714
          %v716 = vpop.f32.mrb[0].mxu0
          %v717 = vadd.f32 0.0, %v716
          %v718 = vpop.f32.mrb[0].mxu0
          %v719 = vadd.f32 0.0, %v718
          %720 = vmatprep.mubr.bf16.mxu0 0
          %721 = vmatmul.mubr.bf16.gmra.mrb[0].mxu0 %v543
          %v722 = vpop.f32.mrb[0].mxu0
          %v723 = vadd.f32 0.0, %v722
          %v724 = vpop.f32.mrb[0].mxu0
          %v725 = vadd.f32 0.0, %v724
          %v726 = vpop.f32.mrb[0].mxu0
          %v727 = vadd.f32 0.0, %v726
          %v728 = vpop.f32.mrb[0].mxu0
          %v729 = vadd.f32 0.0, %v728
          %730 = vmatprep.mubr.bf16.mxu0 0
          %731 = vmatmul.mubr.bf16.gmra.mrb[0].mxu0 %v546
          %v732 = vpop.f32.mrb[0].mxu0
          %v733 = vadd.f32 0.0, %v732
          %v734 = vpop.f32.mrb[0].mxu0
          %v735 = vadd.f32 0.0, %v734
          %v736 = vpop.f32.mrb[0].mxu0
          %v737 = vadd.f32 0.0, %v736
          %v738 = vpop.f32.mrb[0].mxu0
          %v739 = vadd.f32 0.0, %v738
          %740 = vdwg.mxu0
          %v741 = vld [vmem:[%s318] sm:$0xf]
          %v742 = vld [vmem:[%s318 + $0x4] sm:$0xf]
          %v743 = vld [vmem:[%s318 + $0x8] sm:$0xf]
          %v744 = vld [vmem:[%s318 + $0xc] sm:$0xf]
          %v745 = vld [vmem:[%s318 + $0x10] sm:$0xf]
          %v746 = vld [vmem:[%s318 + $0x14] sm:$0xf]
          %v747 = vld [vmem:[%s318 + $0x18] sm:$0xf]
          %v748 = vld [vmem:[%s318 + $0x1c] sm:$0xf]
          %v749 = vld [vmem:[%s318 + $0x20] sm:$0xf]
          %v750 = vld [vmem:[%s318 + $0x24] sm:$0xf]
          %v751 = vld [vmem:[%s318 + $0x28] sm:$0xf]
          %v752 = vld [vmem:[%s318 + $0x2c] sm:$0xf]
          %v753 = vld [vmem:[%s318 + $0x30] sm:$0xf]
          %v754 = vld [vmem:[%s318 + $0x34] sm:$0xf]
          %v755 = vld [vmem:[%s318 + $0x38] sm:$0xf]
          %v756 = vld [vmem:[%s318 + $0x3c] sm:$0xf]
          %v757 = vld [vmem:[%s318 + $0x40] sm:$0xf]
          %v758 = vld [vmem:[%s318 + $0x44] sm:$0xf]
          %v759 = vld [vmem:[%s318 + $0x48] sm:$0xf]
          %v760 = vld [vmem:[%s318 + $0x4c] sm:$0xf]
          %v761 = vld [vmem:[%s318 + $0x50] sm:$0xf]
          %v762 = vld [vmem:[%s318 + $0x54] sm:$0xf]
          %v763 = vld [vmem:[%s318 + $0x58] sm:$0xf]
          %v764 = vld [vmem:[%s318 + $0x5c] sm:$0xf]
          %v765 = vld [vmem:[%s318 + $0x60] sm:$0xf]
          %v766 = vld [vmem:[%s318 + $0x64] sm:$0xf]
          %v767 = vld [vmem:[%s318 + $0x68] sm:$0xf]
          %v768 = vld [vmem:[%s318 + $0x6c] sm:$0xf]
          %v769 = vld [vmem:[%s318 + $0x70] sm:$0xf]
          %v770 = vld [vmem:[%s318 + $0x74] sm:$0xf]
          %v771 = vld [vmem:[%s318 + $0x78] sm:$0xf]
          %v772 = vld [vmem:[%s318 + $0x7c] sm:$0xf]
          %v773 = vld [vmem:[%s3] sm:$0xff]
          %v774 = vld [vmem:[%s3 + $0x8] sm:$0xff]
          %v775 = vld [vmem:[%s3 + $0x10] sm:$0xff]
          %v776 = vld [vmem:[%s3 + $0x18] sm:$0xff]
          %v777 = vld [vmem:[%s3 + $0x20] sm:$0xff]
          %v778 = vld [vmem:[%s3 + $0x28] sm:$0xff]
          %v779 = vld [vmem:[%s3 + $0x30] sm:$0xff]
          %v780 = vld [vmem:[%s3 + $0x38] sm:$0xff]
          %v781 = vld [vmem:[%s3 + $0x40] sm:$0xff]
          %v782 = vld [vmem:[%s3 + $0x48] sm:$0xff]
          %v783 = vld [vmem:[%s3 + $0x50] sm:$0xff]
          %v784 = vld [vmem:[%s3 + $0x58] sm:$0xff]
          %v817 = vunpack.c.l.b16 %v741
          %v818 = vunpack.c.l.b16 %v742
          %v819 = vunpack.c.l.b16 %v743
          %v820 = vunpack.c.l.b16 %v744
          %v821 = vunpack.c.l.b16 %v745
          %v822 = vunpack.c.l.b16 %v746
          %v823 = vunpack.c.l.b16 %v747
          %v824 = vunpack.c.l.b16 %v748
          %v825 = vunpack.c.l.b16 %v749
          %v826 = vunpack.c.l.b16 %v750
          %v827 = vunpack.c.l.b16 %v751
          %v828 = vunpack.c.l.b16 %v752
          %v829 = vunpack.c.l.b16 %v753
          %v830 = vunpack.c.l.b16 %v754
          %v831 = vunpack.c.l.b16 %v755
          %v832 = vunpack.c.l.b16 %v756
          %v833 = vunpack.c.l.b16 %v757
          %v834 = vunpack.c.l.b16 %v758
          %v835 = vunpack.c.l.b16 %v759
          %v836 = vunpack.c.l.b16 %v760
          %v837 = vunpack.c.l.b16 %v761
          %v838 = vunpack.c.l.b16 %v762
          %v839 = vunpack.c.l.b16 %v763
          %v840 = vunpack.c.l.b16 %v764
          %v841 = vunpack.c.l.b16 %v765
          %v842 = vunpack.c.l.b16 %v766
          %v843 = vunpack.c.l.b16 %v767
          %v844 = vunpack.c.l.b16 %v768
          %v845 = vunpack.c.l.b16 %v769
          %v846 = vunpack.c.l.b16 %v770
          %v847 = vunpack.c.l.b16 %v771
          %v848 = vunpack.c.l.b16 %v772
          %v849 = vpack.c.b16 %v818, %v817
          %v850 = vpack.c.b16 %v820, %v819
          %v851 = vpack.c.b16 %v822, %v821
          %v852 = vpack.c.b16 %v824, %v823
          %v853 = vpack.c.b16 %v826, %v825
          %v854 = vpack.c.b16 %v828, %v827
          %v855 = vpack.c.b16 %v830, %v829
          %v856 = vpack.c.b16 %v832, %v831
          %v857 = vpack.c.b16 %v834, %v833
          %v858 = vpack.c.b16 %v836, %v835
          %v859 = vpack.c.b16 %v838, %v837
          %v860 = vpack.c.b16 %v840, %v839
          %v861 = vpack.c.b16 %v842, %v841
          %v862 = vpack.c.b16 %v844, %v843
          %v863 = vpack.c.b16 %v846, %v845
          %v864 = vpack.c.b16 %v848, %v847
          %v877 = vunpack.c.l.b16 %v773
          %v878 = vunpack.c.h.b16 %v773
          %v879 = vunpack.c.l.b16 %v774
          %v880 = vunpack.c.h.b16 %v774
          %v881 = vunpack.c.l.b16 %v775
          %v882 = vunpack.c.h.b16 %v775
          %v883 = vunpack.c.l.b16 %v776
          %v884 = vunpack.c.h.b16 %v776
          %v885 = vunpack.c.l.b16 %v777
          %v886 = vunpack.c.h.b16 %v777
          %v887 = vunpack.c.l.b16 %v778
          %v888 = vunpack.c.h.b16 %v778
          %v889 = vunpack.c.l.b16 %v779
          %v890 = vunpack.c.h.b16 %v779
          %v891 = vunpack.c.l.b16 %v780
          %v892 = vunpack.c.h.b16 %v780
          %v893 = vunpack.c.l.b16 %v781
          %v894 = vunpack.c.h.b16 %v781
          %v895 = vunpack.c.l.b16 %v782
          %v896 = vunpack.c.h.b16 %v782
          %v897 = vunpack.c.l.b16 %v783
          %v898 = vunpack.c.h.b16 %v783
          %v899 = vunpack.c.l.b16 %v784
          %v900 = vunpack.c.h.b16 %v784
          %v901 = vpack.c.b16 %v879, %v877
          %v902 = vpack.c.b16 %v880, %v878
          %v903 = vpack.c.b16 %v883, %v881
          %v904 = vpack.c.b16 %v884, %v882
          %v905 = vpack.c.b16 %v887, %v885
          %v906 = vpack.c.b16 %v888, %v886
          %v907 = vpack.c.b16 %v891, %v889
          %v908 = vpack.c.b16 %v892, %v890
          %v909 = vpack.c.b16 %v895, %v893
          %v910 = vpack.c.b16 %v896, %v894
          %v911 = vpack.c.b16 %v899, %v897
          %v912 = vpack.c.b16 %v900, %v898
          %vm925 = vcmask 785408
          %v927 = vsel %vm925, %v849, 0
          %v930 = vsel %vm925, %v850, 0
          %v933 = vsel %vm925, %v851, 0
          %v936 = vsel %vm925, %v852, 0
          %v939 = vsel %vm925, %v853, 0
          %v942 = vsel %vm925, %v854, 0
          %v945 = vsel %vm925, %v855, 0
          %v948 = vsel %vm925, %v856, 0
          %v951 = vsel %vm925, %v857, 0
          %v954 = vsel %vm925, %v858, 0
          %v957 = vsel %vm925, %v859, 0
          %v960 = vsel %vm925, %v860, 0
          %v963 = vsel %vm925, %v861, 0
          %v966 = vsel %vm925, %v862, 0
          %v969 = vsel %vm925, %v863, 0
          %v972 = vsel %vm925, %v864, 0
          %974 = vmatprep.subr.bf16.mxu0 %v902
          %975 = vmatpush1.bf16.msra.mxu0 %v901
          %976 = vmatprep.subr.bf16.mxu0 %v904
          %977 = vmatpush1.bf16.msra.mxu0 %v903
          %978 = vmatprep.subr.bf16.mxu0 %v906
          %979 = vmatpush1.bf16.msra.mxu0 %v905
          %980 = vmatprep.subr.bf16.mxu0 %v908
          %981 = vmatpush1.bf16.msra.mxu0 %v907
          %982 = vmatprep.subr.bf16.mxu0 %v910
          %983 = vmatpush1.bf16.msra.mxu0 %v909
          %984 = vmatprep.subr.bf16.mxu0 %v912
          %985 = vmatpush1.bf16.msra.mxu0 %v911
          %986 = vmatprep.subr.bf16.mxu0 0
          %987 = vmatpush1.bf16.msra.mxu0 0
          %988 = vmatprep.subr.bf16.mxu0 0
          %989 = vmatpush1.bf16.msra.mxu0 0
          %990 = vmatprep.subr.bf16.mxu0 0
          %991 = vmatpush1.bf16.msra.mxu0 0
          %992 = vmatprep.subr.bf16.mxu0 0
          %993 = vmatpush1.bf16.msra.mxu0 0
          %994 = vmatprep.subr.bf16.mxu0 0
          %995 = vmatpush1.bf16.msra.mxu0 0
          %996 = vmatprep.subr.bf16.mxu0 0
          %997 = vmatpush1.bf16.msra.mxu0 0
          %998 = vmatprep.subr.bf16.mxu0 0
          %999 = vmatpush1.bf16.msra.mxu0 0
          %1000 = vmatprep.subr.bf16.mxu0 0
          %1001 = vmatpush1.bf16.msra.mxu0 0
          %1002 = vmatprep.subr.bf16.mxu0 0
          %1003 = vmatpush1.bf16.msra.mxu0 0
          %1004 = vmatprep.subr.bf16.mxu0 0
          %1005 = vmatpush1.bf16.msra.mxu0 0
          %1006 = vmatprep.mubr.bf16.mxu0 0
          %1007 = vmatmul.mubr.bf16.gmra.mrb[0].mxu0 %v927
          %v1008 = vpop.f32.mrb[0].mxu0
          %v1009 = vadd.f32 0.0, %v1008
          %v1010 = vpop.f32.mrb[0].mxu0
          %v1011 = vadd.f32 0.0, %v1010
          %v1012 = vpop.f32.mrb[0].mxu0
          %v1013 = vadd.f32 0.0, %v1012
          %v1014 = vpop.f32.mrb[0].mxu0
          %v1015 = vadd.f32 0.0, %v1014
          %1016 = vmatprep.mubr.bf16.mxu0 0
          %1017 = vmatmul.mubr.bf16.gmra.mrb[0].mxu0 %v930
          %v1018 = vpop.f32.mrb[0].mxu0
          %v1019 = vadd.f32 0.0, %v1018
          %v1020 = vpop.f32.mrb[0].mxu0
          %v1021 = vadd.f32 0.0, %v1020
          %v1022 = vpop.f32.mrb[0].mxu0
          %v1023 = vadd.f32 0.0, %v1022
          %v1024 = vpop.f32.mrb[0].mxu0
          %v1025 = vadd.f32 0.0, %v1024
          %1026 = vmatprep.mubr.bf16.mxu0 0
          %1027 = vmatmul.mubr.bf16.gmra.mrb[0].mxu0 %v933
          %v1028 = vpop.f32.mrb[0].mxu0
          %v1029 = vadd.f32 0.0, %v1028
          %v1030 = vpop.f32.mrb[0].mxu0
          %v1031 = vadd.f32 0.0, %v1030
          %v1032 = vpop.f32.mrb[0].mxu0
          %v1033 = vadd.f32 0.0, %v1032
          %v1034 = vpop.f32.mrb[0].mxu0
          %v1035 = vadd.f32 0.0, %v1034
          %1036 = vmatprep.mubr.bf16.mxu0 0
          %1037 = vmatmul.mubr.bf16.gmra.mrb[0].mxu0 %v936
          %v1038 = vpop.f32.mrb[0].mxu0
          %v1039 = vadd.f32 0.0, %v1038
          %v1040 = vpop.f32.mrb[0].mxu0
          %v1041 = vadd.f32 0.0, %v1040
          %v1042 = vpop.f32.mrb[0].mxu0
          %v1043 = vadd.f32 0.0, %v1042
          %v1044 = vpop.f32.mrb[0].mxu0
          %v1045 = vadd.f32 0.0, %v1044
          %1046 = vmatprep.mubr.bf16.mxu0 0
          %1047 = vmatmul.mubr.bf16.gmra.mrb[0].mxu0 %v939
          %v1048 = vpop.f32.mrb[0].mxu0
          %v1049 = vadd.f32 0.0, %v1048
          %v1050 = vpop.f32.mrb[0].mxu0
          %v1051 = vadd.f32 0.0, %v1050
          %v1052 = vpop.f32.mrb[0].mxu0
          %v1053 = vadd.f32 0.0, %v1052
          %v1054 = vpop.f32.mrb[0].mxu0
          %v1055 = vadd.f32 0.0, %v1054
          %1056 = vmatprep.mubr.bf16.mxu0 0
          %1057 = vmatmul.mubr.bf16.gmra.mrb[0].mxu0 %v942
          %v1058 = vpop.f32.mrb[0].mxu0
          %v1059 = vadd.f32 0.0, %v1058
          %v1060 = vpop.f32.mrb[0].mxu0
          %v1061 = vadd.f32 0.0, %v1060
          %v1062 = vpop.f32.mrb[0].mxu0
          %v1063 = vadd.f32 0.0, %v1062
          %v1064 = vpop.f32.mrb[0].mxu0
          %v1065 = vadd.f32 0.0, %v1064
          %1066 = vmatprep.mubr.bf16.mxu0 0
          %1067 = vmatmul.mubr.bf16.gmra.mrb[0].mxu0 %v945
          %v1068 = vpop.f32.mrb[0].mxu0
          %v1069 = vadd.f32 0.0, %v1068
          %v1070 = vpop.f32.mrb[0].mxu0
          %v1071 = vadd.f32 0.0, %v1070
          %v1072 = vpop.f32.mrb[0].mxu0
          %v1073 = vadd.f32 0.0, %v1072
          %v1074 = vpop.f32.mrb[0].mxu0
          %v1075 = vadd.f32 0.0, %v1074
          %1076 = vmatprep.mubr.bf16.mxu0 0
          %1077 = vmatmul.mubr.bf16.gmra.mrb[0].mxu0 %v948
          %v1078 = vpop.f32.mrb[0].mxu0
          %v1079 = vadd.f32 0.0, %v1078
          %v1080 = vpop.f32.mrb[0].mxu0
          %v1081 = vadd.f32 0.0, %v1080
          %v1082 = vpop.f32.mrb[0].mxu0
          %v1083 = vadd.f32 0.0, %v1082
          %v1084 = vpop.f32.mrb[0].mxu0
          %v1085 = vadd.f32 0.0, %v1084
          %1086 = vmatprep.mubr.bf16.mxu0 0
          %1087 = vmatmul.mubr.bf16.gmra.mrb[0].mxu0 %v951
          %v1088 = vpop.f32.mrb[0].mxu0
          %v1089 = vadd.f32 0.0, %v1088
          %v1090 = vpop.f32.mrb[0].mxu0
          %v1091 = vadd.f32 0.0, %v1090
          %v1092 = vpop.f32.mrb[0].mxu0
          %v1093 = vadd.f32 0.0, %v1092
          %v1094 = vpop.f32.mrb[0].mxu0
          %v1095 = vadd.f32 0.0, %v1094
          %1096 = vmatprep.mubr.bf16.mxu0 0
          %1097 = vmatmul.mubr.bf16.gmra.mrb[0].mxu0 %v954
          %v1098 = vpop.f32.mrb[0].mxu0
          %v1099 = vadd.f32 0.0, %v1098
          %v1100 = vpop.f32.mrb[0].mxu0
          %v1101 = vadd.f32 0.0, %v1100
          %v1102 = vpop.f32.mrb[0].mxu0
          %v1103 = vadd.f32 0.0, %v1102
          %v1104 = vpop.f32.mrb[0].mxu0
          %v1105 = vadd.f32 0.0, %v1104
          %1106 = vmatprep.mubr.bf16.mxu0 0
          %1107 = vmatmul.mubr.bf16.gmra.mrb[0].mxu0 %v957
          %v1108 = vpop.f32.mrb[0].mxu0
          %v1109 = vadd.f32 0.0, %v1108
          %v1110 = vpop.f32.mrb[0].mxu0
          %v1111 = vadd.f32 0.0, %v1110
          %v1112 = vpop.f32.mrb[0].mxu0
          %v1113 = vadd.f32 0.0, %v1112
          %v1114 = vpop.f32.mrb[0].mxu0
          %v1115 = vadd.f32 0.0, %v1114
          %1116 = vmatprep.mubr.bf16.mxu0 0
          %1117 = vmatmul.mubr.bf16.gmra.mrb[0].mxu0 %v960
          %v1118 = vpop.f32.mrb[0].mxu0
          %v1119 = vadd.f32 0.0, %v1118
          %v1120 = vpop.f32.mrb[0].mxu0
          %v1121 = vadd.f32 0.0, %v1120
          %v1122 = vpop.f32.mrb[0].mxu0
          %v1123 = vadd.f32 0.0, %v1122
          %v1124 = vpop.f32.mrb[0].mxu0
          %v1125 = vadd.f32 0.0, %v1124
          %1126 = vmatprep.mubr.bf16.mxu0 0
          %1127 = vmatmul.mubr.bf16.gmra.mrb[0].mxu0 %v963
          %v1128 = vpop.f32.mrb[0].mxu0
          %v1129 = vadd.f32 0.0, %v1128
          %v1130 = vpop.f32.mrb[0].mxu0
          %v1131 = vadd.f32 0.0, %v1130
          %v1132 = vpop.f32.mrb[0].mxu0
          %v1133 = vadd.f32 0.0, %v1132
          %v1134 = vpop.f32.mrb[0].mxu0
          %v1135 = vadd.f32 0.0, %v1134
          %1136 = vmatprep.mubr.bf16.mxu0 0
          %1137 = vmatmul.mubr.bf16.gmra.mrb[0].mxu0 %v966
          %v1138 = vpop.f32.mrb[0].mxu0
          %v1139 = vadd.f32 0.0, %v1138
          %v1140 = vpop.f32.mrb[0].mxu0
          %v1141 = vadd.f32 0.0, %v1140
          %v1142 = vpop.f32.mrb[0].mxu0
          %v1143 = vadd.f32 0.0, %v1142
          %v1144 = vpop.f32.mrb[0].mxu0
          %v1145 = vadd.f32 0.0, %v1144
          %1146 = vmatprep.mubr.bf16.mxu0 0
          %1147 = vmatmul.mubr.bf16.gmra.mrb[0].mxu0 %v969
          %v1148 = vpop.f32.mrb[0].mxu0
          %v1149 = vadd.f32 0.0, %v1148
          %v1150 = vpop.f32.mrb[0].mxu0
          %v1151 = vadd.f32 0.0, %v1150
          %v1152 = vpop.f32.mrb[0].mxu0
          %v1153 = vadd.f32 0.0, %v1152
          %v1154 = vpop.f32.mrb[0].mxu0
          %v1155 = vadd.f32 0.0, %v1154
          %1156 = vmatprep.mubr.bf16.mxu0 0
          %1157 = vmatmul.mubr.bf16.gmra.mrb[0].mxu0 %v972
          %v1158 = vpop.f32.mrb[0].mxu0
          %v1159 = vadd.f32 0.0, %v1158
          %v1160 = vpop.f32.mrb[0].mxu0
          %v1161 = vadd.f32 0.0, %v1160
          %v1162 = vpop.f32.mrb[0].mxu0
          %v1163 = vadd.f32 0.0, %v1162
          %v1164 = vpop.f32.mrb[0].mxu0
          %v1165 = vadd.f32 0.0, %v1164
          %1166 = vdwg.mxu0
          %v1167 = vpack.c.bf16 %v587, %v583
          %v1168 = vpack.c.bf16 %v589, %v585
          %v1169 = vpack.c.bf16 %v597, %v593
          %v1170 = vpack.c.bf16 %v599, %v595
          %v1171 = vpack.c.bf16 %v607, %v603
          %v1172 = vpack.c.bf16 %v609, %v605
          %v1173 = vpack.c.bf16 %v617, %v613
          %v1174 = vpack.c.bf16 %v619, %v615
          %v1175 = vpack.c.bf16 %v627, %v623
          %v1176 = vpack.c.bf16 %v629, %v625
          %v1177 = vpack.c.bf16 %v637, %v633
          %v1178 = vpack.c.bf16 %v639, %v635
          %v1179 = vpack.c.bf16 %v647, %v643
          %v1180 = vpack.c.bf16 %v649, %v645
          %v1181 = vpack.c.bf16 %v657, %v653
          %v1182 = vpack.c.bf16 %v659, %v655
          %v1183 = vpack.c.bf16 %v667, %v663
          %v1184 = vpack.c.bf16 %v669, %v665
          %v1185 = vpack.c.bf16 %v677, %v673
          %v1186 = vpack.c.bf16 %v679, %v675
          %v1187 = vpack.c.bf16 %v687, %v683
          %v1188 = vpack.c.bf16 %v689, %v685
          %v1189 = vpack.c.bf16 %v697, %v693
          %v1190 = vpack.c.bf16 %v699, %v695
          %v1191 = vpack.c.bf16 %v707, %v703
          %v1192 = vpack.c.bf16 %v709, %v705
          %v1193 = vpack.c.bf16 %v717, %v713
          %v1194 = vpack.c.bf16 %v719, %v715
          %v1195 = vpack.c.bf16 %v727, %v723
          %v1196 = vpack.c.bf16 %v729, %v725
          %v1197 = vpack.c.bf16 %v737, %v733
          %v1198 = vpack.c.bf16 %v739, %v735
          %1199 = vst [vmem:[#allocation2] sm:$0xff] %v1167
          %1200 = vst [vmem:[#allocation2 + $0x8] sm:$0xff] %v1168
          %1201 = vst [vmem:[#allocation2 + $0x10] sm:$0xff] %v1169
          %1202 = vst [vmem:[#allocation2 + $0x18] sm:$0xff] %v1170
          %1203 = vst [vmem:[#allocation2 + $0x20] sm:$0xff] %v1171
          %1204 = vst [vmem:[#allocation2 + $0x28] sm:$0xff] %v1172
          %1205 = vst [vmem:[#allocation2 + $0x30] sm:$0xff] %v1173
          %1206 = vst [vmem:[#allocation2 + $0x38] sm:$0xff] %v1174
          %1207 = vst [vmem:[#allocation2 + $0x40] sm:$0xff] %v1175
          %1208 = vst [vmem:[#allocation2 + $0x48] sm:$0xff] %v1176
          %1209 = vst [vmem:[#allocation2 + $0x50] sm:$0xff] %v1177
          %1210 = vst [vmem:[#allocation2 + $0x58] sm:$0xff] %v1178
          %1211 = vst [vmem:[#allocation2 + $0x60] sm:$0xff] %v1179
          %1212 = vst [vmem:[#allocation2 + $0x68] sm:$0xff] %v1180
          %1213 = vst [vmem:[#allocation2 + $0x70] sm:$0xff] %v1181
          %1214 = vst [vmem:[#allocation2 + $0x78] sm:$0xff] %v1182
          %1215 = vst [vmem:[#allocation2 + $0x80] sm:$0xff] %v1183
          %1216 = vst [vmem:[#allocation2 + $0x88] sm:$0xff] %v1184
          %1217 = vst [vmem:[#allocation2 + $0x90] sm:$0xff] %v1185
          %1218 = vst [vmem:[#allocation2 + $0x98] sm:$0xff] %v1186
          %1219 = vst [vmem:[#allocation2 + $0xa0] sm:$0xff] %v1187
          %1220 = vst [vmem:[#allocation2 + $0xa8] sm:$0xff] %v1188
          %1221 = vst [vmem:[#allocation2 + $0xb0] sm:$0xff] %v1189
          %1222 = vst [vmem:[#allocation2 + $0xb8] sm:$0xff] %v1190
          %1223 = vst [vmem:[#allocation2 + $0xc0] sm:$0xff] %v1191
          %1224 = vst [vmem:[#allocation2 + $0xc8] sm:$0xff] %v1192
          %1225 = vst [vmem:[#allocation2 + $0xd0] sm:$0xff] %v1193
          %1226 = vst [vmem:[#allocation2 + $0xd8] sm:$0xff] %v1194
          %1227 = vst [vmem:[#allocation2 + $0xe0] sm:$0xff] %v1195
          %1228 = vst [vmem:[#allocation2 + $0xe8] sm:$0xff] %v1196
          %1229 = vst [vmem:[#allocation2 + $0xf0] sm:$0xff] %v1197
          %1230 = vst [vmem:[#allocation2 + $0xf8] sm:$0xff] %v1198
          %v1231 = vpack.c.bf16 %v1013, %v1009
          %v1232 = vpack.c.bf16 %v1015, %v1011
          %v1233 = vpack.c.bf16 %v1023, %v1019
          %v1234 = vpack.c.bf16 %v1025, %v1021
          %v1235 = vpack.c.bf16 %v1033, %v1029
          %v1236 = vpack.c.bf16 %v1035, %v1031
          %v1237 = vpack.c.bf16 %v1043, %v1039
          %v1238 = vpack.c.bf16 %v1045, %v1041
          %v1239 = vpack.c.bf16 %v1053, %v1049
          %v1240 = vpack.c.bf16 %v1055, %v1051
          %v1241 = vpack.c.bf16 %v1063, %v1059
          %v1242 = vpack.c.bf16 %v1065, %v1061
          %v1243 = vpack.c.bf16 %v1073, %v1069
          %v1244 = vpack.c.bf16 %v1075, %v1071
          %v1245 = vpack.c.bf16 %v1083, %v1079
          %v1246 = vpack.c.bf16 %v1085, %v1081
          %v1247 = vpack.c.bf16 %v1093, %v1089
          %v1248 = vpack.c.bf16 %v1095, %v1091
          %v1249 = vpack.c.bf16 %v1103, %v1099
          %v1250 = vpack.c.bf16 %v1105, %v1101
          %v1251 = vpack.c.bf16 %v1113, %v1109
          %v1252 = vpack.c.bf16 %v1115, %v1111
          %v1253 = vpack.c.bf16 %v1123, %v1119
          %v1254 = vpack.c.bf16 %v1125, %v1121
          %v1255 = vpack.c.bf16 %v1133, %v1129
          %v1256 = vpack.c.bf16 %v1135, %v1131
          %v1257 = vpack.c.bf16 %v1143, %v1139
          %v1258 = vpack.c.bf16 %v1145, %v1141
          %v1259 = vpack.c.bf16 %v1153, %v1149
          %v1260 = vpack.c.bf16 %v1155, %v1151
          %v1261 = vpack.c.bf16 %v1163, %v1159
          %v1262 = vpack.c.bf16 %v1165, %v1161
          %1263 = vst [vmem:[#allocation2 + $0x100] sm:$0xff] %v1231
          %1264 = vst [vmem:[#allocation2 + $0x108] sm:$0xff] %v1232
          %1265 = vst [vmem:[#allocation2 + $0x110] sm:$0xff] %v1233
          %1266 = vst [vmem:[#allocation2 + $0x118] sm:$0xff] %v1234
          %1267 = vst [vmem:[#allocation2 + $0x120] sm:$0xff] %v1235
          %1268 = vst [vmem:[#allocation2 + $0x128] sm:$0xff] %v1236
          %1269 = vst [vmem:[#allocation2 + $0x130] sm:$0xff] %v1237
          %1270 = vst [vmem:[#allocation2 + $0x138] sm:$0xff] %v1238
          %1271 = vst [vmem:[#allocation2 + $0x140] sm:$0xff] %v1239
          %1272 = vst [vmem:[#allocation2 + $0x148] sm:$0xff] %v1240
          %1273 = vst [vmem:[#allocation2 + $0x150] sm:$0xff] %v1241
          %1274 = vst [vmem:[#allocation2 + $0x158] sm:$0xff] %v1242
          %1275 = vst [vmem:[#allocation2 + $0x160] sm:$0xff] %v1243
          %1276 = vst [vmem:[#allocation2 + $0x168] sm:$0xff] %v1244
          %1277 = vst [vmem:[#allocation2 + $0x170] sm:$0xff] %v1245
          %1278 = vst [vmem:[#allocation2 + $0x178] sm:$0xff] %v1246
          %1279 = vst [vmem:[#allocation2 + $0x180] sm:$0xff] %v1247
          %1280 = vst [vmem:[#allocation2 + $0x188] sm:$0xff] %v1248
          %1281 = vst [vmem:[#allocation2 + $0x190] sm:$0xff] %v1249
          %1282 = vst [vmem:[#allocation2 + $0x198] sm:$0xff] %v1250
          %1283 = vst [vmem:[#allocation2 + $0x1a0] sm:$0xff] %v1251
          %1284 = vst [vmem:[#allocation2 + $0x1a8] sm:$0xff] %v1252
          %1285 = vst [vmem:[#allocation2 + $0x1b0] sm:$0xff] %v1253
          %1286 = vst [vmem:[#allocation2 + $0x1b8] sm:$0xff] %v1254
          %1287 = vst [vmem:[#allocation2 + $0x1c0] sm:$0xff] %v1255
          %1288 = vst [vmem:[#allocation2 + $0x1c8] sm:$0xff] %v1256
          %1289 = vst [vmem:[#allocation2 + $0x1d0] sm:$0xff] %v1257
          %1290 = vst [vmem:[#allocation2 + $0x1d8] sm:$0xff] %v1258
          %1291 = vst [vmem:[#allocation2 + $0x1e0] sm:$0xff] %v1259
          %1292 = vst [vmem:[#allocation2 + $0x1e8] sm:$0xff] %v1260
          %1293 = vst [vmem:[#allocation2 + $0x1f0] sm:$0xff] %v1261
          %1294 = vst [vmem:[#allocation2 + $0x1f8] sm:$0xff] %v1262
          %v1295 = vadd.f32 %v583, %v585
          %1296 = vadd.xlane.f32.xlu0 %v1295
          %v1297 = vpop.xlane.xlu0 %1296
          %v1298 = vadd.f32 %v587, %v589
          %1299 = vadd.xlane.f32.xlu0 %v1298
          %v1300 = vpop.xlane.xlu0 %1299
          %v1301 = vadd.f32 %v593, %v595
          %1302 = vadd.xlane.f32.xlu0 %v1301
          %v1303 = vpop.xlane.xlu0 %1302
          %v1304 = vadd.f32 %v597, %v599
          %1305 = vadd.xlane.f32.xlu0 %v1304
          %v1306 = vpop.xlane.xlu0 %1305
          %v1307 = vadd.f32 %v603, %v605
          %1308 = vadd.xlane.f32.xlu0 %v1307
          %v1309 = vpop.xlane.xlu0 %1308
          %v1310 = vadd.f32 %v607, %v609
          %1311 = vadd.xlane.f32.xlu0 %v1310
          %v1312 = vpop.xlane.xlu0 %1311
          %v1313 = vadd.f32 %v613, %v615
          %1314 = vadd.xlane.f32.xlu0 %v1313
          %v1315 = vpop.xlane.xlu0 %1314
          %v1316 = vadd.f32 %v617, %v619
          %1317 = vadd.xlane.f32.xlu0 %v1316
          %v1318 = vpop.xlane.xlu0 %1317
          %v1319 = vadd.f32 %v623, %v625
          %1320 = vadd.xlane.f32.xlu0 %v1319
          %v1321 = vpop.xlane.xlu0 %1320
          %v1322 = vadd.f32 %v627, %v629
          %1323 = vadd.xlane.f32.xlu0 %v1322
          %v1324 = vpop.xlane.xlu0 %1323
          %v1325 = vadd.f32 %v633, %v635
          %1326 = vadd.xlane.f32.xlu0 %v1325
          %v1327 = vpop.xlane.xlu0 %1326
          %v1328 = vadd.f32 %v637, %v639
          %1329 = vadd.xlane.f32.xlu0 %v1328
          %v1330 = vpop.xlane.xlu0 %1329
          %v1331 = vadd.f32 %v643, %v645
          %1332 = vadd.xlane.f32.xlu0 %v1331
          %v1333 = vpop.xlane.xlu0 %1332
          %v1334 = vadd.f32 %v647, %v649
          %1335 = vadd.xlane.f32.xlu0 %v1334
          %v1336 = vpop.xlane.xlu0 %1335
          %v1337 = vadd.f32 %v653, %v655
          %1338 = vadd.xlane.f32.xlu0 %v1337
          %v1339 = vpop.xlane.xlu0 %1338
          %v1340 = vadd.f32 %v657, %v659
          %1341 = vadd.xlane.f32.xlu0 %v1340
          %v1342 = vpop.xlane.xlu0 %1341
          %v1343 = vadd.f32 %v663, %v665
          %1344 = vadd.xlane.f32.xlu0 %v1343
          %v1345 = vpop.xlane.xlu0 %1344
          %v1346 = vadd.f32 %v667, %v669
          %1347 = vadd.xlane.f32.xlu0 %v1346
          %v1348 = vpop.xlane.xlu0 %1347
          %v1349 = vadd.f32 %v673, %v675
          %1350 = vadd.xlane.f32.xlu0 %v1349
          %v1351 = vpop.xlane.xlu0 %1350
          %v1352 = vadd.f32 %v677, %v679
          %1353 = vadd.xlane.f32.xlu0 %v1352
          %v1354 = vpop.xlane.xlu0 %1353
          %v1355 = vadd.f32 %v683, %v685
          %1356 = vadd.xlane.f32.xlu0 %v1355
          %v1357 = vpop.xlane.xlu0 %1356
          %v1358 = vadd.f32 %v687, %v689
          %1359 = vadd.xlane.f32.xlu0 %v1358
          %v1360 = vpop.xlane.xlu0 %1359
          %v1361 = vadd.f32 %v693, %v695
          %1362 = vadd.xlane.f32.xlu0 %v1361
          %v1363 = vpop.xlane.xlu0 %1362
          %v1364 = vadd.f32 %v697, %v699
          %1365 = vadd.xlane.f32.xlu0 %v1364
          %v1366 = vpop.xlane.xlu0 %1365
          %v1367 = vadd.f32 %v703, %v705
          %1368 = vadd.xlane.f32.xlu0 %v1367
          %v1369 = vpop.xlane.xlu0 %1368
          %v1370 = vadd.f32 %v707, %v709
          %1371 = vadd.xlane.f32.xlu0 %v1370
          %v1372 = vpop.xlane.xlu0 %1371
          %v1373 = vadd.f32 %v713, %v715
          %1374 = vadd.xlane.f32.xlu0 %v1373
          %v1375 = vpop.xlane.xlu0 %1374
          %v1376 = vadd.f32 %v717, %v719
          %1377 = vadd.xlane.f32.xlu0 %v1376
          %v1378 = vpop.xlane.xlu0 %1377
          %v1379 = vadd.f32 %v723, %v725
          %1380 = vadd.xlane.f32.xlu0 %v1379
          %v1381 = vpop.xlane.xlu0 %1380
          %v1382 = vadd.f32 %v727, %v729
          %1383 = vadd.xlane.f32.xlu0 %v1382
          %v1384 = vpop.xlane.xlu0 %1383
          %v1385 = vadd.f32 %v733, %v735
          %1386 = vadd.xlane.f32.xlu0 %v1385
          %v1387 = vpop.xlane.xlu0 %1386
          %v1388 = vadd.f32 %v737, %v739
          %1389 = vadd.xlane.f32.xlu0 %v1388
          %v1390 = vpop.xlane.xlu0 %1389
          %v1391 = vadd.f32 %v1009, %v1011
          %1392 = vadd.xlane.f32.xlu0 %v1391
          %v1393 = vpop.xlane.xlu0 %1392
          %v1394 = vadd.f32 %v1013, %v1015
          %1395 = vadd.xlane.f32.xlu0 %v1394
          %v1396 = vpop.xlane.xlu0 %1395
          %v1397 = vadd.f32 %v1019, %v1021
          %1398 = vadd.xlane.f32.xlu0 %v1397
          %v1399 = vpop.xlane.xlu0 %1398
          %v1400 = vadd.f32 %v1023, %v1025
          %1401 = vadd.xlane.f32.xlu0 %v1400
          %v1402 = vpop.xlane.xlu0 %1401
          %v1403 = vadd.f32 %v1029, %v1031
          %1404 = vadd.xlane.f32.xlu0 %v1403
          %v1405 = vpop.xlane.xlu0 %1404
          %v1406 = vadd.f32 %v1033, %v1035
          %1407 = vadd.xlane.f32.xlu0 %v1406
          %v1408 = vpop.xlane.xlu0 %1407
          %v1409 = vadd.f32 %v1039, %v1041
          %1410 = vadd.xlane.f32.xlu0 %v1409
          %v1411 = vpop.xlane.xlu0 %1410
          %v1412 = vadd.f32 %v1043, %v1045
          %1413 = vadd.xlane.f32.xlu0 %v1412
          %v1414 = vpop.xlane.xlu0 %1413
          %v1415 = vadd.f32 %v1049, %v1051
          %1416 = vadd.xlane.f32.xlu0 %v1415
          %v1417 = vpop.xlane.xlu0 %1416
          %v1418 = vadd.f32 %v1053, %v1055
          %1419 = vadd.xlane.f32.xlu0 %v1418
          %v1420 = vpop.xlane.xlu0 %1419
          %v1421 = vadd.f32 %v1059, %v1061
          %1422 = vadd.xlane.f32.xlu0 %v1421
          %v1423 = vpop.xlane.xlu0 %1422
          %v1424 = vadd.f32 %v1063, %v1065
          %1425 = vadd.xlane.f32.xlu0 %v1424
          %v1426 = vpop.xlane.xlu0 %1425
          %v1427 = vadd.f32 %v1069, %v1071
          %1428 = vadd.xlane.f32.xlu0 %v1427
          %v1429 = vpop.xlane.xlu0 %1428
          %v1430 = vadd.f32 %v1073, %v1075
          %1431 = vadd.xlane.f32.xlu0 %v1430
          %v1432 = vpop.xlane.xlu0 %1431
          %v1433 = vadd.f32 %v1079, %v1081
          %1434 = vadd.xlane.f32.xlu0 %v1433
          %v1435 = vpop.xlane.xlu0 %1434
          %v1436 = vadd.f32 %v1083, %v1085
          %1437 = vadd.xlane.f32.xlu0 %v1436
          %v1438 = vpop.xlane.xlu0 %1437
          %v1439 = vadd.f32 %v1089, %v1091
          %1440 = vadd.xlane.f32.xlu0 %v1439
          %v1441 = vpop.xlane.xlu0 %1440
          %v1442 = vadd.f32 %v1093, %v1095
          %1443 = vadd.xlane.f32.xlu0 %v1442
          %v1444 = vpop.xlane.xlu0 %1443
          %v1445 = vadd.f32 %v1099, %v1101
          %1446 = vadd.xlane.f32.xlu0 %v1445
          %v1447 = vpop.xlane.xlu0 %1446
          %v1448 = vadd.f32 %v1103, %v1105
          %1449 = vadd.xlane.f32.xlu0 %v1448
          %v1450 = vpop.xlane.xlu0 %1449
          %v1451 = vadd.f32 %v1109, %v1111
          %1452 = vadd.xlane.f32.xlu0 %v1451
          %v1453 = vpop.xlane.xlu0 %1452
          %v1454 = vadd.f32 %v1113, %v1115
          %1455 = vadd.xlane.f32.xlu0 %v1454
          %v1456 = vpop.xlane.xlu0 %1455
          %v1457 = vadd.f32 %v1119, %v1121
          %1458 = vadd.xlane.f32.xlu0 %v1457
          %v1459 = vpop.xlane.xlu0 %1458
          %v1460 = vadd.f32 %v1123, %v1125
          %1461 = vadd.xlane.f32.xlu0 %v1460
          %v1462 = vpop.xlane.xlu0 %1461
          %v1463 = vadd.f32 %v1129, %v1131
          %1464 = vadd.xlane.f32.xlu0 %v1463
          %v1465 = vpop.xlane.xlu0 %1464
          %v1466 = vadd.f32 %v1133, %v1135
          %1467 = vadd.xlane.f32.xlu0 %v1466
          %v1468 = vpop.xlane.xlu0 %1467
          %v1469 = vadd.f32 %v1139, %v1141
          %1470 = vadd.xlane.f32.xlu0 %v1469
          %v1471 = vpop.xlane.xlu0 %1470
          %v1472 = vadd.f32 %v1143, %v1145
          %1473 = vadd.xlane.f32.xlu0 %v1472
          %v1474 = vpop.xlane.xlu0 %1473
          %v1475 = vadd.f32 %v1149, %v1151
          %1476 = vadd.xlane.f32.xlu0 %v1475
          %v1477 = vpop.xlane.xlu0 %1476
          %v1478 = vadd.f32 %v1153, %v1155
          %1479 = vadd.xlane.f32.xlu0 %v1478
          %v1480 = vpop.xlane.xlu0 %1479
          %v1481 = vadd.f32 %v1159, %v1161
          %1482 = vadd.xlane.f32.xlu0 %v1481
          %v1483 = vpop.xlane.xlu0 %1482
          %v1484 = vadd.f32 %v1163, %v1165
          %1485 = vadd.xlane.f32.xlu0 %v1484
          %v1486 = vpop.xlane.xlu0 %1485
          %v1487 = vmul.f32 %v1297, %v1393
          %v1488 = vmul.f32 %v1300, %v1396
          %v1489 = vmul.f32 %v1303, %v1399
          %v1490 = vmul.f32 %v1306, %v1402
          %v1491 = vmul.f32 %v1309, %v1405
          %v1492 = vmul.f32 %v1312, %v1408
          %v1493 = vmul.f32 %v1315, %v1411
          %v1494 = vmul.f32 %v1318, %v1414
          %v1495 = vmul.f32 %v1321, %v1417
          %v1496 = vmul.f32 %v1324, %v1420
          %v1497 = vmul.f32 %v1327, %v1423
          %v1498 = vmul.f32 %v1330, %v1426
          %v1499 = vmul.f32 %v1333, %v1429
          %v1500 = vmul.f32 %v1336, %v1432
          %v1501 = vmul.f32 %v1339, %v1435
          %v1502 = vmul.f32 %v1342, %v1438
          %v1503 = vmul.f32 %v1345, %v1441
          %v1504 = vmul.f32 %v1348, %v1444
          %v1505 = vmul.f32 %v1351, %v1447
          %v1506 = vmul.f32 %v1354, %v1450
          %v1507 = vmul.f32 %v1357, %v1453
          %v1508 = vmul.f32 %v1360, %v1456
          %v1509 = vmul.f32 %v1363, %v1459
          %v1510 = vmul.f32 %v1366, %v1462
          %v1511 = vmul.f32 %v1369, %v1465
          %v1512 = vmul.f32 %v1372, %v1468
          %v1513 = vmul.f32 %v1375, %v1471
          %v1514 = vmul.f32 %v1378, %v1474
          %v1515 = vmul.f32 %v1381, %v1477
          %v1516 = vmul.f32 %v1384, %v1480
          %v1517 = vmul.f32 %v1387, %v1483
          %v1518 = vmul.f32 %v1390, %v1486
          %v1519 = vmul.f32 %v1487, 0.00390625
          %v1520 = vmul.f32 %v1488, 0.00390625
          %v1521 = vmul.f32 %v1489, 0.00390625
          %v1522 = vmul.f32 %v1490, 0.00390625
          %v1523 = vmul.f32 %v1491, 0.00390625
          %v1524 = vmul.f32 %v1492, 0.00390625
          %v1525 = vmul.f32 %v1493, 0.00390625
          %v1526 = vmul.f32 %v1494, 0.00390625
          %v1527 = vmul.f32 %v1495, 0.00390625
          %v1528 = vmul.f32 %v1496, 0.00390625
          %v1529 = vmul.f32 %v1497, 0.00390625
          %v1530 = vmul.f32 %v1498, 0.00390625
          %v1531 = vmul.f32 %v1499, 0.00390625
          %v1532 = vmul.f32 %v1500, 0.00390625
          %v1533 = vmul.f32 %v1501, 0.00390625
          %v1534 = vmul.f32 %v1502, 0.00390625
          %v1535 = vmul.f32 %v1503, 0.00390625
          %v1536 = vmul.f32 %v1504, 0.00390625
          %v1537 = vmul.f32 %v1505, 0.00390625
          %v1538 = vmul.f32 %v1506, 0.00390625
          %v1539 = vmul.f32 %v1507, 0.00390625
          %v1540 = vmul.f32 %v1508, 0.00390625
          %v1541 = vmul.f32 %v1509, 0.00390625
          %v1542 = vmul.f32 %v1510, 0.00390625
          %v1543 = vmul.f32 %v1511, 0.00390625
          %v1544 = vmul.f32 %v1512, 0.00390625
          %v1545 = vmul.f32 %v1513, 0.00390625
          %v1546 = vmul.f32 %v1514, 0.00390625
          %v1547 = vmul.f32 %v1515, 0.00390625
          %v1548 = vmul.f32 %v1516, 0.00390625
          %v1549 = vmul.f32 %v1517, 0.00390625
          %v1550 = vmul.f32 %v1518, 0.00390625
          %v1551 = vlaneseq
          %v1552 = vand.u32 %v1551, 127
          %v1553 = vadd.s32 %v1552, 128
          %vm1554 = vcmp.lt.s32.totalorder %v1552, 0
          %v1555 = vsub.s32 0, %v1552
          %v1556 = vsel %vm1554, %v1555, %v1552
          %v1557 = vshrl.u32 %v1556, 1
          %v1558 = vand.u32 %v1556, 1
          %v1559 = vsub.s32 0, %v1558
          %v1560 = vsel %vm1554, %v1559, %v1558
          %vm1561 = vcmp.lt.s32.totalorder %v1553, 0
          %v1562 = vsub.s32 0, %v1553
          %v1563 = vsel %vm1561, %v1562, %v1553
          %v1564 = vshrl.u32 %v1563, 1
          %v1565 = vand.u32 %v1563, 1
          %v1566 = vsub.s32 0, %v1565
          %v1567 = vsel %vm1561, %v1566, %v1565
          %vm1568 = vcmp.ne.s32.totalorder %v1560, 0
          %vm1569 = vcmp.ne.s32.totalorder %v1567, 0
          %vm1570 = vcmp.lt.s32.totalorder %v1560, 0
          %vm1571 = vcmp.lt.s32.totalorder %v1567, 0
          %vm1572 = vmand %vm1570, %vm1568
          %vm1573 = vmand %vm1571, %vm1569
          %v1574 = vadd.s32 %v1560, 2
          %v1575 = vadd.s32 %v1567, 2
          %v1576 = vsel %vm1572, %v1574, %v1560
          %v1577 = vsel %vm1573, %v1575, %v1567
          %v1578 = vcvt.s32.f32 %v1576
          %v1579 = vcvt.s32.f32 %v1577
          %v1580 = vmul.f32 %v1578, 2.0
          %v1581 = vmul.f32 %v1579, 2.0
          %v1582 = vsub.f32 1.0, %v1580
          %v1583 = vsub.f32 1.0, %v1581
          %v1584 = vmul.f32 %v583, %v1582
          %v1585 = vmul.f32 %v585, %v1583
          %v1586 = vmul.f32 %v587, %v1582
          %v1587 = vmul.f32 %v589, %v1583
          %v1588 = vmul.f32 %v593, %v1582
          %v1589 = vmul.f32 %v595, %v1583
          %v1590 = vmul.f32 %v597, %v1582
          %v1591 = vmul.f32 %v599, %v1583
          %v1592 = vmul.f32 %v603, %v1582
          %v1593 = vmul.f32 %v605, %v1583
          %v1594 = vmul.f32 %v607, %v1582
          %v1595 = vmul.f32 %v609, %v1583
          %v1596 = vmul.f32 %v613, %v1582
          %v1597 = vmul.f32 %v615, %v1583
          %v1598 = vmul.f32 %v617, %v1582
          %v1599 = vmul.f32 %v619, %v1583
          %v1600 = vmul.f32 %v623, %v1582
          %v1601 = vmul.f32 %v625, %v1583
          %v1602 = vmul.f32 %v627, %v1582
          %v1603 = vmul.f32 %v629, %v1583
          %v1604 = vmul.f32 %v633, %v1582
          %v1605 = vmul.f32 %v635, %v1583
          %v1606 = vmul.f32 %v637, %v1582
          %v1607 = vmul.f32 %v639, %v1583
          %v1608 = vmul.f32 %v643, %v1582
          %v1609 = vmul.f32 %v645, %v1583
          %v1610 = vmul.f32 %v647, %v1582
          %v1611 = vmul.f32 %v649, %v1583
          %v1612 = vmul.f32 %v653, %v1582
          %v1613 = vmul.f32 %v655, %v1583
          %v1614 = vmul.f32 %v657, %v1582
          %v1615 = vmul.f32 %v659, %v1583
          %v1616 = vmul.f32 %v663, %v1582
          %v1617 = vmul.f32 %v665, %v1583
          %v1618 = vmul.f32 %v667, %v1582
          %v1619 = vmul.f32 %v669, %v1583
          %v1620 = vmul.f32 %v673, %v1582
          %v1621 = vmul.f32 %v675, %v1583
          %v1622 = vmul.f32 %v677, %v1582
          %v1623 = vmul.f32 %v679, %v1583
          %v1624 = vmul.f32 %v683, %v1582
          %v1625 = vmul.f32 %v685, %v1583
          %v1626 = vmul.f32 %v687, %v1582
          %v1627 = vmul.f32 %v689, %v1583
          %v1628 = vmul.f32 %v693, %v1582
          %v1629 = vmul.f32 %v695, %v1583
          %v1630 = vmul.f32 %v697, %v1582
          %v1631 = vmul.f32 %v699, %v1583
          %v1632 = vmul.f32 %v703, %v1582
          %v1633 = vmul.f32 %v705, %v1583
          %v1634 = vmul.f32 %v707, %v1582
          %v1635 = vmul.f32 %v709, %v1583
          %v1636 = vmul.f32 %v713, %v1582
          %v1637 = vmul.f32 %v715, %v1583
          %v1638 = vmul.f32 %v717, %v1582
          %v1639 = vmul.f32 %v719, %v1583
          %v1640 = vmul.f32 %v723, %v1582
          %v1641 = vmul.f32 %v725, %v1583
          %v1642 = vmul.f32 %v727, %v1582
          %v1643 = vmul.f32 %v729, %v1583
          %v1644 = vmul.f32 %v733, %v1582
          %v1645 = vmul.f32 %v735, %v1583
          %v1646 = vmul.f32 %v737, %v1582
          %v1647 = vmul.f32 %v739, %v1583
          %v1648 = vadd.f32 %v1584, %v1585
          %1649 = vadd.xlane.f32.xlu0 %v1648
          %v1650 = vpop.xlane.xlu0 %1649
          %v1651 = vadd.f32 %v1586, %v1587
          %1652 = vadd.xlane.f32.xlu0 %v1651
          %v1653 = vpop.xlane.xlu0 %1652
          %v1654 = vadd.f32 %v1588, %v1589
          %1655 = vadd.xlane.f32.xlu0 %v1654
          %v1656 = vpop.xlane.xlu0 %1655
          %v1657 = vadd.f32 %v1590, %v1591
          %1658 = vadd.xlane.f32.xlu0 %v1657
          %v1659 = vpop.xlane.xlu0 %1658
          %v1660 = vadd.f32 %v1592, %v1593
          %1661 = vadd.xlane.f32.xlu0 %v1660
          %v1662 = vpop.xlane.xlu0 %1661
          %v1663 = vadd.f32 %v1594, %v1595
          %1664 = vadd.xlane.f32.xlu0 %v1663
          %v1665 = vpop.xlane.xlu0 %1664
          %v1666 = vadd.f32 %v1596, %v1597
          %1667 = vadd.xlane.f32.xlu0 %v1666
          %v1668 = vpop.xlane.xlu0 %1667
          %v1669 = vadd.f32 %v1598, %v1599
          %1670 = vadd.xlane.f32.xlu0 %v1669
          %v1671 = vpop.xlane.xlu0 %1670
          %v1672 = vadd.f32 %v1600, %v1601
          %1673 = vadd.xlane.f32.xlu0 %v1672
          %v1674 = vpop.xlane.xlu0 %1673
          %v1675 = vadd.f32 %v1602, %v1603
          %1676 = vadd.xlane.f32.xlu0 %v1675
          %v1677 = vpop.xlane.xlu0 %1676
          %v1678 = vadd.f32 %v1604, %v1605
          %1679 = vadd.xlane.f32.xlu0 %v1678
          %v1680 = vpop.xlane.xlu0 %1679
          %v1681 = vadd.f32 %v1606, %v1607
          %1682 = vadd.xlane.f32.xlu0 %v1681
          %v1683 = vpop.xlane.xlu0 %1682
          %v1684 = vadd.f32 %v1608, %v1609
          %1685 = vadd.xlane.f32.xlu0 %v1684
          %v1686 = vpop.xlane.xlu0 %1685
          %v1687 = vadd.f32 %v1610, %v1611
          %1688 = vadd.xlane.f32.xlu0 %v1687
          %v1689 = vpop.xlane.xlu0 %1688
          %v1690 = vadd.f32 %v1612, %v1613
          %1691 = vadd.xlane.f32.xlu0 %v1690
          %v1692 = vpop.xlane.xlu0 %1691
          %v1693 = vadd.f32 %v1614, %v1615
          %1694 = vadd.xlane.f32.xlu0 %v1693
          %v1695 = vpop.xlane.xlu0 %1694
          %v1696 = vadd.f32 %v1616, %v1617
          %1697 = vadd.xlane.f32.xlu0 %v1696
          %v1698 = vpop.xlane.xlu0 %1697
          %v1699 = vadd.f32 %v1618, %v1619
          %1700 = vadd.xlane.f32.xlu0 %v1699
          %v1701 = vpop.xlane.xlu0 %1700
          %v1702 = vadd.f32 %v1620, %v1621
          %1703 = vadd.xlane.f32.xlu0 %v1702
          %v1704 = vpop.xlane.xlu0 %1703
          %v1705 = vadd.f32 %v1622, %v1623
          %1706 = vadd.xlane.f32.xlu0 %v1705
          %v1707 = vpop.xlane.xlu0 %1706
          %v1708 = vadd.f32 %v1624, %v1625
          %1709 = vadd.xlane.f32.xlu0 %v1708
          %v1710 = vpop.xlane.xlu0 %1709
          %v1711 = vadd.f32 %v1626, %v1627
          %1712 = vadd.xlane.f32.xlu0 %v1711
          %v1713 = vpop.xlane.xlu0 %1712
          %v1714 = vadd.f32 %v1628, %v1629
          %1715 = vadd.xlane.f32.xlu0 %v1714
          %v1716 = vpop.xlane.xlu0 %1715
          %v1717 = vadd.f32 %v1630, %v1631
          %1718 = vadd.xlane.f32.xlu0 %v1717
          %v1719 = vpop.xlane.xlu0 %1718
          %v1720 = vadd.f32 %v1632, %v1633
          %1721 = vadd.xlane.f32.xlu0 %v1720
          %v1722 = vpop.xlane.xlu0 %1721
          %v1723 = vadd.f32 %v1634, %v1635
          %1724 = vadd.xlane.f32.xlu0 %v1723
          %v1725 = vpop.xlane.xlu0 %1724
          %v1726 = vadd.f32 %v1636, %v1637
          %1727 = vadd.xlane.f32.xlu0 %v1726
          %v1728 = vpop.xlane.xlu0 %1727
          %v1729 = vadd.f32 %v1638, %v1639
          %1730 = vadd.xlane.f32.xlu0 %v1729
          %v1731 = vpop.xlane.xlu0 %1730
          %v1732 = vadd.f32 %v1640, %v1641
          %1733 = vadd.xlane.f32.xlu0 %v1732
          %v1734 = vpop.xlane.xlu0 %1733
          %v1735 = vadd.f32 %v1642, %v1643
          %1736 = vadd.xlane.f32.xlu0 %v1735
          %v1737 = vpop.xlane.xlu0 %1736
          %v1738 = vadd.f32 %v1644, %v1645
          %1739 = vadd.xlane.f32.xlu0 %v1738
          %v1740 = vpop.xlane.xlu0 %1739
          %v1741 = vadd.f32 %v1646, %v1647
          %1742 = vadd.xlane.f32.xlu0 %v1741
          %v1743 = vpop.xlane.xlu0 %1742
          %v1744 = vmul.f32 %v1009, %v1582
          %v1745 = vmul.f32 %v1011, %v1583
          %v1746 = vmul.f32 %v1013, %v1582
          %v1747 = vmul.f32 %v1015, %v1583
          %v1748 = vmul.f32 %v1019, %v1582
          %v1749 = vmul.f32 %v1021, %v1583
          %v1750 = vmul.f32 %v1023, %v1582
          %v1751 = vmul.f32 %v1025, %v1583
          %v1752 = vmul.f32 %v1029, %v1582
          %v1753 = vmul.f32 %v1031, %v1583
          %v1754 = vmul.f32 %v1033, %v1582
          %v1755 = vmul.f32 %v1035, %v1583
          %v1756 = vmul.f32 %v1039, %v1582
          %v1757 = vmul.f32 %v1041, %v1583
          %v1758 = vmul.f32 %v1043, %v1582
          %v1759 = vmul.f32 %v1045, %v1583
          %v1760 = vmul.f32 %v1049, %v1582
          %v1761 = vmul.f32 %v1051, %v1583
          %v1762 = vmul.f32 %v1053, %v1582
          %v1763 = vmul.f32 %v1055, %v1583
          %v1764 = vmul.f32 %v1059, %v1582
          %v1765 = vmul.f32 %v1061, %v1583
          %v1766 = vmul.f32 %v1063, %v1582
          %v1767 = vmul.f32 %v1065, %v1583
          %v1768 = vmul.f32 %v1069, %v1582
          %v1769 = vmul.f32 %v1071, %v1583
          %v1770 = vmul.f32 %v1073, %v1582
          %v1771 = vmul.f32 %v1075, %v1583
          %v1772 = vmul.f32 %v1079, %v1582
          %v1773 = vmul.f32 %v1081, %v1583
          %v1774 = vmul.f32 %v1083, %v1582
          %v1775 = vmul.f32 %v1085, %v1583
          %v1776 = vmul.f32 %v1089, %v1582
          %v1777 = vmul.f32 %v1091, %v1583
          %v1778 = vmul.f32 %v1093, %v1582
          %v1779 = vmul.f32 %v1095, %v1583
          %v1780 = vmul.f32 %v1099, %v1582
          %v1781 = vmul.f32 %v1101, %v1583
          %v1782 = vmul.f32 %v1103, %v1582
          %v1783 = vmul.f32 %v1105, %v1583
          %v1784 = vmul.f32 %v1109, %v1582
          %v1785 = vmul.f32 %v1111, %v1583
          %v1786 = vmul.f32 %v1113, %v1582
          %v1787 = vmul.f32 %v1115, %v1583
          %v1788 = vmul.f32 %v1119, %v1582
          %v1789 = vmul.f32 %v1121, %v1583
          %v1790 = vmul.f32 %v1123, %v1582
          %v1791 = vmul.f32 %v1125, %v1583
          %v1792 = vmul.f32 %v1129, %v1582
          %v1793 = vmul.f32 %v1131, %v1583
          %v1794 = vmul.f32 %v1133, %v1582
          %v1795 = vmul.f32 %v1135, %v1583
          %v1796 = vmul.f32 %v1139, %v1582
          %v1797 = vmul.f32 %v1141, %v1583
          %v1798 = vmul.f32 %v1143, %v1582
          %v1799 = vmul.f32 %v1145, %v1583
          %v1800 = vmul.f32 %v1149, %v1582
          %v1801 = vmul.f32 %v1151, %v1583
          %v1802 = vmul.f32 %v1153, %v1582
          %v1803 = vmul.f32 %v1155, %v1583
          %v1804 = vmul.f32 %v1159, %v1582
          %v1805 = vmul.f32 %v1161, %v1583
          %v1806 = vmul.f32 %v1163, %v1582
          %v1807 = vmul.f32 %v1165, %v1583
          %v1808 = vadd.f32 %v1744, %v1745
          %1809 = vadd.xlane.f32.xlu0 %v1808
          %v1810 = vpop.xlane.xlu0 %1809
          %v1811 = vadd.f32 %v1746, %v1747
          %1812 = vadd.xlane.f32.xlu0 %v1811
          %v1813 = vpop.xlane.xlu0 %1812
          %v1814 = vadd.f32 %v1748, %v1749
          %1815 = vadd.xlane.f32.xlu0 %v1814
          %v1816 = vpop.xlane.xlu0 %1815
          %v1817 = vadd.f32 %v1750, %v1751
          %1818 = vadd.xlane.f32.xlu0 %v1817
          %v1819 = vpop.xlane.xlu0 %1818
          %v1820 = vadd.f32 %v1752, %v1753
          %1821 = vadd.xlane.f32.xlu0 %v1820
          %v1822 = vpop.xlane.xlu0 %1821
          %v1823 = vadd.f32 %v1754, %v1755
          %1824 = vadd.xlane.f32.xlu0 %v1823
          %v1825 = vpop.xlane.xlu0 %1824
          %v1826 = vadd.f32 %v1756, %v1757
          %1827 = vadd.xlane.f32.xlu0 %v1826
          %v1828 = vpop.xlane.xlu0 %1827
          %v1829 = vadd.f32 %v1758, %v1759
          %1830 = vadd.xlane.f32.xlu0 %v1829
          %v1831 = vpop.xlane.xlu0 %1830
          %v1832 = vadd.f32 %v1760, %v1761
          %1833 = vadd.xlane.f32.xlu0 %v1832
          %v1834 = vpop.xlane.xlu0 %1833
          %v1835 = vadd.f32 %v1762, %v1763
          %1836 = vadd.xlane.f32.xlu0 %v1835
          %v1837 = vpop.xlane.xlu0 %1836
          %v1838 = vadd.f32 %v1764, %v1765
          %1839 = vadd.xlane.f32.xlu0 %v1838
          %v1840 = vpop.xlane.xlu0 %1839
          %v1841 = vadd.f32 %v1766, %v1767
          %1842 = vadd.xlane.f32.xlu0 %v1841
          %v1843 = vpop.xlane.xlu0 %1842
          %v1844 = vadd.f32 %v1768, %v1769
          %1845 = vadd.xlane.f32.xlu0 %v1844
          %v1846 = vpop.xlane.xlu0 %1845
          %v1847 = vadd.f32 %v1770, %v1771
          %1848 = vadd.xlane.f32.xlu0 %v1847
          %v1849 = vpop.xlane.xlu0 %1848
          %v1850 = vadd.f32 %v1772, %v1773
          %1851 = vadd.xlane.f32.xlu0 %v1850
          %v1852 = vpop.xlane.xlu0 %1851
          %v1853 = vadd.f32 %v1774, %v1775
          %1854 = vadd.xlane.f32.xlu0 %v1853
          %v1855 = vpop.xlane.xlu0 %1854
          %v1856 = vadd.f32 %v1776, %v1777
          %1857 = vadd.xlane.f32.xlu0 %v1856
          %v1858 = vpop.xlane.xlu0 %1857
          %v1859 = vadd.f32 %v1778, %v1779
          %1860 = vadd.xlane.f32.xlu0 %v1859
          %v1861 = vpop.xlane.xlu0 %1860
          %v1862 = vadd.f32 %v1780, %v1781
          %1863 = vadd.xlane.f32.xlu0 %v1862
          %v1864 = vpop.xlane.xlu0 %1863
          %v1865 = vadd.f32 %v1782, %v1783
          %1866 = vadd.xlane.f32.xlu0 %v1865
          %v1867 = vpop.xlane.xlu0 %1866
          %v1868 = vadd.f32 %v1784, %v1785
          %1869 = vadd.xlane.f32.xlu0 %v1868
          %v1870 = vpop.xlane.xlu0 %1869
          %v1871 = vadd.f32 %v1786, %v1787
          %1872 = vadd.xlane.f32.xlu0 %v1871
          %v1873 = vpop.xlane.xlu0 %1872
          %v1874 = vadd.f32 %v1788, %v1789
          %1875 = vadd.xlane.f32.xlu0 %v1874
          %v1876 = vpop.xlane.xlu0 %1875
          %v1877 = vadd.f32 %v1790, %v1791
          %1878 = vadd.xlane.f32.xlu0 %v1877
          %v1879 = vpop.xlane.xlu0 %1878
          %v1880 = vadd.f32 %v1792, %v1793
          %1881 = vadd.xlane.f32.xlu0 %v1880
          %v1882 = vpop.xlane.xlu0 %1881
          %v1883 = vadd.f32 %v1794, %v1795
          %1884 = vadd.xlane.f32.xlu0 %v1883
          %v1885 = vpop.xlane.xlu0 %1884
          %v1886 = vadd.f32 %v1796, %v1797
          %1887 = vadd.xlane.f32.xlu0 %v1886
          %v1888 = vpop.xlane.xlu0 %1887
          %v1889 = vadd.f32 %v1798, %v1799
          %1890 = vadd.xlane.f32.xlu0 %v1889
          %v1891 = vpop.xlane.xlu0 %1890
          %v1892 = vadd.f32 %v1800, %v1801
          %1893 = vadd.xlane.f32.xlu0 %v1892
          %v1894 = vpop.xlane.xlu0 %1893
          %v1895 = vadd.f32 %v1802, %v1803
          %1896 = vadd.xlane.f32.xlu0 %v1895
          %v1897 = vpop.xlane.xlu0 %1896
          %v1898 = vadd.f32 %v1804, %v1805
          %1899 = vadd.xlane.f32.xlu0 %v1898
          %v1900 = vpop.xlane.xlu0 %1899
          %v1901 = vadd.f32 %v1806, %v1807
          %1902 = vadd.xlane.f32.xlu0 %v1901
          %v1903 = vpop.xlane.xlu0 %1902
          %v1904 = vmul.f32 %v1650, %v1810
          %v1905 = vmul.f32 %v1653, %v1813
          %v1906 = vmul.f32 %v1656, %v1816
          %v1907 = vmul.f32 %v1659, %v1819
          %v1908 = vmul.f32 %v1662, %v1822
          %v1909 = vmul.f32 %v1665, %v1825
          %v1910 = vmul.f32 %v1668, %v1828
          %v1911 = vmul.f32 %v1671, %v1831
          %v1912 = vmul.f32 %v1674, %v1834
          %v1913 = vmul.f32 %v1677, %v1837
          %v1914 = vmul.f32 %v1680, %v1840
          %v1915 = vmul.f32 %v1683, %v1843
          %v1916 = vmul.f32 %v1686, %v1846
          %v1917 = vmul.f32 %v1689, %v1849
          %v1918 = vmul.f32 %v1692, %v1852
          %v1919 = vmul.f32 %v1695, %v1855
          %v1920 = vmul.f32 %v1698, %v1858
          %v1921 = vmul.f32 %v1701, %v1861
          %v1922 = vmul.f32 %v1704, %v1864
          %v1923 = vmul.f32 %v1707, %v1867
          %v1924 = vmul.f32 %v1710, %v1870
          %v1925 = vmul.f32 %v1713, %v1873
          %v1926 = vmul.f32 %v1716, %v1876
          %v1927 = vmul.f32 %v1719, %v1879
          %v1928 = vmul.f32 %v1722, %v1882
          %v1929 = vmul.f32 %v1725, %v1885
          %v1930 = vmul.f32 %v1728, %v1888
          %v1931 = vmul.f32 %v1731, %v1891
          %v1932 = vmul.f32 %v1734, %v1894
          %v1933 = vmul.f32 %v1737, %v1897
          %v1934 = vmul.f32 %v1740, %v1900
          %v1935 = vmul.f32 %v1743, %v1903
          %v1936 = vmul.f32 %v1904, 0.00390625
          %v1937 = vmul.f32 %v1905, 0.00390625
          %v1938 = vmul.f32 %v1906, 0.00390625
          %v1939 = vmul.f32 %v1907, 0.00390625
          %v1940 = vmul.f32 %v1908, 0.00390625
          %v1941 = vmul.f32 %v1909, 0.00390625
          %v1942 = vmul.f32 %v1910, 0.00390625
          %v1943 = vmul.f32 %v1911, 0.00390625
          %v1944 = vmul.f32 %v1912, 0.00390625
          %v1945 = vmul.f32 %v1913, 0.00390625
          %v1946 = vmul.f32 %v1914, 0.00390625
          %v1947 = vmul.f32 %v1915, 0.00390625
          %v1948 = vmul.f32 %v1916, 0.00390625
          %v1949 = vmul.f32 %v1917, 0.00390625
          %v1950 = vmul.f32 %v1918, 0.00390625
          %v1951 = vmul.f32 %v1919, 0.00390625
          %v1952 = vmul.f32 %v1920, 0.00390625
          %v1953 = vmul.f32 %v1921, 0.00390625
          %v1954 = vmul.f32 %v1922, 0.00390625
          %v1955 = vmul.f32 %v1923, 0.00390625
          %v1956 = vmul.f32 %v1924, 0.00390625
          %v1957 = vmul.f32 %v1925, 0.00390625
          %v1958 = vmul.f32 %v1926, 0.00390625
          %v1959 = vmul.f32 %v1927, 0.00390625
          %v1960 = vmul.f32 %v1928, 0.00390625
          %v1961 = vmul.f32 %v1929, 0.00390625
          %v1962 = vmul.f32 %v1930, 0.00390625
          %v1963 = vmul.f32 %v1931, 0.00390625
          %v1964 = vmul.f32 %v1932, 0.00390625
          %v1965 = vmul.f32 %v1933, 0.00390625
          %v1966 = vmul.f32 %v1934, 0.00390625
          %v1967 = vmul.f32 %v1935, 0.00390625
          %v1968 = vmul.f32 %v1936, %v1582
          %v1969 = vmul.f32 %v1936, %v1583
          %v1970 = vmul.f32 %v1937, %v1582
          %v1971 = vmul.f32 %v1937, %v1583
          %v1972 = vmul.f32 %v1938, %v1582
          %v1973 = vmul.f32 %v1938, %v1583
          %v1974 = vmul.f32 %v1939, %v1582
          %v1975 = vmul.f32 %v1939, %v1583
          %v1976 = vmul.f32 %v1940, %v1582
          %v1977 = vmul.f32 %v1940, %v1583
          %v1978 = vmul.f32 %v1941, %v1582
          %v1979 = vmul.f32 %v1941, %v1583
          %v1980 = vmul.f32 %v1942, %v1582
          %v1981 = vmul.f32 %v1942, %v1583
          %v1982 = vmul.f32 %v1943, %v1582
          %v1983 = vmul.f32 %v1943, %v1583
          %v1984 = vmul.f32 %v1944, %v1582
          %v1985 = vmul.f32 %v1944, %v1583
          %v1986 = vmul.f32 %v1945, %v1582
          %v1987 = vmul.f32 %v1945, %v1583
          %v1988 = vmul.f32 %v1946, %v1582
          %v1989 = vmul.f32 %v1946, %v1583
          %v1990 = vmul.f32 %v1947, %v1582
          %v1991 = vmul.f32 %v1947, %v1583
          %v1992 = vmul.f32 %v1948, %v1582
          %v1993 = vmul.f32 %v1948, %v1583
          %v1994 = vmul.f32 %v1949, %v1582
          %v1995 = vmul.f32 %v1949, %v1583
          %v1996 = vmul.f32 %v1950, %v1582
          %v1997 = vmul.f32 %v1950, %v1583
          %v1998 = vmul.f32 %v1951, %v1582
          %v1999 = vmul.f32 %v1951, %v1583
          %v2000 = vmul.f32 %v1952, %v1582
          %v2001 = vmul.f32 %v1952, %v1583
          %v2002 = vmul.f32 %v1953, %v1582
          %v2003 = vmul.f32 %v1953, %v1583
          %v2004 = vmul.f32 %v1954, %v1582
          %v2005 = vmul.f32 %v1954, %v1583
          %v2006 = vmul.f32 %v1955, %v1582
          %v2007 = vmul.f32 %v1955, %v1583
          %v2008 = vmul.f32 %v1956, %v1582
          %v2009 = vmul.f32 %v1956, %v1583
          %v2010 = vmul.f32 %v1957, %v1582
          %v2011 = vmul.f32 %v1957, %v1583
          %v2012 = vmul.f32 %v1958, %v1582
          %v2013 = vmul.f32 %v1958, %v1583
          %v2014 = vmul.f32 %v1959, %v1582
          %v2015 = vmul.f32 %v1959, %v1583
          %v2016 = vmul.f32 %v1960, %v1582
          %v2017 = vmul.f32 %v1960, %v1583
          %v2018 = vmul.f32 %v1961, %v1582
          %v2019 = vmul.f32 %v1961, %v1583
          %v2020 = vmul.f32 %v1962, %v1582
          %v2021 = vmul.f32 %v1962, %v1583
          %v2022 = vmul.f32 %v1963, %v1582
          %v2023 = vmul.f32 %v1963, %v1583
          %v2024 = vmul.f32 %v1964, %v1582
          %v2025 = vmul.f32 %v1964, %v1583
          %v2026 = vmul.f32 %v1965, %v1582
          %v2027 = vmul.f32 %v1965, %v1583
          %v2028 = vmul.f32 %v1966, %v1582
          %v2029 = vmul.f32 %v1966, %v1583
          %v2030 = vmul.f32 %v1967, %v1582
          %v2031 = vmul.f32 %v1967, %v1583
          %v2032 = vadd.f32 %v1519, %v1968
          %v2033 = vadd.f32 %v1519, %v1969
          %v2034 = vadd.f32 %v1520, %v1970
          %v2035 = vadd.f32 %v1520, %v1971
          %v2036 = vadd.f32 %v1521, %v1972
          %v2037 = vadd.f32 %v1521, %v1973
          %v2038 = vadd.f32 %v1522, %v1974
          %v2039 = vadd.f32 %v1522, %v1975
          %v2040 = vadd.f32 %v1523, %v1976
          %v2041 = vadd.f32 %v1523, %v1977
          %v2042 = vadd.f32 %v1524, %v1978
          %v2043 = vadd.f32 %v1524, %v1979
          %v2044 = vadd.f32 %v1525, %v1980
          %v2045 = vadd.f32 %v1525, %v1981
          %v2046 = vadd.f32 %v1526, %v1982
          %v2047 = vadd.f32 %v1526, %v1983
          %v2048 = vadd.f32 %v1527, %v1984
          %v2049 = vadd.f32 %v1527, %v1985
          %v2050 = vadd.f32 %v1528, %v1986
          %v2051 = vadd.f32 %v1528, %v1987
          %v2052 = vadd.f32 %v1529, %v1988
          %v2053 = vadd.f32 %v1529, %v1989
          %v2054 = vadd.f32 %v1530, %v1990
          %v2055 = vadd.f32 %v1530, %v1991
          %v2056 = vadd.f32 %v1531, %v1992
          %v2057 = vadd.f32 %v1531, %v1993
          %v2058 = vadd.f32 %v1532, %v1994
          %v2059 = vadd.f32 %v1532, %v1995
          %v2060 = vadd.f32 %v1533, %v1996
          %v2061 = vadd.f32 %v1533, %v1997
          %v2062 = vadd.f32 %v1534, %v1998
          %v2063 = vadd.f32 %v1534, %v1999
          %v2064 = vadd.f32 %v1535, %v2000
          %v2065 = vadd.f32 %v1535, %v2001
          %v2066 = vadd.f32 %v1536, %v2002
          %v2067 = vadd.f32 %v1536, %v2003
          %v2068 = vadd.f32 %v1537, %v2004
          %v2069 = vadd.f32 %v1537, %v2005
          %v2070 = vadd.f32 %v1538, %v2006
          %v2071 = vadd.f32 %v1538, %v2007
          %v2072 = vadd.f32 %v1539, %v2008
          %v2073 = vadd.f32 %v1539, %v2009
          %v2074 = vadd.f32 %v1540, %v2010
          %v2075 = vadd.f32 %v1540, %v2011
          %v2076 = vadd.f32 %v1541, %v2012
          %v2077 = vadd.f32 %v1541, %v2013
          %v2078 = vadd.f32 %v1542, %v2014
          %v2079 = vadd.f32 %v1542, %v2015
          %v2080 = vadd.f32 %v1543, %v2016
          %v2081 = vadd.f32 %v1543, %v2017
          %v2082 = vadd.f32 %v1544, %v2018
          %v2083 = vadd.f32 %v1544, %v2019
          %v2084 = vadd.f32 %v1545, %v2020
          %v2085 = vadd.f32 %v1545, %v2021
          %v2086 = vadd.f32 %v1546, %v2022
          %v2087 = vadd.f32 %v1546, %v2023
          %v2088 = vadd.f32 %v1547, %v2024
          %v2089 = vadd.f32 %v1547, %v2025
          %v2090 = vadd.f32 %v1548, %v2026
          %v2091 = vadd.f32 %v1548, %v2027
          %v2092 = vadd.f32 %v1549, %v2028
          %v2093 = vadd.f32 %v1549, %v2029
          %v2094 = vadd.f32 %v1550, %v2030
          %v2095 = vadd.f32 %v1550, %v2031
          %2096 = vst [vmem:[#allocation3] sm:$0xff] %v2032
          %2097 = vst [vmem:[#allocation3 + $0x8] sm:$0xff] %v2033
          %2098 = vst [vmem:[#allocation3 + $0x10] sm:$0xff] %v2034
          %2099 = vst [vmem:[#allocation3 + $0x18] sm:$0xff] %v2035
          %2100 = vst [vmem:[#allocation3 + $0x20] sm:$0xff] %v2036
          %2101 = vst [vmem:[#allocation3 + $0x28] sm:$0xff] %v2037
          %2102 = vst [vmem:[#allocation3 + $0x30] sm:$0xff] %v2038
          %2103 = vst [vmem:[#allocation3 + $0x38] sm:$0xff] %v2039
          %2104 = vst [vmem:[#allocation3 + $0x40] sm:$0xff] %v2040
          %2105 = vst [vmem:[#allocation3 + $0x48] sm:$0xff] %v2041
          %2106 = vst [vmem:[#allocation3 + $0x50] sm:$0xff] %v2042
          %2107 = vst [vmem:[#allocation3 + $0x58] sm:$0xff] %v2043
          %2108 = vst [vmem:[#allocation3 + $0x60] sm:$0xff] %v2044
          %2109 = vst [vmem:[#allocation3 + $0x68] sm:$0xff] %v2045
          %2110 = vst [vmem:[#allocation3 + $0x70] sm:$0xff] %v2046
          %2111 = vst [vmem:[#allocation3 + $0x78] sm:$0xff] %v2047
          %2112 = vst [vmem:[#allocation3 + $0x80] sm:$0xff] %v2048
          %2113 = vst [vmem:[#allocation3 + $0x88] sm:$0xff] %v2049
          %2114 = vst [vmem:[#allocation3 + $0x90] sm:$0xff] %v2050
          %2115 = vst [vmem:[#allocation3 + $0x98] sm:$0xff] %v2051
          %2116 = vst [vmem:[#allocation3 + $0xa0] sm:$0xff] %v2052
          %2117 = vst [vmem:[#allocation3 + $0xa8] sm:$0xff] %v2053
          %2118 = vst [vmem:[#allocation3 + $0xb0] sm:$0xff] %v2054
          %2119 = vst [vmem:[#allocation3 + $0xb8] sm:$0xff] %v2055
          %2120 = vst [vmem:[#allocation3 + $0xc0] sm:$0xff] %v2056
          %2121 = vst [vmem:[#allocation3 + $0xc8] sm:$0xff] %v2057
          %2122 = vst [vmem:[#allocation3 + $0xd0] sm:$0xff] %v2058
          %2123 = vst [vmem:[#allocation3 + $0xd8] sm:$0xff] %v2059
          %2124 = vst [vmem:[#allocation3 + $0xe0] sm:$0xff] %v2060
          %2125 = vst [vmem:[#allocation3 + $0xe8] sm:$0xff] %v2061
          %2126 = vst [vmem:[#allocation3 + $0xf0] sm:$0xff] %v2062
          %2127 = vst [vmem:[#allocation3 + $0xf8] sm:$0xff] %v2063
          %2128 = vst [vmem:[#allocation3 + $0x100] sm:$0xff] %v2064
          %2129 = vst [vmem:[#allocation3 + $0x108] sm:$0xff] %v2065
          %2130 = vst [vmem:[#allocation3 + $0x110] sm:$0xff] %v2066
          %2131 = vst [vmem:[#allocation3 + $0x118] sm:$0xff] %v2067
          %2132 = vst [vmem:[#allocation3 + $0x120] sm:$0xff] %v2068
          %2133 = vst [vmem:[#allocation3 + $0x128] sm:$0xff] %v2069
          %2134 = vst [vmem:[#allocation3 + $0x130] sm:$0xff] %v2070
          %2135 = vst [vmem:[#allocation3 + $0x138] sm:$0xff] %v2071
          %2136 = vst [vmem:[#allocation3 + $0x140] sm:$0xff] %v2072
          %2137 = vst [vmem:[#allocation3 + $0x148] sm:$0xff] %v2073
          %2138 = vst [vmem:[#allocation3 + $0x150] sm:$0xff] %v2074
          %2139 = vst [vmem:[#allocation3 + $0x158] sm:$0xff] %v2075
          %2140 = vst [vmem:[#allocation3 + $0x160] sm:$0xff] %v2076
          %2141 = vst [vmem:[#allocation3 + $0x168] sm:$0xff] %v2077
          %2142 = vst [vmem:[#allocation3 + $0x170] sm:$0xff] %v2078
          %2143 = vst [vmem:[#allocation3 + $0x178] sm:$0xff] %v2079
          %2144 = vst [vmem:[#allocation3 + $0x180] sm:$0xff] %v2080
          %2145 = vst [vmem:[#allocation3 + $0x188] sm:$0xff] %v2081
          %2146 = vst [vmem:[#allocation3 + $0x190] sm:$0xff] %v2082
          %2147 = vst [vmem:[#allocation3 + $0x198] sm:$0xff] %v2083
          %2148 = vst [vmem:[#allocation3 + $0x1a0] sm:$0xff] %v2084
          %2149 = vst [vmem:[#allocation3 + $0x1a8] sm:$0xff] %v2085
          %2150 = vst [vmem:[#allocation3 + $0x1b0] sm:$0xff] %v2086
          %2151 = vst [vmem:[#allocation3 + $0x1b8] sm:$0xff] %v2087
          %2152 = vst [vmem:[#allocation3 + $0x1c0] sm:$0xff] %v2088
          %2153 = vst [vmem:[#allocation3 + $0x1c8] sm:$0xff] %v2089
          %2154 = vst [vmem:[#allocation3 + $0x1d0] sm:$0xff] %v2090
          %2155 = vst [vmem:[#allocation3 + $0x1d8] sm:$0xff] %v2091
          %2156 = vst [vmem:[#allocation3 + $0x1e0] sm:$0xff] %v2092
          %2157 = vst [vmem:[#allocation3 + $0x1e8] sm:$0xff] %v2093
          %2158 = vst [vmem:[#allocation3 + $0x1f0] sm:$0xff] %v2094
          %2159 = vst [vmem:[#allocation3 + $0x1f8] sm:$0xff] %v2095
        $region48: #{tpu_custom_call.1} parent=43 // pred_fallthru
          _
        %v2160 = vld [vmem:[#allocation2] sm:$0xff]
        %v2161 = vld [vmem:[#allocation2 + $0x8] sm:$0xff]
        %v2162 = vld [vmem:[#allocation2 + $0x10] sm:$0xff]
        %v2163 = vld [vmem:[#allocation2 + $0x18] sm:$0xff]
        %v2164 = vld [vmem:[#allocation2 + $0x20] sm:$0xff]
        %v2165 = vld [vmem:[#allocation2 + $0x28] sm:$0xff]
        %v2166 = vld [vmem:[#allocation2 + $0x30] sm:$0xff]
        %v2167 = vld [vmem:[#allocation2 + $0x38] sm:$0xff]
        %v2168 = vld [vmem:[#allocation2 + $0x40] sm:$0xff]
        %v2169 = vld [vmem:[#allocation2 + $0x48] sm:$0xff]
        %v2170 = vld [vmem:[#allocation2 + $0x50] sm:$0xff]
        %v2171 = vld [vmem:[#allocation2 + $0x58] sm:$0xff]
        %v2172 = vld [vmem:[#allocation2 + $0x60] sm:$0xff]
        %v2173 = vld [vmem:[#allocation2 + $0x68] sm:$0xff]
        %v2174 = vld [vmem:[#allocation2 + $0x70] sm:$0xff]
        %v2175 = vld [vmem:[#allocation2 + $0x78] sm:$0xff]
        %v2176 = vld [vmem:[#allocation2 + $0x80] sm:$0xff]
        %v2177 = vld [vmem:[#allocation2 + $0x88] sm:$0xff]
        %v2178 = vld [vmem:[#allocation2 + $0x90] sm:$0xff]
        %v2179 = vld [vmem:[#allocation2 + $0x98] sm:$0xff]
        %v2180 = vld [vmem:[#allocation2 + $0xa0] sm:$0xff]
        %v2181 = vld [vmem:[#allocation2 + $0xa8] sm:$0xff]
        %v2182 = vld [vmem:[#allocation2 + $0xb0] sm:$0xff]
        %v2183 = vld [vmem:[#allocation2 + $0xb8] sm:$0xff]
        %v2184 = vld [vmem:[#allocation2 + $0xc0] sm:$0xff]
        %v2185 = vld [vmem:[#allocation2 + $0xc8] sm:$0xff]
        %v2186 = vld [vmem:[#allocation2 + $0xd0] sm:$0xff]
        %v2187 = vld [vmem:[#allocation2 + $0xd8] sm:$0xff]
        %v2188 = vld [vmem:[#allocation2 + $0xe0] sm:$0xff]
        %v2189 = vld [vmem:[#allocation2 + $0xe8] sm:$0xff]
        %v2190 = vld [vmem:[#allocation2 + $0xf0] sm:$0xff]
        %v2191 = vld [vmem:[#allocation2 + $0xf8] sm:$0xff]
        %v2192 = vld [vmem:[#allocation2 + $0x100] sm:$0xff]
        %v2193 = vld [vmem:[#allocation2 + $0x108] sm:$0xff]
        %v2194 = vld [vmem:[#allocation2 + $0x110] sm:$0xff]
        %v2195 = vld [vmem:[#allocation2 + $0x118] sm:$0xff]
        %v2196 = vld [vmem:[#allocation2 + $0x120] sm:$0xff]
        %v2197 = vld [vmem:[#allocation2 + $0x128] sm:$0xff]
        %v2198 = vld [vmem:[#allocation2 + $0x130] sm:$0xff]
        %v2199 = vld [vmem:[#allocation2 + $0x138] sm:$0xff]
        %v2200 = vld [vmem:[#allocation2 + $0x140] sm:$0xff]
        %v2201 = vld [vmem:[#allocation2 + $0x148] sm:$0xff]
        %v2202 = vld [vmem:[#allocation2 + $0x150] sm:$0xff]
        %v2203 = vld [vmem:[#allocation2 + $0x158] sm:$0xff]
        %v2204 = vld [vmem:[#allocation2 + $0x160] sm:$0xff]
        %v2205 = vld [vmem:[#allocation2 + $0x168] sm:$0xff]
        %v2206 = vld [vmem:[#allocation2 + $0x170] sm:$0xff]
        %v2207 = vld [vmem:[#allocation2 + $0x178] sm:$0xff]
        %v2208 = vld [vmem:[#allocation2 + $0x180] sm:$0xff]
        %v2209 = vld [vmem:[#allocation2 + $0x188] sm:$0xff]
        %v2210 = vld [vmem:[#allocation2 + $0x190] sm:$0xff]
        %v2211 = vld [vmem:[#allocation2 + $0x198] sm:$0xff]
        %v2212 = vld [vmem:[#allocation2 + $0x1a0] sm:$0xff]
        %v2213 = vld [vmem:[#allocation2 + $0x1a8] sm:$0xff]
        %v2214 = vld [vmem:[#allocation2 + $0x1b0] sm:$0xff]
        %v2215 = vld [vmem:[#allocation2 + $0x1b8] sm:$0xff]
        %v2216 = vld [vmem:[#allocation2 + $0x1c0] sm:$0xff]
        %v2217 = vld [vmem:[#allocation2 + $0x1c8] sm:$0xff]
        %v2218 = vld [vmem:[#allocation2 + $0x1d0] sm:$0xff]
        %v2219 = vld [vmem:[#allocation2 + $0x1d8] sm:$0xff]
        %v2220 = vld [vmem:[#allocation2 + $0x1e0] sm:$0xff]
        %v2221 = vld [vmem:[#allocation2 + $0x1e8] sm:$0xff]
        %v2222 = vld [vmem:[#allocation2 + $0x1f0] sm:$0xff]
        %v2223 = vld [vmem:[#allocation2 + $0x1f8] sm:$0xff]
        %v2224 = vld [vmem:[%s324] sm:$0xff]
        %v2225 = vld [vmem:[%s324 + $0x8] sm:$0xff]
        %v2226 = vld [vmem:[%s324 + $0x10] sm:$0xff]
        %v2227 = vld [vmem:[%s324 + $0x18] sm:$0xff]
        %v2228 = vld [vmem:[%s324 + $0x20] sm:$0xff]
        %v2229 = vld [vmem:[%s324 + $0x28] sm:$0xff]
        %v2230 = vld [vmem:[%s324 + $0x30] sm:$0xff]
        %v2231 = vld [vmem:[%s324 + $0x38] sm:$0xff]
        %v2232 = vld [vmem:[%s324 + $0x40] sm:$0xff]
        %v2233 = vld [vmem:[%s324 + $0x48] sm:$0xff]
        %v2234 = vld [vmem:[%s324 + $0x50] sm:$0xff]
        %v2235 = vld [vmem:[%s324 + $0x58] sm:$0xff]
        %v2236 = vld [vmem:[%s324 + $0x60] sm:$0xff]
        %v2237 = vld [vmem:[%s324 + $0x68] sm:$0xff]
        %v2238 = vld [vmem:[%s324 + $0x70] sm:$0xff]
        %v2239 = vld [vmem:[%s324 + $0x78] sm:$0xff]
        %v2240 = vld [vmem:[%s324 + $0x80] sm:$0xff]
        %v2241 = vld [vmem:[%s324 + $0x88] sm:$0xff]
        %v2242 = vld [vmem:[%s324 + $0x90] sm:$0xff]
        %v2243 = vld [vmem:[%s324 + $0x98] sm:$0xff]
        %v2244 = vld [vmem:[%s324 + $0xa0] sm:$0xff]
        %v2245 = vld [vmem:[%s324 + $0xa8] sm:$0xff]
        %v2246 = vld [vmem:[%s324 + $0xb0] sm:$0xff]
        %v2247 = vld [vmem:[%s324 + $0xb8] sm:$0xff]
        %v2248 = vld [vmem:[%s324 + $0xc0] sm:$0xff]
        %v2249 = vld [vmem:[%s324 + $0xc8] sm:$0xff]
        %v2250 = vld [vmem:[%s324 + $0xd0] sm:$0xff]
        %v2251 = vld [vmem:[%s324 + $0xd8] sm:$0xff]
        %v2252 = vld [vmem:[%s324 + $0xe0] sm:$0xff]
        %v2253 = vld [vmem:[%s324 + $0xe8] sm:$0xff]
        %v2254 = vld [vmem:[%s324 + $0xf0] sm:$0xff]
        %v2255 = vld [vmem:[%s324 + $0xf8] sm:$0xff]
        %v2288 = vunpack.c.l.b16 %v2224
        %v2289 = vunpack.c.h.b16 %v2224
        %v2290 = vunpack.c.l.b16 %v2225
        %v2291 = vunpack.c.h.b16 %v2225
        %v2292 = vunpack.c.l.b16 %v2226
        %v2293 = vunpack.c.h.b16 %v2226
        %v2294 = vunpack.c.l.b16 %v2227
        %v2295 = vunpack.c.h.b16 %v2227
        %v2296 = vunpack.c.l.b16 %v2228
        %v2297 = vunpack.c.h.b16 %v2228
        %v2298 = vunpack.c.l.b16 %v2229
        %v2299 = vunpack.c.h.b16 %v2229
        %v2300 = vunpack.c.l.b16 %v2230
        %v2301 = vunpack.c.h.b16 %v2230
        %v2302 = vunpack.c.l.b16 %v2231
        %v2303 = vunpack.c.h.b16 %v2231
        %v2304 = vunpack.c.l.b16 %v2232
        %v2305 = vunpack.c.h.b16 %v2232
        %v2306 = vunpack.c.l.b16 %v2233
        %v2307 = vunpack.c.h.b16 %v2233
        %v2308 = vunpack.c.l.b16 %v2234
        %v2309 = vunpack.c.h.b16 %v2234
        %v2310 = vunpack.c.l.b16 %v2235
        %v2311 = vunpack.c.h.b16 %v2235
        %v2312 = vunpack.c.l.b16 %v2236
        %v2313 = vunpack.c.h.b16 %v2236
        %v2314 = vunpack.c.l.b16 %v2237
        %v2315 = vunpack.c.h.b16 %v2237
        %v2316 = vunpack.c.l.b16 %v2238
        %v2317 = vunpack.c.h.b16 %v2238
        %v2318 = vunpack.c.l.b16 %v2239
        %v2319 = vunpack.c.h.b16 %v2239
        %v2320 = vunpack.c.l.b16 %v2240
        %v2321 = vunpack.c.h.b16 %v2240
        %v2322 = vunpack.c.l.b16 %v2241
        %v2323 = vunpack.c.h.b16 %v2241
        %v2324 = vunpack.c.l.b16 %v2242
        %v2325 = vunpack.c.h.b16 %v2242
        %v2326 = vunpack.c.l.b16 %v2243
        %v2327 = vunpack.c.h.b16 %v2243
        %v2328 = vunpack.c.l.b16 %v2244
        %v2329 = vunpack.c.h.b16 %v2244
        %v2330 = vunpack.c.l.b16 %v2245
        %v2331 = vunpack.c.h.b16 %v2245
        %v2332 = vunpack.c.l.b16 %v2246
        %v2333 = vunpack.c.h.b16 %v2246
        %v2334 = vunpack.c.l.b16 %v2247
        %v2335 = vunpack.c.h.b16 %v2247
        %v2336 = vunpack.c.l.b16 %v2248
        %v2337 = vunpack.c.h.b16 %v2248
        %v2338 = vunpack.c.l.b16 %v2249
        %v2339 = vunpack.c.h.b16 %v2249
        %v2340 = vunpack.c.l.b16 %v2250
        %v2341 = vunpack.c.h.b16 %v2250
        %v2342 = vunpack.c.l.b16 %v2251
        %v2343 = vunpack.c.h.b16 %v2251
        %v2344 = vunpack.c.l.b16 %v2252
        %v2345 = vunpack.c.h.b16 %v2252
        %v2346 = vunpack.c.l.b16 %v2253
        %v2347 = vunpack.c.h.b16 %v2253
        %v2348 = vunpack.c.l.b16 %v2254
        %v2349 = vunpack.c.h.b16 %v2254
        %v2350 = vunpack.c.l.b16 %v2255
        %v2351 = vunpack.c.h.b16 %v2255
        %v2352 = vpack.c.b16 %v2290, %v2288
        %v2353 = vpack.c.b16 %v2291, %v2289
        %v2354 = vpack.c.b16 %v2294, %v2292
        %v2355 = vpack.c.b16 %v2295, %v2293
        %v2356 = vpack.c.b16 %v2298, %v2296
        %v2357 = vpack.c.b16 %v2299, %v2297
        %v2358 = vpack.c.b16 %v2302, %v2300
        %v2359 = vpack.c.b16 %v2303, %v2301
        %v2360 = vpack.c.b16 %v2306, %v2304
        %v2361 = vpack.c.b16 %v2307, %v2305
        %v2362 = vpack.c.b16 %v2310, %v2308
        %v2363 = vpack.c.b16 %v2311, %v2309
        %v2364 = vpack.c.b16 %v2314, %v2312
        %v2365 = vpack.c.b16 %v2315, %v2313
        %v2366 = vpack.c.b16 %v2318, %v2316
        %v2367 = vpack.c.b16 %v2319, %v2317
        %v2368 = vpack.c.b16 %v2322, %v2320
        %v2369 = vpack.c.b16 %v2323, %v2321
        %v2370 = vpack.c.b16 %v2326, %v2324
        %v2371 = vpack.c.b16 %v2327, %v2325
        %v2372 = vpack.c.b16 %v2330, %v2328
        %v2373 = vpack.c.b16 %v2331, %v2329
        %v2374 = vpack.c.b16 %v2334, %v2332
        %v2375 = vpack.c.b16 %v2335, %v2333
        %v2376 = vpack.c.b16 %v2338, %v2336
        %v2377 = vpack.c.b16 %v2339, %v2337
        %v2378 = vpack.c.b16 %v2342, %v2340
        %v2379 = vpack.c.b16 %v2343, %v2341
        %v2380 = vpack.c.b16 %v2346, %v2344
        %v2381 = vpack.c.b16 %v2347, %v2345
        %v2382 = vpack.c.b16 %v2350, %v2348
        %v2383 = vpack.c.b16 %v2351, %v2349
        %2416 = vmatprep.subr.bf16.mxu0 %v2353
        %2417 = vmatpush1.bf16.msra.mxu0 %v2352
        %2418 = vmatprep.subr.bf16.mxu0 %v2355
        %2419 = vmatpush1.bf16.msra.mxu0 %v2354
        %2420 = vmatprep.subr.bf16.mxu0 %v2357
        %2421 = vmatpush1.bf16.msra.mxu0 %v2356
        %2422 = vmatprep.subr.bf16.mxu0 %v2359
        %2423 = vmatpush1.bf16.msra.mxu0 %v2358
        %2424 = vmatprep.subr.bf16.mxu0 %v2361
        %2425 = vmatpush1.bf16.msra.mxu0 %v2360
        %2426 = vmatprep.subr.bf16.mxu0 %v2363
        %2427 = vmatpush1.bf16.msra.mxu0 %v2362
        %2428 = vmatprep.subr.bf16.mxu0 %v2365
        %2429 = vmatpush1.bf16.msra.mxu0 %v2364
        %2430 = vmatprep.subr.bf16.mxu0 %v2367
        %2431 = vmatpush1.bf16.msra.mxu0 %v2366
        %2432 = vmatprep.subr.bf16.mxu0 %v2369
        %2433 = vmatpush1.bf16.msra.mxu0 %v2368
        %2434 = vmatprep.subr.bf16.mxu0 %v2371
        %2435 = vmatpush1.bf16.msra.mxu0 %v2370
        %2436 = vmatprep.subr.bf16.mxu0 %v2373
        %2437 = vmatpush1.bf16.msra.mxu0 %v2372
        %2438 = vmatprep.subr.bf16.mxu0 %v2375
        %2439 = vmatpush1.bf16.msra.mxu0 %v2374
        %2440 = vmatprep.subr.bf16.mxu0 %v2377
        %2441 = vmatpush1.bf16.msra.mxu0 %v2376
        %2442 = vmatprep.subr.bf16.mxu0 %v2379
        %2443 = vmatpush1.bf16.msra.mxu0 %v2378
        %2444 = vmatprep.subr.bf16.mxu0 %v2381
        %2445 = vmatpush1.bf16.msra.mxu0 %v2380
        %2446 = vmatprep.subr.bf16.mxu0 %v2383
        %2447 = vmatpush1.bf16.msra.mxu0 %v2382
        %2448 = vmatprep.mubr.bf16.mxu0 %v2161
        %2449 = vmatmul.mubr.bf16.gmra.mrb[0].mxu0 %v2160
        %v2450 = vpop.f32.mrb[0].mxu0
        %v2451 = vadd.f32 0.0, %v2450
        %v2452 = vpop.f32.mrb[0].mxu0
        %v2453 = vadd.f32 0.0, %v2452
        %v2454 = vpop.f32.mrb[0].mxu0
        %v2455 = vadd.f32 0.0, %v2454
        %v2456 = vpop.f32.mrb[0].mxu0
        %v2457 = vadd.f32 0.0, %v2456
        %2458 = vmatprep.mubr.bf16.mxu0 %v2163
        %2459 = vmatmul.mubr.bf16.gmra.mrb[0].mxu0 %v2162
        %v2460 = vpop.f32.mrb[0].mxu0
        %v2461 = vadd.f32 0.0, %v2460
        %v2462 = vpop.f32.mrb[0].mxu0
        %v2463 = vadd.f32 0.0, %v2462
        %v2464 = vpop.f32.mrb[0].mxu0
        %v2465 = vadd.f32 0.0, %v2464
        %v2466 = vpop.f32.mrb[0].mxu0
        %v2467 = vadd.f32 0.0, %v2466
        %2468 = vmatprep.mubr.bf16.mxu0 %v2165
        %2469 = vmatmul.mubr.bf16.gmra.mrb[0].mxu0 %v2164
        %v2470 = vpop.f32.mrb[0].mxu0
        %v2471 = vadd.f32 0.0, %v2470
        %v2472 = vpop.f32.mrb[0].mxu0
        %v2473 = vadd.f32 0.0, %v2472
        %v2474 = vpop.f32.mrb[0].mxu0
        %v2475 = vadd.f32 0.0, %v2474
        %v2476 = vpop.f32.mrb[0].mxu0
        %v2477 = vadd.f32 0.0, %v2476
        %2478 = vmatprep.mubr.bf16.mxu0 %v2167
        %2479 = vmatmul.mubr.bf16.gmra.mrb[0].mxu0 %v2166
        %v2480 = vpop.f32.mrb[0].mxu0
        %v2481 = vadd.f32 0.0, %v2480
        %v2482 = vpop.f32.mrb[0].mxu0
        %v2483 = vadd.f32 0.0, %v2482
        %v2484 = vpop.f32.mrb[0].mxu0
        %v2485 = vadd.f32 0.0, %v2484
        %v2486 = vpop.f32.mrb[0].mxu0
        %v2487 = vadd.f32 0.0, %v2486
        %2488 = vmatprep.mubr.bf16.mxu0 %v2169
        %2489 = vmatmul.mubr.bf16.gmra.mrb[0].mxu0 %v2168
        %v2490 = vpop.f32.mrb[0].mxu0
        %v2491 = vadd.f32 0.0, %v2490
        %v2492 = vpop.f32.mrb[0].mxu0
        %v2493 = vadd.f32 0.0, %v2492
        %v2494 = vpop.f32.mrb[0].mxu0
        %v2495 = vadd.f32 0.0, %v2494
        %v2496 = vpop.f32.mrb[0].mxu0
        %v2497 = vadd.f32 0.0, %v2496
        %2498 = vmatprep.mubr.bf16.mxu0 %v2171
        %2499 = vmatmul.mubr.bf16.gmra.mrb[0].mxu0 %v2170
        %v2500 = vpop.f32.mrb[0].mxu0
        %v2501 = vadd.f32 0.0, %v2500
        %v2502 = vpop.f32.mrb[0].mxu0
        %v2503 = vadd.f32 0.0, %v2502
        %v2504 = vpop.f32.mrb[0].mxu0
        %v2505 = vadd.f32 0.0, %v2504
        %v2506 = vpop.f32.mrb[0].mxu0
        %v2507 = vadd.f32 0.0, %v2506
        %2508 = vmatprep.mubr.bf16.mxu0 %v2173
        %2509 = vmatmul.mubr.bf16.gmra.mrb[0].mxu0 %v2172
        %v2510 = vpop.f32.mrb[0].mxu0
        %v2511 = vadd.f32 0.0, %v2510
        %v2512 = vpop.f32.mrb[0].mxu0
        %v2513 = vadd.f32 0.0, %v2512
        %v2514 = vpop.f32.mrb[0].mxu0
        %v2515 = vadd.f32 0.0, %v2514
        %v2516 = vpop.f32.mrb[0].mxu0
        %v2517 = vadd.f32 0.0, %v2516
        %2518 = vmatprep.mubr.bf16.mxu0 %v2175
        %2519 = vmatmul.mubr.bf16.gmra.mrb[0].mxu0 %v2174
        %v2520 = vpop.f32.mrb[0].mxu0
        %v2521 = vadd.f32 0.0, %v2520
        %v2522 = vpop.f32.mrb[0].mxu0
        %v2523 = vadd.f32 0.0, %v2522
        %v2524 = vpop.f32.mrb[0].mxu0
        %v2525 = vadd.f32 0.0, %v2524
        %v2526 = vpop.f32.mrb[0].mxu0
        %v2527 = vadd.f32 0.0, %v2526
        %2528 = vmatprep.mubr.bf16.mxu0 %v2177
        %2529 = vmatmul.mubr.bf16.gmra.mrb[0].mxu0 %v2176
        %v2530 = vpop.f32.mrb[0].mxu0
        %v2531 = vadd.f32 0.0, %v2530
        %v2532 = vpop.f32.mrb[0].mxu0
        %v2533 = vadd.f32 0.0, %v2532
        %v2534 = vpop.f32.mrb[0].mxu0
        %v2535 = vadd.f32 0.0, %v2534
        %v2536 = vpop.f32.mrb[0].mxu0
        %v2537 = vadd.f32 0.0, %v2536
        %2538 = vmatprep.mubr.bf16.mxu0 %v2179
        %2539 = vmatmul.mubr.bf16.gmra.mrb[0].mxu0 %v2178
        %v2540 = vpop.f32.mrb[0].mxu0
        %v2541 = vadd.f32 0.0, %v2540
        %v2542 = vpop.f32.mrb[0].mxu0
        %v2543 = vadd.f32 0.0, %v2542
        %v2544 = vpop.f32.mrb[0].mxu0
        %v2545 = vadd.f32 0.0, %v2544
        %v2546 = vpop.f32.mrb[0].mxu0
        %v2547 = vadd.f32 0.0, %v2546
        %2548 = vmatprep.mubr.bf16.mxu0 %v2181
        %2549 = vmatmul.mubr.bf16.gmra.mrb[0].mxu0 %v2180
        %v2550 = vpop.f32.mrb[0].mxu0
        %v2551 = vadd.f32 0.0, %v2550
        %v2552 = vpop.f32.mrb[0].mxu0
        %v2553 = vadd.f32 0.0, %v2552
        %v2554 = vpop.f32.mrb[0].mxu0
        %v2555 = vadd.f32 0.0, %v2554
        %v2556 = vpop.f32.mrb[0].mxu0
        %v2557 = vadd.f32 0.0, %v2556
        %2558 = vmatprep.mubr.bf16.mxu0 %v2183
        %2559 = vmatmul.mubr.bf16.gmra.mrb[0].mxu0 %v2182
        %v2560 = vpop.f32.mrb[0].mxu0
        %v2561 = vadd.f32 0.0, %v2560
        %v2562 = vpop.f32.mrb[0].mxu0
        %v2563 = vadd.f32 0.0, %v2562
        %v2564 = vpop.f32.mrb[0].mxu0
        %v2565 = vadd.f32 0.0, %v2564
        %v2566 = vpop.f32.mrb[0].mxu0
        %v2567 = vadd.f32 0.0, %v2566
        %2568 = vmatprep.mubr.bf16.mxu0 %v2185
        %2569 = vmatmul.mubr.bf16.gmra.mrb[0].mxu0 %v2184
        %v2570 = vpop.f32.mrb[0].mxu0
        %v2571 = vadd.f32 0.0, %v2570
        %v2572 = vpop.f32.mrb[0].mxu0
        %v2573 = vadd.f32 0.0, %v2572
        %v2574 = vpop.f32.mrb[0].mxu0
        %v2575 = vadd.f32 0.0, %v2574
        %v2576 = vpop.f32.mrb[0].mxu0
        %v2577 = vadd.f32 0.0, %v2576
        %2578 = vmatprep.mubr.bf16.mxu0 %v2187
        %2579 = vmatmul.mubr.bf16.gmra.mrb[0].mxu0 %v2186
        %v2580 = vpop.f32.mrb[0].mxu0
        %v2581 = vadd.f32 0.0, %v2580
        %v2582 = vpop.f32.mrb[0].mxu0
        %v2583 = vadd.f32 0.0, %v2582
        %v2584 = vpop.f32.mrb[0].mxu0
        %v2585 = vadd.f32 0.0, %v2584
        %v2586 = vpop.f32.mrb[0].mxu0
        %v2587 = vadd.f32 0.0, %v2586
        %2588 = vmatprep.mubr.bf16.mxu0 %v2189
        %2589 = vmatmul.mubr.bf16.gmra.mrb[0].mxu0 %v2188
        %v2590 = vpop.f32.mrb[0].mxu0
        %v2591 = vadd.f32 0.0, %v2590
        %v2592 = vpop.f32.mrb[0].mxu0
        %v2593 = vadd.f32 0.0, %v2592
        %v2594 = vpop.f32.mrb[0].mxu0
        %v2595 = vadd.f32 0.0, %v2594
        %v2596 = vpop.f32.mrb[0].mxu0
        %v2597 = vadd.f32 0.0, %v2596
        %2598 = vmatprep.mubr.bf16.mxu0 %v2191
        %2599 = vmatmul.mubr.bf16.gmra.mrb[0].mxu0 %v2190
        %v2600 = vpop.f32.mrb[0].mxu0
        %v2601 = vadd.f32 0.0, %v2600
        %v2602 = vpop.f32.mrb[0].mxu0
        %v2603 = vadd.f32 0.0, %v2602
        %v2604 = vpop.f32.mrb[0].mxu0
        %v2605 = vadd.f32 0.0, %v2604
        %v2606 = vpop.f32.mrb[0].mxu0
        %v2607 = vadd.f32 0.0, %v2606
        %2608 = vmatprep.mubr.bf16.mxu0 %v2193
        %2609 = vmatmul.mubr.bf16.gmra.mrb[0].mxu0 %v2192
        %v2610 = vpop.f32.mrb[0].mxu0
        %v2611 = vadd.f32 0.0, %v2610
        %v2612 = vpop.f32.mrb[0].mxu0
        %v2613 = vadd.f32 0.0, %v2612
        %v2614 = vpop.f32.mrb[0].mxu0
        %v2615 = vadd.f32 0.0, %v2614
        %v2616 = vpop.f32.mrb[0].mxu0
        %v2617 = vadd.f32 0.0, %v2616
        %2618 = vmatprep.mubr.bf16.mxu0 %v2195
        %2619 = vmatmul.mubr.bf16.gmra.mrb[0].mxu0 %v2194
        %v2620 = vpop.f32.mrb[0].mxu0
        %v2621 = vadd.f32 0.0, %v2620
        %v2622 = vpop.f32.mrb[0].mxu0
        %v2623 = vadd.f32 0.0, %v2622
        %v2624 = vpop.f32.mrb[0].mxu0
        %v2625 = vadd.f32 0.0, %v2624
        %v2626 = vpop.f32.mrb[0].mxu0
        %v2627 = vadd.f32 0.0, %v2626
        %2628 = vmatprep.mubr.bf16.mxu0 %v2197
        %2629 = vmatmul.mubr.bf16.gmra.mrb[0].mxu0 %v2196
        %v2630 = vpop.f32.mrb[0].mxu0
        %v2631 = vadd.f32 0.0, %v2630
        %v2632 = vpop.f32.mrb[0].mxu0
        %v2633 = vadd.f32 0.0, %v2632
        %v2634 = vpop.f32.mrb[0].mxu0
        %v2635 = vadd.f32 0.0, %v2634
        %v2636 = vpop.f32.mrb[0].mxu0
        %v2637 = vadd.f32 0.0, %v2636
        %2638 = vmatprep.mubr.bf16.mxu0 %v2199
        %2639 = vmatmul.mubr.bf16.gmra.mrb[0].mxu0 %v2198
        %v2640 = vpop.f32.mrb[0].mxu0
        %v2641 = vadd.f32 0.0, %v2640
        %v2642 = vpop.f32.mrb[0].mxu0
        %v2643 = vadd.f32 0.0, %v2642
        %v2644 = vpop.f32.mrb[0].mxu0
        %v2645 = vadd.f32 0.0, %v2644
        %v2646 = vpop.f32.mrb[0].mxu0
        %v2647 = vadd.f32 0.0, %v2646
        %2648 = vmatprep.mubr.bf16.mxu0 %v2201
        %2649 = vmatmul.mubr.bf16.gmra.mrb[0].mxu0 %v2200
        %v2650 = vpop.f32.mrb[0].mxu0
        %v2651 = vadd.f32 0.0, %v2650
        %v2652 = vpop.f32.mrb[0].mxu0
        %v2653 = vadd.f32 0.0, %v2652
        %v2654 = vpop.f32.mrb[0].mxu0
        %v2655 = vadd.f32 0.0, %v2654
        %v2656 = vpop.f32.mrb[0].mxu0
        %v2657 = vadd.f32 0.0, %v2656
        %2658 = vmatprep.mubr.bf16.mxu0 %v2203
        %2659 = vmatmul.mubr.bf16.gmra.mrb[0].mxu0 %v2202
        %v2660 = vpop.f32.mrb[0].mxu0
        %v2661 = vadd.f32 0.0, %v2660
        %v2662 = vpop.f32.mrb[0].mxu0
        %v2663 = vadd.f32 0.0, %v2662
        %v2664 = vpop.f32.mrb[0].mxu0
        %v2665 = vadd.f32 0.0, %v2664
        %v2666 = vpop.f32.mrb[0].mxu0
        %v2667 = vadd.f32 0.0, %v2666
        %2668 = vmatprep.mubr.bf16.mxu0 %v2205
        %2669 = vmatmul.mubr.bf16.gmra.mrb[0].mxu0 %v2204
        %v2670 = vpop.f32.mrb[0].mxu0
        %v2671 = vadd.f32 0.0, %v2670
        %v2672 = vpop.f32.mrb[0].mxu0
        %v2673 = vadd.f32 0.0, %v2672
        %v2674 = vpop.f32.mrb[0].mxu0
        %v2675 = vadd.f32 0.0, %v2674
        %v2676 = vpop.f32.mrb[0].mxu0
        %v2677 = vadd.f32 0.0, %v2676
        %2678 = vmatprep.mubr.bf16.mxu0 %v2207
        %2679 = vmatmul.mubr.bf16.gmra.mrb[0].mxu0 %v2206
        %v2680 = vpop.f32.mrb[0].mxu0
        %v2681 = vadd.f32 0.0, %v2680
        %v2682 = vpop.f32.mrb[0].mxu0
        %v2683 = vadd.f32 0.0, %v2682
        %v2684 = vpop.f32.mrb[0].mxu0
        %v2685 = vadd.f32 0.0, %v2684
        %v2686 = vpop.f32.mrb[0].mxu0
        %v2687 = vadd.f32 0.0, %v2686
        %2688 = vmatprep.mubr.bf16.mxu0 %v2209
        %2689 = vmatmul.mubr.bf16.gmra.mrb[0].mxu0 %v2208
        %v2690 = vpop.f32.mrb[0].mxu0
        %v2691 = vadd.f32 0.0, %v2690
        %v2692 = vpop.f32.mrb[0].mxu0
        %v2693 = vadd.f32 0.0, %v2692
        %v2694 = vpop.f32.mrb[0].mxu0
        %v2695 = vadd.f32 0.0, %v2694
        %v2696 = vpop.f32.mrb[0].mxu0
        %v2697 = vadd.f32 0.0, %v2696
        %2698 = vmatprep.mubr.bf16.mxu0 %v2211
        %2699 = vmatmul.mubr.bf16.gmra.mrb[0].mxu0 %v2210
        %v2700 = vpop.f32.mrb[0].mxu0
        %v2701 = vadd.f32 0.0, %v2700
        %v2702 = vpop.f32.mrb[0].mxu0
        %v2703 = vadd.f32 0.0, %v2702
        %v2704 = vpop.f32.mrb[0].mxu0
        %v2705 = vadd.f32 0.0, %v2704
        %v2706 = vpop.f32.mrb[0].mxu0
        %v2707 = vadd.f32 0.0, %v2706
        %2708 = vmatprep.mubr.bf16.mxu0 %v2213
        %2709 = vmatmul.mubr.bf16.gmra.mrb[0].mxu0 %v2212
        %v2710 = vpop.f32.mrb[0].mxu0
        %v2711 = vadd.f32 0.0, %v2710
        %v2712 = vpop.f32.mrb[0].mxu0
        %v2713 = vadd.f32 0.0, %v2712
        %v2714 = vpop.f32.mrb[0].mxu0
        %v2715 = vadd.f32 0.0, %v2714
        %v2716 = vpop.f32.mrb[0].mxu0
        %v2717 = vadd.f32 0.0, %v2716
        %2718 = vmatprep.mubr.bf16.mxu0 %v2215
        %2719 = vmatmul.mubr.bf16.gmra.mrb[0].mxu0 %v2214
        %v2720 = vpop.f32.mrb[0].mxu0
        %v2721 = vadd.f32 0.0, %v2720
        %v2722 = vpop.f32.mrb[0].mxu0
        %v2723 = vadd.f32 0.0, %v2722
        %v2724 = vpop.f32.mrb[0].mxu0
        %v2725 = vadd.f32 0.0, %v2724
        %v2726 = vpop.f32.mrb[0].mxu0
        %v2727 = vadd.f32 0.0, %v2726
        %2728 = vmatprep.mubr.bf16.mxu0 %v2217
        %2729 = vmatmul.mubr.bf16.gmra.mrb[0].mxu0 %v2216
        %v2730 = vpop.f32.mrb[0].mxu0
        %v2731 = vadd.f32 0.0, %v2730
        %v2732 = vpop.f32.mrb[0].mxu0
        %v2733 = vadd.f32 0.0, %v2732
        %v2734 = vpop.f32.mrb[0].mxu0
        %v2735 = vadd.f32 0.0, %v2734
        %v2736 = vpop.f32.mrb[0].mxu0
        %v2737 = vadd.f32 0.0, %v2736
        %2738 = vmatprep.mubr.bf16.mxu0 %v2219
        %2739 = vmatmul.mubr.bf16.gmra.mrb[0].mxu0 %v2218
        %v2740 = vpop.f32.mrb[0].mxu0
        %v2741 = vadd.f32 0.0, %v2740
        %v2742 = vpop.f32.mrb[0].mxu0
        %v2743 = vadd.f32 0.0, %v2742
        %v2744 = vpop.f32.mrb[0].mxu0
        %v2745 = vadd.f32 0.0, %v2744
        %v2746 = vpop.f32.mrb[0].mxu0
        %v2747 = vadd.f32 0.0, %v2746
        %2748 = vmatprep.mubr.bf16.mxu0 %v2221
        %2749 = vmatmul.mubr.bf16.gmra.mrb[0].mxu0 %v2220
        %v2750 = vpop.f32.mrb[0].mxu0
        %v2751 = vadd.f32 0.0, %v2750
        %v2752 = vpop.f32.mrb[0].mxu0
        %v2753 = vadd.f32 0.0, %v2752
        %v2754 = vpop.f32.mrb[0].mxu0
        %v2755 = vadd.f32 0.0, %v2754
        %v2756 = vpop.f32.mrb[0].mxu0
        %v2757 = vadd.f32 0.0, %v2756
        %2758 = vmatprep.mubr.bf16.mxu0 %v2223
        %2759 = vmatmul.mubr.bf16.gmra.mrb[0].mxu0 %v2222
        %v2760 = vpop.f32.mrb[0].mxu0
        %v2761 = vadd.f32 0.0, %v2760
        %v2762 = vpop.f32.mrb[0].mxu0
        %v2763 = vadd.f32 0.0, %v2762
        %v2764 = vpop.f32.mrb[0].mxu0
        %v2765 = vadd.f32 0.0, %v2764
        %v2766 = vpop.f32.mrb[0].mxu0
        %v2767 = vadd.f32 0.0, %v2766
        %2768 = vdwg.mxu0
        %v2769 = vmul.f32 %v2451, %v2611
        %v2770 = vmul.f32 %v2455, %v2615
        %v2771 = vmul.f32 %v2461, %v2621
        %v2772 = vmul.f32 %v2465, %v2625
        %v2773 = vmul.f32 %v2471, %v2631
        %v2774 = vmul.f32 %v2475, %v2635
        %v2775 = vmul.f32 %v2481, %v2641
        %v2776 = vmul.f32 %v2485, %v2645
        %v2777 = vmul.f32 %v2491, %v2651
        %v2778 = vmul.f32 %v2495, %v2655
        %v2779 = vmul.f32 %v2501, %v2661
        %v2780 = vmul.f32 %v2505, %v2665
        %v2781 = vmul.f32 %v2511, %v2671
        %v2782 = vmul.f32 %v2515, %v2675
        %v2783 = vmul.f32 %v2521, %v2681
        %v2784 = vmul.f32 %v2525, %v2685
        %v2785 = vmul.f32 %v2531, %v2691
        %v2786 = vmul.f32 %v2535, %v2695
        %v2787 = vmul.f32 %v2541, %v2701
        %v2788 = vmul.f32 %v2545, %v2705
        %v2789 = vmul.f32 %v2551, %v2711
        %v2790 = vmul.f32 %v2555, %v2715
        %v2791 = vmul.f32 %v2561, %v2721
        %v2792 = vmul.f32 %v2565, %v2725
        %v2793 = vmul.f32 %v2571, %v2731
        %v2794 = vmul.f32 %v2575, %v2735
        %v2795 = vmul.f32 %v2581, %v2741
        %v2796 = vmul.f32 %v2585, %v2745
        %v2797 = vmul.f32 %v2591, %v2751
        %v2798 = vmul.f32 %v2595, %v2755
        %v2799 = vmul.f32 %v2601, %v2761
        %v2800 = vmul.f32 %v2605, %v2765
        %v2801 = vmul.f32 %v2453, %v2613
        %v2802 = vmul.f32 %v2457, %v2617
        %v2803 = vmul.f32 %v2463, %v2623
        %v2804 = vmul.f32 %v2467, %v2627
        %v2805 = vmul.f32 %v2473, %v2633
        %v2806 = vmul.f32 %v2477, %v2637
        %v2807 = vmul.f32 %v2483, %v2643
        %v2808 = vmul.f32 %v2487, %v2647
        %v2809 = vmul.f32 %v2493, %v2653
        %v2810 = vmul.f32 %v2497, %v2657
        %v2811 = vmul.f32 %v2503, %v2663
        %v2812 = vmul.f32 %v2507, %v2667
        %v2813 = vmul.f32 %v2513, %v2673
        %v2814 = vmul.f32 %v2517, %v2677
        %v2815 = vmul.f32 %v2523, %v2683
        %v2816 = vmul.f32 %v2527, %v2687
        %v2817 = vmul.f32 %v2533, %v2693
        %v2818 = vmul.f32 %v2537, %v2697
        %v2819 = vmul.f32 %v2543, %v2703
        %v2820 = vmul.f32 %v2547, %v2707
        %v2821 = vmul.f32 %v2553, %v2713
        %v2822 = vmul.f32 %v2557, %v2717
        %v2823 = vmul.f32 %v2563, %v2723
        %v2824 = vmul.f32 %v2567, %v2727
        %v2825 = vmul.f32 %v2573, %v2733
        %v2826 = vmul.f32 %v2577, %v2737
        %v2827 = vmul.f32 %v2583, %v2743
        %v2828 = vmul.f32 %v2587, %v2747
        %v2829 = vmul.f32 %v2593, %v2753
        %v2830 = vmul.f32 %v2597, %v2757
        %v2831 = vmul.f32 %v2603, %v2763
        %v2832 = vmul.f32 %v2607, %v2767
        %v2833 = vsub.f32 %v2769, %v2801
        %v2834 = vsub.f32 %v2770, %v2802
        %v2835 = vsub.f32 %v2771, %v2803
        %v2836 = vsub.f32 %v2772, %v2804
        %v2837 = vsub.f32 %v2773, %v2805
        %v2838 = vsub.f32 %v2774, %v2806
        %v2839 = vsub.f32 %v2775, %v2807
        %v2840 = vsub.f32 %v2776, %v2808
        %v2841 = vsub.f32 %v2777, %v2809
        %v2842 = vsub.f32 %v2778, %v2810
        %v2843 = vsub.f32 %v2779, %v2811
        %v2844 = vsub.f32 %v2780, %v2812
        %v2845 = vsub.f32 %v2781, %v2813
        %v2846 = vsub.f32 %v2782, %v2814
        %v2847 = vsub.f32 %v2783, %v2815
        %v2848 = vsub.f32 %v2784, %v2816
        %v2849 = vsub.f32 %v2785, %v2817
        %v2850 = vsub.f32 %v2786, %v2818
        %v2851 = vsub.f32 %v2787, %v2819
        %v2852 = vsub.f32 %v2788, %v2820
        %v2853 = vsub.f32 %v2789, %v2821
        %v2854 = vsub.f32 %v2790, %v2822
        %v2855 = vsub.f32 %v2791, %v2823
        %v2856 = vsub.f32 %v2792, %v2824
        %v2857 = vsub.f32 %v2793, %v2825
        %v2858 = vsub.f32 %v2794, %v2826
        %v2859 = vsub.f32 %v2795, %v2827
        %v2860 = vsub.f32 %v2796, %v2828
        %v2861 = vsub.f32 %v2797, %v2829
        %v2862 = vsub.f32 %v2798, %v2830
        %v2863 = vsub.f32 %v2799, %v2831
        %v2864 = vsub.f32 %v2800, %v2832
        %v2865 = vmul.f32 %v2451, %v2613
        %v2866 = vmul.f32 %v2455, %v2617
        %v2867 = vmul.f32 %v2461, %v2623
        %v2868 = vmul.f32 %v2465, %v2627
        %v2869 = vmul.f32 %v2471, %v2633
        %v2870 = vmul.f32 %v2475, %v2637
        %v2871 = vmul.f32 %v2481, %v2643
        %v2872 = vmul.f32 %v2485, %v2647
        %v2873 = vmul.f32 %v2491, %v2653
        %v2874 = vmul.f32 %v2495, %v2657
        %v2875 = vmul.f32 %v2501, %v2663
        %v2876 = vmul.f32 %v2505, %v2667
        %v2877 = vmul.f32 %v2511, %v2673
        %v2878 = vmul.f32 %v2515, %v2677
        %v2879 = vmul.f32 %v2521, %v2683
        %v2880 = vmul.f32 %v2525, %v2687
        %v2881 = vmul.f32 %v2531, %v2693
        %v2882 = vmul.f32 %v2535, %v2697
        %v2883 = vmul.f32 %v2541, %v2703
        %v2884 = vmul.f32 %v2545, %v2707
        %v2885 = vmul.f32 %v2551, %v2713
        %v2886 = vmul.f32 %v2555, %v2717
        %v2887 = vmul.f32 %v2561, %v2723
        %v2888 = vmul.f32 %v2565, %v2727
        %v2889 = vmul.f32 %v2571, %v2733
        %v2890 = vmul.f32 %v2575, %v2737
        %v2891 = vmul.f32 %v2581, %v2743
        %v2892 = vmul.f32 %v2585, %v2747
        %v2893 = vmul.f32 %v2591, %v2753
        %v2894 = vmul.f32 %v2595, %v2757
        %v2895 = vmul.f32 %v2601, %v2763
        %v2896 = vmul.f32 %v2605, %v2767
        %v2897 = vmul.f32 %v2453, %v2611
        %v2898 = vmul.f32 %v2457, %v2615
        %v2899 = vmul.f32 %v2463, %v2621
        %v2900 = vmul.f32 %v2467, %v2625
        %v2901 = vmul.f32 %v2473, %v2631
        %v2902 = vmul.f32 %v2477, %v2635
        %v2903 = vmul.f32 %v2483, %v2641
        %v2904 = vmul.f32 %v2487, %v2645
        %v2905 = vmul.f32 %v2493, %v2651
        %v2906 = vmul.f32 %v2497, %v2655
        %v2907 = vmul.f32 %v2503, %v2661
        %v2908 = vmul.f32 %v2507, %v2665
        %v2909 = vmul.f32 %v2513, %v2671
        %v2910 = vmul.f32 %v2517, %v2675
        %v2911 = vmul.f32 %v2523, %v2681
        %v2912 = vmul.f32 %v2527, %v2685
        %v2913 = vmul.f32 %v2533, %v2691
        %v2914 = vmul.f32 %v2537, %v2695
        %v2915 = vmul.f32 %v2543, %v2701
        %v2916 = vmul.f32 %v2547, %v2705
        %v2917 = vmul.f32 %v2553, %v2711
        %v2918 = vmul.f32 %v2557, %v2715
        %v2919 = vmul.f32 %v2563, %v2721
        %v2920 = vmul.f32 %v2567, %v2725
        %v2921 = vmul.f32 %v2573, %v2731
        %v2922 = vmul.f32 %v2577, %v2735
        %v2923 = vmul.f32 %v2583, %v2741
        %v2924 = vmul.f32 %v2587, %v2745
        %v2925 = vmul.f32 %v2593, %v2751
        %v2926 = vmul.f32 %v2597, %v2755
        %v2927 = vmul.f32 %v2603, %v2761
        %v2928 = vmul.f32 %v2607, %v2765
        %v2929 = vadd.f32 %v2865, %v2897
        %v2930 = vadd.f32 %v2866, %v2898
        %v2931 = vadd.f32 %v2867, %v2899
        %v2932 = vadd.f32 %v2868, %v2900
        %v2933 = vadd.f32 %v2869, %v2901
        %v2934 = vadd.f32 %v2870, %v2902
        %v2935 = vadd.f32 %v2871, %v2903
        %v2936 = vadd.f32 %v2872, %v2904
        %v2937 = vadd.f32 %v2873, %v2905
        %v2938 = vadd.f32 %v2874, %v2906
        %v2939 = vadd.f32 %v2875, %v2907
        %v2940 = vadd.f32 %v2876, %v2908
        %v2941 = vadd.f32 %v2877, %v2909
        %v2942 = vadd.f32 %v2878, %v2910
        %v2943 = vadd.f32 %v2879, %v2911
        %v2944 = vadd.f32 %v2880, %v2912
        %v2945 = vadd.f32 %v2881, %v2913
        %v2946 = vadd.f32 %v2882, %v2914
        %v2947 = vadd.f32 %v2883, %v2915
        %v2948 = vadd.f32 %v2884, %v2916
        %v2949 = vadd.f32 %v2885, %v2917
        %v2950 = vadd.f32 %v2886, %v2918
        %v2951 = vadd.f32 %v2887, %v2919
        %v2952 = vadd.f32 %v2888, %v2920
        %v2953 = vadd.f32 %v2889, %v2921
        %v2954 = vadd.f32 %v2890, %v2922
        %v2955 = vadd.f32 %v2891, %v2923
        %v2956 = vadd.f32 %v2892, %v2924
        %v2957 = vadd.f32 %v2893, %v2925
        %v2958 = vadd.f32 %v2894, %v2926
        %v2959 = vadd.f32 %v2895, %v2927
        %v2960 = vadd.f32 %v2896, %v2928
        %v2961 = vld [vmem:[#allocation3] sm:$0xff]
        %v2962 = vld [vmem:[#allocation3 + $0x8] sm:$0xff]
        %v2963 = vld [vmem:[#allocation3 + $0x10] sm:$0xff]
        %v2964 = vld [vmem:[#allocation3 + $0x18] sm:$0xff]
        %v2965 = vld [vmem:[#allocation3 + $0x20] sm:$0xff]
        %v2966 = vld [vmem:[#allocation3 + $0x28] sm:$0xff]
        %v2967 = vld [vmem:[#allocation3 + $0x30] sm:$0xff]
        %v2968 = vld [vmem:[#allocation3 + $0x38] sm:$0xff]
        %v2969 = vld [vmem:[#allocation3 + $0x40] sm:$0xff]
        %v2970 = vld [vmem:[#allocation3 + $0x48] sm:$0xff]
        %v2971 = vld [vmem:[#allocation3 + $0x50] sm:$0xff]
        %v2972 = vld [vmem:[#allocation3 + $0x58] sm:$0xff]
        %v2973 = vld [vmem:[#allocation3 + $0x60] sm:$0xff]
        %v2974 = vld [vmem:[#allocation3 + $0x68] sm:$0xff]
        %v2975 = vld [vmem:[#allocation3 + $0x70] sm:$0xff]
        %v2976 = vld [vmem:[#allocation3 + $0x78] sm:$0xff]
        %v2977 = vld [vmem:[#allocation3 + $0x80] sm:$0xff]
        %v2978 = vld [vmem:[#allocation3 + $0x88] sm:$0xff]
        %v2979 = vld [vmem:[#allocation3 + $0x90] sm:$0xff]
        %v2980 = vld [vmem:[#allocation3 + $0x98] sm:$0xff]
        %v2981 = vld [vmem:[#allocation3 + $0xa0] sm:$0xff]
        %v2982 = vld [vmem:[#allocation3 + $0xa8] sm:$0xff]
        %v2983 = vld [vmem:[#allocation3 + $0xb0] sm:$0xff]
        %v2984 = vld [vmem:[#allocation3 + $0xb8] sm:$0xff]
        %v2985 = vld [vmem:[#allocation3 + $0xc0] sm:$0xff]
        %v2986 = vld [vmem:[#allocation3 + $0xc8] sm:$0xff]
        %v2987 = vld [vmem:[#allocation3 + $0xd0] sm:$0xff]
        %v2988 = vld [vmem:[#allocation3 + $0xd8] sm:$0xff]
        %v2989 = vld [vmem:[#allocation3 + $0xe0] sm:$0xff]
        %v2990 = vld [vmem:[#allocation3 + $0xe8] sm:$0xff]
        %v2991 = vld [vmem:[#allocation3 + $0xf0] sm:$0xff]
        %v2992 = vld [vmem:[#allocation3 + $0xf8] sm:$0xff]
        %v2993 = vld [vmem:[#allocation3 + $0x100] sm:$0xff]
        %v2994 = vld [vmem:[#allocation3 + $0x108] sm:$0xff]
        %v2995 = vld [vmem:[#allocation3 + $0x110] sm:$0xff]
        %v2996 = vld [vmem:[#allocation3 + $0x118] sm:$0xff]
        %v2997 = vld [vmem:[#allocation3 + $0x120] sm:$0xff]
        %v2998 = vld [vmem:[#allocation3 + $0x128] sm:$0xff]
        %v2999 = vld [vmem:[#allocation3 + $0x130] sm:$0xff]
        %v3000 = vld [vmem:[#allocation3 + $0x138] sm:$0xff]
        %v3001 = vld [vmem:[#allocation3 + $0x140] sm:$0xff]
        %v3002 = vld [vmem:[#allocation3 + $0x148] sm:$0xff]
        %v3003 = vld [vmem:[#allocation3 + $0x150] sm:$0xff]
        %v3004 = vld [vmem:[#allocation3 + $0x158] sm:$0xff]
        %v3005 = vld [vmem:[#allocation3 + $0x160] sm:$0xff]
        %v3006 = vld [vmem:[#allocation3 + $0x168] sm:$0xff]
        %v3007 = vld [vmem:[#allocation3 + $0x170] sm:$0xff]
        %v3008 = vld [vmem:[#allocation3 + $0x178] sm:$0xff]
        %v3009 = vld [vmem:[#allocation3 + $0x180] sm:$0xff]
        %v3010 = vld [vmem:[#allocation3 + $0x188] sm:$0xff]
        %v3011 = vld [vmem:[#allocation3 + $0x190] sm:$0xff]
        %v3012 = vld [vmem:[#allocation3 + $0x198] sm:$0xff]
        %v3013 = vld [vmem:[#allocation3 + $0x1a0] sm:$0xff]
        %v3014 = vld [vmem:[#allocation3 + $0x1a8] sm:$0xff]
        %v3015 = vld [vmem:[#allocation3 + $0x1b0] sm:$0xff]
        %v3016 = vld [vmem:[#allocation3 + $0x1b8] sm:$0xff]
        %v3017 = vld [vmem:[#allocation3 + $0x1c0] sm:$0xff]
        %v3018 = vld [vmem:[#allocation3 + $0x1c8] sm:$0xff]
        %v3019 = vld [vmem:[#allocation3 + $0x1d0] sm:$0xff]
        %v3020 = vld [vmem:[#allocation3 + $0x1d8] sm:$0xff]
        %v3021 = vld [vmem:[#allocation3 + $0x1e0] sm:$0xff]
        %v3022 = vld [vmem:[#allocation3 + $0x1e8] sm:$0xff]
        %v3023 = vld [vmem:[#allocation3 + $0x1f0] sm:$0xff]
        %v3024 = vld [vmem:[#allocation3 + $0x1f8] sm:$0xff]
        %v3025 = vpack.c.bf16 %v2834, %v2833
        %v3026 = vpack.c.bf16 %v2836, %v2835
        %v3027 = vpack.c.bf16 %v2838, %v2837
        %v3028 = vpack.c.bf16 %v2840, %v2839
        %v3029 = vpack.c.bf16 %v2842, %v2841
        %v3030 = vpack.c.bf16 %v2844, %v2843
        %v3031 = vpack.c.bf16 %v2846, %v2845
        %v3032 = vpack.c.bf16 %v2848, %v2847
        %v3033 = vpack.c.bf16 %v2850, %v2849
        %v3034 = vpack.c.bf16 %v2852, %v2851
        %v3035 = vpack.c.bf16 %v2854, %v2853
        %v3036 = vpack.c.bf16 %v2856, %v2855
        %v3037 = vpack.c.bf16 %v2858, %v2857
        %v3038 = vpack.c.bf16 %v2860, %v2859
        %v3039 = vpack.c.bf16 %v2862, %v2861
        %v3040 = vpack.c.bf16 %v2864, %v2863
        %v3041 = vld [vmem:[%s331] sm:$0xff]
        %v3042 = vld [vmem:[%s331 + $0x8] sm:$0xff]
        %v3043 = vld [vmem:[%s331 + $0x10] sm:$0xff]
        %v3044 = vld [vmem:[%s331 + $0x18] sm:$0xff]
        %v3045 = vld [vmem:[%s331 + $0x20] sm:$0xff]
        %v3046 = vld [vmem:[%s331 + $0x28] sm:$0xff]
        %v3047 = vld [vmem:[%s331 + $0x30] sm:$0xff]
        %v3048 = vld [vmem:[%s331 + $0x38] sm:$0xff]
        %v3049 = vld [vmem:[%s331 + $0x40] sm:$0xff]
        %v3050 = vld [vmem:[%s331 + $0x48] sm:$0xff]
        %v3051 = vld [vmem:[%s331 + $0x50] sm:$0xff]
        %v3052 = vld [vmem:[%s331 + $0x58] sm:$0xff]
        %v3053 = vld [vmem:[%s331 + $0x60] sm:$0xff]
        %v3054 = vld [vmem:[%s331 + $0x68] sm:$0xff]
        %v3055 = vld [vmem:[%s331 + $0x70] sm:$0xff]
        %v3056 = vld [vmem:[%s331 + $0x78] sm:$0xff]
        %v3057 = vpack.c.bf16 %v2930, %v2929
        %v3058 = vpack.c.bf16 %v2932, %v2931
        %v3059 = vpack.c.bf16 %v2934, %v2933
        %v3060 = vpack.c.bf16 %v2936, %v2935
        %v3061 = vpack.c.bf16 %v2938, %v2937
        %v3062 = vpack.c.bf16 %v2940, %v2939
        %v3063 = vpack.c.bf16 %v2942, %v2941
        %v3064 = vpack.c.bf16 %v2944, %v2943
        %v3065 = vpack.c.bf16 %v2946, %v2945
        %v3066 = vpack.c.bf16 %v2948, %v2947
        %v3067 = vpack.c.bf16 %v2950, %v2949
        %v3068 = vpack.c.bf16 %v2952, %v2951
        %v3069 = vpack.c.bf16 %v2954, %v2953
        %v3070 = vpack.c.bf16 %v2956, %v2955
        %v3071 = vpack.c.bf16 %v2958, %v2957
        %v3072 = vpack.c.bf16 %v2960, %v2959
        %v3073 = vld [vmem:[%s331 + $0x80] sm:$0xff]
        %v3074 = vld [vmem:[%s331 + $0x88] sm:$0xff]
        %v3075 = vld [vmem:[%s331 + $0x90] sm:$0xff]
        %v3076 = vld [vmem:[%s331 + $0x98] sm:$0xff]
        %v3077 = vld [vmem:[%s331 + $0xa0] sm:$0xff]
        %v3078 = vld [vmem:[%s331 + $0xa8] sm:$0xff]
        %v3079 = vld [vmem:[%s331 + $0xb0] sm:$0xff]
        %v3080 = vld [vmem:[%s331 + $0xb8] sm:$0xff]
        %v3081 = vld [vmem:[%s331 + $0xc0] sm:$0xff]
        %v3082 = vld [vmem:[%s331 + $0xc8] sm:$0xff]
        %v3083 = vld [vmem:[%s331 + $0xd0] sm:$0xff]
        %v3084 = vld [vmem:[%s331 + $0xd8] sm:$0xff]
        %v3085 = vld [vmem:[%s331 + $0xe0] sm:$0xff]
        %v3086 = vld [vmem:[%s331 + $0xe8] sm:$0xff]
        %v3087 = vld [vmem:[%s331 + $0xf0] sm:$0xff]
        %v3088 = vld [vmem:[%s331 + $0xf8] sm:$0xff]
        %v3105 = vunpack.c.l.b16 %v3073
        %v3106 = vunpack.c.h.b16 %v3073
        %v3107 = vunpack.c.l.b16 %v3074
        %v3108 = vunpack.c.h.b16 %v3074
        %v3109 = vunpack.c.l.b16 %v3075
        %v3110 = vunpack.c.h.b16 %v3075
        %v3111 = vunpack.c.l.b16 %v3076
        %v3112 = vunpack.c.h.b16 %v3076
        %v3113 = vunpack.c.l.b16 %v3077
        %v3114 = vunpack.c.h.b16 %v3077
        %v3115 = vunpack.c.l.b16 %v3078
        %v3116 = vunpack.c.h.b16 %v3078
        %v3117 = vunpack.c.l.b16 %v3079
        %v3118 = vunpack.c.h.b16 %v3079
        %v3119 = vunpack.c.l.b16 %v3080
        %v3120 = vunpack.c.h.b16 %v3080
        %v3121 = vunpack.c.l.b16 %v3081
        %v3122 = vunpack.c.h.b16 %v3081
        %v3123 = vunpack.c.l.b16 %v3082
        %v3124 = vunpack.c.h.b16 %v3082
        %v3125 = vunpack.c.l.b16 %v3083
        %v3126 = vunpack.c.h.b16 %v3083
        %v3127 = vunpack.c.l.b16 %v3084
        %v3128 = vunpack.c.h.b16 %v3084
        %v3129 = vunpack.c.l.b16 %v3085
        %v3130 = vunpack.c.h.b16 %v3085
        %v3131 = vunpack.c.l.b16 %v3086
        %v3132 = vunpack.c.h.b16 %v3086
        %v3133 = vunpack.c.l.b16 %v3087
        %v3134 = vunpack.c.h.b16 %v3087
        %v3135 = vunpack.c.l.b16 %v3088
        %v3136 = vunpack.c.h.b16 %v3088
        %v3137 = vpack.c.b16 %v3107, %v3105
        %v3138 = vpack.c.b16 %v3108, %v3106
        %v3139 = vpack.c.b16 %v3111, %v3109
        %v3140 = vpack.c.b16 %v3112, %v3110
        %v3141 = vpack.c.b16 %v3115, %v3113
        %v3142 = vpack.c.b16 %v3116, %v3114
        %v3143 = vpack.c.b16 %v3119, %v3117
        %v3144 = vpack.c.b16 %v3120, %v3118
        %v3145 = vpack.c.b16 %v3123, %v3121
        %v3146 = vpack.c.b16 %v3124, %v3122
        %v3147 = vpack.c.b16 %v3127, %v3125
        %v3148 = vpack.c.b16 %v3128, %v3126
        %v3149 = vpack.c.b16 %v3131, %v3129
        %v3150 = vpack.c.b16 %v3132, %v3130
        %v3151 = vpack.c.b16 %v3135, %v3133
        %v3152 = vpack.c.b16 %v3136, %v3134
        %3169 = vmatprep.subr.bf16.mxu0 %v3138
        %3170 = vmatpush1.bf16.msra.mxu0 %v3137
        %3171 = vmatprep.subr.bf16.mxu0 %v3140
        %3172 = vmatpush1.bf16.msra.mxu0 %v3139
        %3173 = vmatprep.subr.bf16.mxu0 %v3142
        %3174 = vmatpush1.bf16.msra.mxu0 %v3141
        %3175 = vmatprep.subr.bf16.mxu0 %v3144
        %3176 = vmatpush1.bf16.msra.mxu0 %v3143
        %3177 = vmatprep.subr.bf16.mxu0 %v3146
        %3178 = vmatpush1.bf16.msra.mxu0 %v3145
        %3179 = vmatprep.subr.bf16.mxu0 %v3148
        %3180 = vmatpush1.bf16.msra.mxu0 %v3147
        %3181 = vmatprep.subr.bf16.mxu0 %v3150
        %3182 = vmatpush1.bf16.msra.mxu0 %v3149
        %3183 = vmatprep.subr.bf16.mxu0 %v3152
        %3184 = vmatpush1.bf16.msra.mxu0 %v3151
        %3185 = vmatprep.subr.bf16.mxu0 0
        %3186 = vmatpush1.bf16.msra.mxu0 0
        %3187 = vmatprep.subr.bf16.mxu0 0
        %3188 = vmatpush1.bf16.msra.mxu0 0
        %3189 = vmatprep.subr.bf16.mxu0 0
        %3190 = vmatpush1.bf16.msra.mxu0 0
        %3191 = vmatprep.subr.bf16.mxu0 0
        %3192 = vmatpush1.bf16.msra.mxu0 0
        %3193 = vmatprep.subr.bf16.mxu0 0
        %3194 = vmatpush1.bf16.msra.mxu0 0
        %3195 = vmatprep.subr.bf16.mxu0 0
        %3196 = vmatpush1.bf16.msra.mxu0 0
        %3197 = vmatprep.subr.bf16.mxu0 0
        %3198 = vmatpush1.bf16.msra.mxu0 0
        %3199 = vmatprep.subr.bf16.mxu0 0
        %3200 = vmatpush1.bf16.msra.mxu0 0
        %3201 = vmatprep.mubr.bf16.mxu0 0
        %3202 = vmatmul.mubr.bf16.gmra.mrb[0].mxu0 %v3057
        %v3203 = vpop.f32.mrb[0].mxu0
        %v3204 = vadd.f32 0.0, %v3203
        %v3205 = vpop.f32.mrb[0].mxu0
        %v3206 = vadd.f32 0.0, %v3205
        %v3207 = vpop.f32.mrb[0].mxu0
        %v3208 = vadd.f32 0.0, %v3207
        %v3209 = vpop.f32.mrb[0].mxu0
        %v3210 = vadd.f32 0.0, %v3209
        %3211 = vmatprep.mubr.bf16.mxu0 0
        %3212 = vmatmul.mubr.bf16.gmra.mrb[0].mxu0 %v3058
        %v3213 = vpop.f32.mrb[0].mxu0
        %v3214 = vadd.f32 0.0, %v3213
        %v3215 = vpop.f32.mrb[0].mxu0
        %v3216 = vadd.f32 0.0, %v3215
        %v3217 = vpop.f32.mrb[0].mxu0
        %v3218 = vadd.f32 0.0, %v3217
        %v3219 = vpop.f32.mrb[0].mxu0
        %v3220 = vadd.f32 0.0, %v3219
        %3221 = vmatprep.mubr.bf16.mxu0 0
        %3222 = vmatmul.mubr.bf16.gmra.mrb[0].mxu0 %v3059
        %v3223 = vpop.f32.mrb[0].mxu0
        %v3224 = vadd.f32 0.0, %v3223
        %v3225 = vpop.f32.mrb[0].mxu0
        %v3226 = vadd.f32 0.0, %v3225
        %v3227 = vpop.f32.mrb[0].mxu0
        %v3228 = vadd.f32 0.0, %v3227
        %v3229 = vpop.f32.mrb[0].mxu0
        %v3230 = vadd.f32 0.0, %v3229
        %3231 = vmatprep.mubr.bf16.mxu0 0
        %3232 = vmatmul.mubr.bf16.gmra.mrb[0].mxu0 %v3060
        %v3233 = vpop.f32.mrb[0].mxu0
        %v3234 = vadd.f32 0.0, %v3233
        %v3235 = vpop.f32.mrb[0].mxu0
        %v3236 = vadd.f32 0.0, %v3235
        %v3237 = vpop.f32.mrb[0].mxu0
        %v3238 = vadd.f32 0.0, %v3237
        %v3239 = vpop.f32.mrb[0].mxu0
        %v3240 = vadd.f32 0.0, %v3239
        %3241 = vmatprep.mubr.bf16.mxu0 0
        %3242 = vmatmul.mubr.bf16.gmra.mrb[0].mxu0 %v3061
        %v3243 = vpop.f32.mrb[0].mxu0
        %v3244 = vadd.f32 0.0, %v3243
        %v3245 = vpop.f32.mrb[0].mxu0
        %v3246 = vadd.f32 0.0, %v3245
        %v3247 = vpop.f32.mrb[0].mxu0
        %v3248 = vadd.f32 0.0, %v3247
        %v3249 = vpop.f32.mrb[0].mxu0
        %v3250 = vadd.f32 0.0, %v3249
        %3251 = vmatprep.mubr.bf16.mxu0 0
        %3252 = vmatmul.mubr.bf16.gmra.mrb[0].mxu0 %v3062
        %v3253 = vpop.f32.mrb[0].mxu0
        %v3254 = vadd.f32 0.0, %v3253
        %v3255 = vpop.f32.mrb[0].mxu0
        %v3256 = vadd.f32 0.0, %v3255
        %v3257 = vpop.f32.mrb[0].mxu0
        %v3258 = vadd.f32 0.0, %v3257
        %v3259 = vpop.f32.mrb[0].mxu0
        %v3260 = vadd.f32 0.0, %v3259
        %3261 = vmatprep.mubr.bf16.mxu0 0
        %3262 = vmatmul.mubr.bf16.gmra.mrb[0].mxu0 %v3063
        %v3263 = vpop.f32.mrb[0].mxu0
        %v3264 = vadd.f32 0.0, %v3263
        %v3265 = vpop.f32.mrb[0].mxu0
        %v3266 = vadd.f32 0.0, %v3265
        %v3267 = vpop.f32.mrb[0].mxu0
        %v3268 = vadd.f32 0.0, %v3267
        %v3269 = vpop.f32.mrb[0].mxu0
        %v3270 = vadd.f32 0.0, %v3269
        %3271 = vmatprep.mubr.bf16.mxu0 0
        %3272 = vmatmul.mubr.bf16.gmra.mrb[0].mxu0 %v3064
        %v3273 = vpop.f32.mrb[0].mxu0
        %v3274 = vadd.f32 0.0, %v3273
        %v3275 = vpop.f32.mrb[0].mxu0
        %v3276 = vadd.f32 0.0, %v3275
        %v3277 = vpop.f32.mrb[0].mxu0
        %v3278 = vadd.f32 0.0, %v3277
        %v3279 = vpop.f32.mrb[0].mxu0
        %v3280 = vadd.f32 0.0, %v3279
        %3281 = vmatprep.mubr.bf16.mxu0 0
        %3282 = vmatmul.mubr.bf16.gmra.mrb[0].mxu0 %v3065
        %v3283 = vpop.f32.mrb[0].mxu0
        %v3284 = vadd.f32 0.0, %v3283
        %v3285 = vpop.f32.mrb[0].mxu0
        %v3286 = vadd.f32 0.0, %v3285
        %v3287 = vpop.f32.mrb[0].mxu0
        %v3288 = vadd.f32 0.0, %v3287
        %v3289 = vpop.f32.mrb[0].mxu0
        %v3290 = vadd.f32 0.0, %v3289
        %3291 = vmatprep.mubr.bf16.mxu0 0
        %3292 = vmatmul.mubr.bf16.gmra.mrb[0].mxu0 %v3066
        %v3293 = vpop.f32.mrb[0].mxu0
        %v3294 = vadd.f32 0.0, %v3293
        %v3295 = vpop.f32.mrb[0].mxu0
        %v3296 = vadd.f32 0.0, %v3295
        %v3297 = vpop.f32.mrb[0].mxu0
        %v3298 = vadd.f32 0.0, %v3297
        %v3299 = vpop.f32.mrb[0].mxu0
        %v3300 = vadd.f32 0.0, %v3299
        %3301 = vmatprep.mubr.bf16.mxu0 0
        %3302 = vmatmul.mubr.bf16.gmra.mrb[0].mxu0 %v3067
        %v3303 = vpop.f32.mrb[0].mxu0
        %v3304 = vadd.f32 0.0, %v3303
        %v3305 = vpop.f32.mrb[0].mxu0
        %v3306 = vadd.f32 0.0, %v3305
        %v3307 = vpop.f32.mrb[0].mxu0
        %v3308 = vadd.f32 0.0, %v3307
        %v3309 = vpop.f32.mrb[0].mxu0
        %v3310 = vadd.f32 0.0, %v3309
        %3311 = vmatprep.mubr.bf16.mxu0 0
        %3312 = vmatmul.mubr.bf16.gmra.mrb[0].mxu0 %v3068
        %v3313 = vpop.f32.mrb[0].mxu0
        %v3314 = vadd.f32 0.0, %v3313
        %v3315 = vpop.f32.mrb[0].mxu0
        %v3316 = vadd.f32 0.0, %v3315
        %v3317 = vpop.f32.mrb[0].mxu0
        %v3318 = vadd.f32 0.0, %v3317
        %v3319 = vpop.f32.mrb[0].mxu0
        %v3320 = vadd.f32 0.0, %v3319
        %3321 = vmatprep.mubr.bf16.mxu0 0
        %3322 = vmatmul.mubr.bf16.gmra.mrb[0].mxu0 %v3069
        %v3323 = vpop.f32.mrb[0].mxu0
        %v3324 = vadd.f32 0.0, %v3323
        %v3325 = vpop.f32.mrb[0].mxu0
        %v3326 = vadd.f32 0.0, %v3325
        %v3327 = vpop.f32.mrb[0].mxu0
        %v3328 = vadd.f32 0.0, %v3327
        %v3329 = vpop.f32.mrb[0].mxu0
        %v3330 = vadd.f32 0.0, %v3329
        %3331 = vmatprep.mubr.bf16.mxu0 0
        %3332 = vmatmul.mubr.bf16.gmra.mrb[0].mxu0 %v3070
        %v3333 = vpop.f32.mrb[0].mxu0
        %v3334 = vadd.f32 0.0, %v3333
        %v3335 = vpop.f32.mrb[0].mxu0
        %v3336 = vadd.f32 0.0, %v3335
        %v3337 = vpop.f32.mrb[0].mxu0
        %v3338 = vadd.f32 0.0, %v3337
        %v3339 = vpop.f32.mrb[0].mxu0
        %v3340 = vadd.f32 0.0, %v3339
        %3341 = vmatprep.mubr.bf16.mxu0 0
        %3342 = vmatmul.mubr.bf16.gmra.mrb[0].mxu0 %v3071
        %v3343 = vpop.f32.mrb[0].mxu0
        %v3344 = vadd.f32 0.0, %v3343
        %v3345 = vpop.f32.mrb[0].mxu0
        %v3346 = vadd.f32 0.0, %v3345
        %v3347 = vpop.f32.mrb[0].mxu0
        %v3348 = vadd.f32 0.0, %v3347
        %v3349 = vpop.f32.mrb[0].mxu0
        %v3350 = vadd.f32 0.0, %v3349
        %3351 = vmatprep.mubr.bf16.mxu0 0
        %3352 = vmatmul.mubr.bf16.gmra.mrb[0].mxu0 %v3072
        %v3353 = vpop.f32.mrb[0].mxu0
        %v3354 = vadd.f32 0.0, %v3353
        %v3355 = vpop.f32.mrb[0].mxu0
        %v3356 = vadd.f32 0.0, %v3355
        %v3357 = vpop.f32.mrb[0].mxu0
        %v3358 = vadd.f32 0.0, %v3357
        %v3359 = vpop.f32.mrb[0].mxu0
        %v3360 = vadd.f32 0.0, %v3359
        %3361 = vdwg.mxu0
        %v3378 = vunpack.c.l.b16 %v3041
        %v3379 = vunpack.c.h.b16 %v3041
        %v3380 = vunpack.c.l.b16 %v3042
        %v3381 = vunpack.c.h.b16 %v3042
        %v3382 = vunpack.c.l.b16 %v3043
        %v3383 = vunpack.c.h.b16 %v3043
        %v3384 = vunpack.c.l.b16 %v3044
        %v3385 = vunpack.c.h.b16 %v3044
        %v3386 = vunpack.c.l.b16 %v3045
        %v3387 = vunpack.c.h.b16 %v3045
        %v3388 = vunpack.c.l.b16 %v3046
        %v3389 = vunpack.c.h.b16 %v3046
        %v3390 = vunpack.c.l.b16 %v3047
        %v3391 = vunpack.c.h.b16 %v3047
        %v3392 = vunpack.c.l.b16 %v3048
        %v3393 = vunpack.c.h.b16 %v3048
        %v3394 = vunpack.c.l.b16 %v3049
        %v3395 = vunpack.c.h.b16 %v3049
        %v3396 = vunpack.c.l.b16 %v3050
        %v3397 = vunpack.c.h.b16 %v3050
        %v3398 = vunpack.c.l.b16 %v3051
        %v3399 = vunpack.c.h.b16 %v3051
        %v3400 = vunpack.c.l.b16 %v3052
        %v3401 = vunpack.c.h.b16 %v3052
        %v3402 = vunpack.c.l.b16 %v3053
        %v3403 = vunpack.c.h.b16 %v3053
        %v3404 = vunpack.c.l.b16 %v3054
        %v3405 = vunpack.c.h.b16 %v3054
        %v3406 = vunpack.c.l.b16 %v3055
        %v3407 = vunpack.c.h.b16 %v3055
        %v3408 = vunpack.c.l.b16 %v3056
        %v3409 = vunpack.c.h.b16 %v3056
        %v3410 = vpack.c.b16 %v3380, %v3378
        %v3411 = vpack.c.b16 %v3381, %v3379
        %v3412 = vpack.c.b16 %v3384, %v3382
        %v3413 = vpack.c.b16 %v3385, %v3383
        %v3414 = vpack.c.b16 %v3388, %v3386
        %v3415 = vpack.c.b16 %v3389, %v3387
        %v3416 = vpack.c.b16 %v3392, %v3390
        %v3417 = vpack.c.b16 %v3393, %v3391
        %v3418 = vpack.c.b16 %v3396, %v3394
        %v3419 = vpack.c.b16 %v3397, %v3395
        %v3420 = vpack.c.b16 %v3400, %v3398
        %v3421 = vpack.c.b16 %v3401, %v3399
        %v3422 = vpack.c.b16 %v3404, %v3402
        %v3423 = vpack.c.b16 %v3405, %v3403
        %v3424 = vpack.c.b16 %v3408, %v3406
        %v3425 = vpack.c.b16 %v3409, %v3407
        %3442 = vmatprep.subr.bf16.mxu0 %v3411
        %3443 = vmatpush1.bf16.msra.mxu0 %v3410
        %3444 = vmatprep.subr.bf16.mxu0 %v3413
        %3445 = vmatpush1.bf16.msra.mxu0 %v3412
        %3446 = vmatprep.subr.bf16.mxu0 %v3415
        %3447 = vmatpush1.bf16.msra.mxu0 %v3414
        %3448 = vmatprep.subr.bf16.mxu0 %v3417
        %3449 = vmatpush1.bf16.msra.mxu0 %v3416
        %3450 = vmatprep.subr.bf16.mxu0 %v3419
        %3451 = vmatpush1.bf16.msra.mxu0 %v3418
        %3452 = vmatprep.subr.bf16.mxu0 %v3421
        %3453 = vmatpush1.bf16.msra.mxu0 %v3420
        %3454 = vmatprep.subr.bf16.mxu0 %v3423
        %3455 = vmatpush1.bf16.msra.mxu0 %v3422
        %3456 = vmatprep.subr.bf16.mxu0 %v3425
        %3457 = vmatpush1.bf16.msra.mxu0 %v3424
        %3458 = vmatprep.subr.bf16.mxu0 0
        %3459 = vmatpush1.bf16.msra.mxu0 0
        %3460 = vmatprep.subr.bf16.mxu0 0
        %3461 = vmatpush1.bf16.msra.mxu0 0
        %3462 = vmatprep.subr.bf16.mxu0 0
        %3463 = vmatpush1.bf16.msra.mxu0 0
        %3464 = vmatprep.subr.bf16.mxu0 0
        %3465 = vmatpush1.bf16.msra.mxu0 0
        %3466 = vmatprep.subr.bf16.mxu0 0
        %3467 = vmatpush1.bf16.msra.mxu0 0
        %3468 = vmatprep.subr.bf16.mxu0 0
        %3469 = vmatpush1.bf16.msra.mxu0 0
        %3470 = vmatprep.subr.bf16.mxu0 0
        %3471 = vmatpush1.bf16.msra.mxu0 0
        %3472 = vmatprep.subr.bf16.mxu0 0
        %3473 = vmatpush1.bf16.msra.mxu0 0
        %3474 = vmatprep.mubr.bf16.mxu0 0
        %3475 = vmatmul.mubr.bf16.gmra.mrb[0].mxu0 %v3025
        %v3476 = vpop.f32.mrb[0].mxu0
        %v3477 = vadd.f32 %v3204, %v3476
        %v3478 = vpop.f32.mrb[0].mxu0
        %v3479 = vadd.f32 %v3206, %v3478
        %v3480 = vpop.f32.mrb[0].mxu0
        %v3481 = vadd.f32 %v3208, %v3480
        %v3482 = vpop.f32.mrb[0].mxu0
        %v3483 = vadd.f32 %v3210, %v3482
        %3484 = vmatprep.mubr.bf16.mxu0 0
        %3485 = vmatmul.mubr.bf16.gmra.mrb[0].mxu0 %v3026
        %v3486 = vpop.f32.mrb[0].mxu0
        %v3487 = vadd.f32 %v3214, %v3486
        %v3488 = vpop.f32.mrb[0].mxu0
        %v3489 = vadd.f32 %v3216, %v3488
        %v3490 = vpop.f32.mrb[0].mxu0
        %v3491 = vadd.f32 %v3218, %v3490
        %v3492 = vpop.f32.mrb[0].mxu0
        %v3493 = vadd.f32 %v3220, %v3492
        %3494 = vmatprep.mubr.bf16.mxu0 0
        %3495 = vmatmul.mubr.bf16.gmra.mrb[0].mxu0 %v3027
        %v3496 = vpop.f32.mrb[0].mxu0
        %v3497 = vadd.f32 %v3224, %v3496
        %v3498 = vpop.f32.mrb[0].mxu0
        %v3499 = vadd.f32 %v3226, %v3498
        %v3500 = vpop.f32.mrb[0].mxu0
        %v3501 = vadd.f32 %v3228, %v3500
        %v3502 = vpop.f32.mrb[0].mxu0
        %v3503 = vadd.f32 %v3230, %v3502
        %3504 = vmatprep.mubr.bf16.mxu0 0
        %3505 = vmatmul.mubr.bf16.gmra.mrb[0].mxu0 %v3028
        %v3506 = vpop.f32.mrb[0].mxu0
        %v3507 = vadd.f32 %v3234, %v3506
        %v3508 = vpop.f32.mrb[0].mxu0
        %v3509 = vadd.f32 %v3236, %v3508
        %v3510 = vpop.f32.mrb[0].mxu0
        %v3511 = vadd.f32 %v3238, %v3510
        %v3512 = vpop.f32.mrb[0].mxu0
        %v3513 = vadd.f32 %v3240, %v3512
        %3514 = vmatprep.mubr.bf16.mxu0 0
        %3515 = vmatmul.mubr.bf16.gmra.mrb[0].mxu0 %v3029
        %v3516 = vpop.f32.mrb[0].mxu0
        %v3517 = vadd.f32 %v3244, %v3516
        %v3518 = vpop.f32.mrb[0].mxu0
        %v3519 = vadd.f32 %v3246, %v3518
        %v3520 = vpop.f32.mrb[0].mxu0
        %v3521 = vadd.f32 %v3248, %v3520
        %v3522 = vpop.f32.mrb[0].mxu0
        %v3523 = vadd.f32 %v3250, %v3522
        %3524 = vmatprep.mubr.bf16.mxu0 0
        %3525 = vmatmul.mubr.bf16.gmra.mrb[0].mxu0 %v3030
        %v3526 = vpop.f32.mrb[0].mxu0
        %v3527 = vadd.f32 %v3254, %v3526
        %v3528 = vpop.f32.mrb[0].mxu0
        %v3529 = vadd.f32 %v3256, %v3528
        %v3530 = vpop.f32.mrb[0].mxu0
        %v3531 = vadd.f32 %v3258, %v3530
        %v3532 = vpop.f32.mrb[0].mxu0
        %v3533 = vadd.f32 %v3260, %v3532
        %3534 = vmatprep.mubr.bf16.mxu0 0
        %3535 = vmatmul.mubr.bf16.gmra.mrb[0].mxu0 %v3031
        %v3536 = vpop.f32.mrb[0].mxu0
        %v3537 = vadd.f32 %v3264, %v3536
        %v3538 = vpop.f32.mrb[0].mxu0
        %v3539 = vadd.f32 %v3266, %v3538
        %v3540 = vpop.f32.mrb[0].mxu0
        %v3541 = vadd.f32 %v3268, %v3540
        %v3542 = vpop.f32.mrb[0].mxu0
        %v3543 = vadd.f32 %v3270, %v3542
        %3544 = vmatprep.mubr.bf16.mxu0 0
        %3545 = vmatmul.mubr.bf16.gmra.mrb[0].mxu0 %v3032
        %v3546 = vpop.f32.mrb[0].mxu0
        %v3547 = vadd.f32 %v3274, %v3546
        %v3548 = vpop.f32.mrb[0].mxu0
        %v3549 = vadd.f32 %v3276, %v3548
        %v3550 = vpop.f32.mrb[0].mxu0
        %v3551 = vadd.f32 %v3278, %v3550
        %v3552 = vpop.f32.mrb[0].mxu0
        %v3553 = vadd.f32 %v3280, %v3552
        %3554 = vmatprep.mubr.bf16.mxu0 0
        %3555 = vmatmul.mubr.bf16.gmra.mrb[0].mxu0 %v3033
        %v3556 = vpop.f32.mrb[0].mxu0
        %v3557 = vadd.f32 %v3284, %v3556
        %v3558 = vpop.f32.mrb[0].mxu0
        %v3559 = vadd.f32 %v3286, %v3558
        %v3560 = vpop.f32.mrb[0].mxu0
        %v3561 = vadd.f32 %v3288, %v3560
        %v3562 = vpop.f32.mrb[0].mxu0
        %v3563 = vadd.f32 %v3290, %v3562
        %3564 = vmatprep.mubr.bf16.mxu0 0
        %3565 = vmatmul.mubr.bf16.gmra.mrb[0].mxu0 %v3034
        %v3566 = vpop.f32.mrb[0].mxu0
        %v3567 = vadd.f32 %v3294, %v3566
        %v3568 = vpop.f32.mrb[0].mxu0
        %v3569 = vadd.f32 %v3296, %v3568
        %v3570 = vpop.f32.mrb[0].mxu0
        %v3571 = vadd.f32 %v3298, %v3570
        %v3572 = vpop.f32.mrb[0].mxu0
        %v3573 = vadd.f32 %v3300, %v3572
        %3574 = vmatprep.mubr.bf16.mxu0 0
        %3575 = vmatmul.mubr.bf16.gmra.mrb[0].mxu0 %v3035
        %v3576 = vpop.f32.mrb[0].mxu0
        %v3577 = vadd.f32 %v3304, %v3576
        %v3578 = vpop.f32.mrb[0].mxu0
        %v3579 = vadd.f32 %v3306, %v3578
        %v3580 = vpop.f32.mrb[0].mxu0
        %v3581 = vadd.f32 %v3308, %v3580
        %v3582 = vpop.f32.mrb[0].mxu0
        %v3583 = vadd.f32 %v3310, %v3582
        %3584 = vmatprep.mubr.bf16.mxu0 0
        %3585 = vmatmul.mubr.bf16.gmra.mrb[0].mxu0 %v3036
        %v3586 = vpop.f32.mrb[0].mxu0
        %v3587 = vadd.f32 %v3314, %v3586
        %v3588 = vpop.f32.mrb[0].mxu0
        %v3589 = vadd.f32 %v3316, %v3588
        %v3590 = vpop.f32.mrb[0].mxu0
        %v3591 = vadd.f32 %v3318, %v3590
        %v3592 = vpop.f32.mrb[0].mxu0
        %v3593 = vadd.f32 %v3320, %v3592
        %3594 = vmatprep.mubr.bf16.mxu0 0
        %3595 = vmatmul.mubr.bf16.gmra.mrb[0].mxu0 %v3037
        %v3596 = vpop.f32.mrb[0].mxu0
        %v3597 = vadd.f32 %v3324, %v3596
        %v3598 = vpop.f32.mrb[0].mxu0
        %v3599 = vadd.f32 %v3326, %v3598
        %v3600 = vpop.f32.mrb[0].mxu0
        %v3601 = vadd.f32 %v3328, %v3600
        %v3602 = vpop.f32.mrb[0].mxu0
        %v3603 = vadd.f32 %v3330, %v3602
        %3604 = vmatprep.mubr.bf16.mxu0 0
        %3605 = vmatmul.mubr.bf16.gmra.mrb[0].mxu0 %v3038
        %v3606 = vpop.f32.mrb[0].mxu0
        %v3607 = vadd.f32 %v3334, %v3606
        %v3608 = vpop.f32.mrb[0].mxu0
        %v3609 = vadd.f32 %v3336, %v3608
        %v3610 = vpop.f32.mrb[0].mxu0
        %v3611 = vadd.f32 %v3338, %v3610
        %v3612 = vpop.f32.mrb[0].mxu0
        %v3613 = vadd.f32 %v3340, %v3612
        %3614 = vmatprep.mubr.bf16.mxu0 0
        %3615 = vmatmul.mubr.bf16.gmra.mrb[0].mxu0 %v3039
        %v3616 = vpop.f32.mrb[0].mxu0
        %v3617 = vadd.f32 %v3344, %v3616
        %v3618 = vpop.f32.mrb[0].mxu0
        %v3619 = vadd.f32 %v3346, %v3618
        %v3620 = vpop.f32.mrb[0].mxu0
        %v3621 = vadd.f32 %v3348, %v3620
        %v3622 = vpop.f32.mrb[0].mxu0
        %v3623 = vadd.f32 %v3350, %v3622
        %3624 = vmatprep.mubr.bf16.mxu0 0
        %3625 = vmatmul.mubr.bf16.gmra.mrb[0].mxu0 %v3040
        %v3626 = vpop.f32.mrb[0].mxu0
        %v3627 = vadd.f32 %v3354, %v3626
        %v3628 = vpop.f32.mrb[0].mxu0
        %v3629 = vadd.f32 %v3356, %v3628
        %v3630 = vpop.f32.mrb[0].mxu0
        %v3631 = vadd.f32 %v3358, %v3630
        %v3632 = vpop.f32.mrb[0].mxu0
        %v3633 = vadd.f32 %v3360, %v3632
        %3634 = vdwg.mxu0
        %v3635 = vadd.f32 %v2961, %v3477
        %v3636 = vadd.f32 %v2962, %v3479
        %v3637 = vadd.f32 %v2963, %v3481
        %v3638 = vadd.f32 %v2964, %v3483
        %v3639 = vadd.f32 %v2965, %v3487
        %v3640 = vadd.f32 %v2966, %v3489
        %v3641 = vadd.f32 %v2967, %v3491
        %v3642 = vadd.f32 %v2968, %v3493
        %v3643 = vadd.f32 %v2969, %v3497
        %v3644 = vadd.f32 %v2970, %v3499
        %v3645 = vadd.f32 %v2971, %v3501
        %v3646 = vadd.f32 %v2972, %v3503
        %v3647 = vadd.f32 %v2973, %v3507
        %v3648 = vadd.f32 %v2974, %v3509
        %v3649 = vadd.f32 %v2975, %v3511
        %v3650 = vadd.f32 %v2976, %v3513
        %v3651 = vadd.f32 %v2977, %v3517
        %v3652 = vadd.f32 %v2978, %v3519
        %v3653 = vadd.f32 %v2979, %v3521
        %v3654 = vadd.f32 %v2980, %v3523
        %v3655 = vadd.f32 %v2981, %v3527
        %v3656 = vadd.f32 %v2982, %v3529
        %v3657 = vadd.f32 %v2983, %v3531
        %v3658 = vadd.f32 %v2984, %v3533
        %v3659 = vadd.f32 %v2985, %v3537
        %v3660 = vadd.f32 %v2986, %v3539
        %v3661 = vadd.f32 %v2987, %v3541
        %v3662 = vadd.f32 %v2988, %v3543
        %v3663 = vadd.f32 %v2989, %v3547
        %v3664 = vadd.f32 %v2990, %v3549
        %v3665 = vadd.f32 %v2991, %v3551
        %v3666 = vadd.f32 %v2992, %v3553
        %v3667 = vadd.f32 %v2993, %v3557
        %v3668 = vadd.f32 %v2994, %v3559
        %v3669 = vadd.f32 %v2995, %v3561
        %v3670 = vadd.f32 %v2996, %v3563
        %v3671 = vadd.f32 %v2997, %v3567
        %v3672 = vadd.f32 %v2998, %v3569
        %v3673 = vadd.f32 %v2999, %v3571
        %v3674 = vadd.f32 %v3000, %v3573
        %v3675 = vadd.f32 %v3001, %v3577
        %v3676 = vadd.f32 %v3002, %v3579
        %v3677 = vadd.f32 %v3003, %v3581
        %v3678 = vadd.f32 %v3004, %v3583
        %v3679 = vadd.f32 %v3005, %v3587
        %v3680 = vadd.f32 %v3006, %v3589
        %v3681 = vadd.f32 %v3007, %v3591
        %v3682 = vadd.f32 %v3008, %v3593
        %v3683 = vadd.f32 %v3009, %v3597
        %v3684 = vadd.f32 %v3010, %v3599
        %v3685 = vadd.f32 %v3011, %v3601
        %v3686 = vadd.f32 %v3012, %v3603
        %v3687 = vadd.f32 %v3013, %v3607
        %v3688 = vadd.f32 %v3014, %v3609
        %v3689 = vadd.f32 %v3015, %v3611
        %v3690 = vadd.f32 %v3016, %v3613
        %v3691 = vadd.f32 %v3017, %v3617
        %v3692 = vadd.f32 %v3018, %v3619
        %v3693 = vadd.f32 %v3019, %v3621
        %v3694 = vadd.f32 %v3020, %v3623
        %v3695 = vadd.f32 %v3021, %v3627
        %v3696 = vadd.f32 %v3022, %v3629
        %v3697 = vadd.f32 %v3023, %v3631
        %v3698 = vadd.f32 %v3024, %v3633
        %3699 = vst [vmem:[#allocation3] sm:$0xff] %v3635
        %3700 = vst [vmem:[#allocation3 + $0x8] sm:$0xff] %v3636
        %3701 = vst [vmem:[#allocation3 + $0x10] sm:$0xff] %v3637
        %3702 = vst [vmem:[#allocation3 + $0x18] sm:$0xff] %v3638
        %3703 = vst [vmem:[#allocation3 + $0x20] sm:$0xff] %v3639
        %3704 = vst [vmem:[#allocation3 + $0x28] sm:$0xff] %v3640
        %3705 = vst [vmem:[#allocation3 + $0x30] sm:$0xff] %v3641
        %3706 = vst [vmem:[#allocation3 + $0x38] sm:$0xff] %v3642
        %3707 = vst [vmem:[#allocation3 + $0x40] sm:$0xff] %v3643
        %3708 = vst [vmem:[#allocation3 + $0x48] sm:$0xff] %v3644
        %3709 = vst [vmem:[#allocation3 + $0x50] sm:$0xff] %v3645
        %3710 = vst [vmem:[#allocation3 + $0x58] sm:$0xff] %v3646
        %3711 = vst [vmem:[#allocation3 + $0x60] sm:$0xff] %v3647
        %3712 = vst [vmem:[#allocation3 + $0x68] sm:$0xff] %v3648
        %3713 = vst [vmem:[#allocation3 + $0x70] sm:$0xff] %v3649
        %3714 = vst [vmem:[#allocation3 + $0x78] sm:$0xff] %v3650
        %3715 = vst [vmem:[#allocation3 + $0x80] sm:$0xff] %v3651
        %3716 = vst [vmem:[#allocation3 + $0x88] sm:$0xff] %v3652
        %3717 = vst [vmem:[#allocation3 + $0x90] sm:$0xff] %v3653
        %3718 = vst [vmem:[#allocation3 + $0x98] sm:$0xff] %v3654
        %3719 = vst [vmem:[#allocation3 + $0xa0] sm:$0xff] %v3655
        %3720 = vst [vmem:[#allocation3 + $0xa8] sm:$0xff] %v3656
        %3721 = vst [vmem:[#allocation3 + $0xb0] sm:$0xff] %v3657
        %3722 = vst [vmem:[#allocation3 + $0xb8] sm:$0xff] %v3658
        %3723 = vst [vmem:[#allocation3 + $0xc0] sm:$0xff] %v3659
        %3724 = vst [vmem:[#allocation3 + $0xc8] sm:$0xff] %v3660
        %3725 = vst [vmem:[#allocation3 + $0xd0] sm:$0xff] %v3661
        %3726 = vst [vmem:[#allocation3 + $0xd8] sm:$0xff] %v3662
        %3727 = vst [vmem:[#allocation3 + $0xe0] sm:$0xff] %v3663
        %3728 = vst [vmem:[#allocation3 + $0xe8] sm:$0xff] %v3664
        %3729 = vst [vmem:[#allocation3 + $0xf0] sm:$0xff] %v3665
        %3730 = vst [vmem:[#allocation3 + $0xf8] sm:$0xff] %v3666
        %3731 = vst [vmem:[#allocation3 + $0x100] sm:$0xff] %v3667
        %3732 = vst [vmem:[#allocation3 + $0x108] sm:$0xff] %v3668
        %3733 = vst [vmem:[#allocation3 + $0x110] sm:$0xff] %v3669
        %3734 = vst [vmem:[#allocation3 + $0x118] sm:$0xff] %v3670
        %3735 = vst [vmem:[#allocation3 + $0x120] sm:$0xff] %v3671
        %3736 = vst [vmem:[#allocation3 + $0x128] sm:$0xff] %v3672
        %3737 = vst [vmem:[#allocation3 + $0x130] sm:$0xff] %v3673
        %3738 = vst [vmem:[#allocation3 + $0x138] sm:$0xff] %v3674
        %3739 = vst [vmem:[#allocation3 + $0x140] sm:$0xff] %v3675
        %3740 = vst [vmem:[#allocation3 + $0x148] sm:$0xff] %v3676
        %3741 = vst [vmem:[#allocation3 + $0x150] sm:$0xff] %v3677
        %3742 = vst [vmem:[#allocation3 + $0x158] sm:$0xff] %v3678
        %3743 = vst [vmem:[#allocation3 + $0x160] sm:$0xff] %v3679
        %3744 = vst [vmem:[#allocation3 + $0x168] sm:$0xff] %v3680
        %3745 = vst [vmem:[#allocation3 + $0x170] sm:$0xff] %v3681
        %3746 = vst [vmem:[#allocation3 + $0x178] sm:$0xff] %v3682
        %3747 = vst [vmem:[#allocation3 + $0x180] sm:$0xff] %v3683
        %3748 = vst [vmem:[#allocation3 + $0x188] sm:$0xff] %v3684
        %3749 = vst [vmem:[#allocation3 + $0x190] sm:$0xff] %v3685
        %3750 = vst [vmem:[#allocation3 + $0x198] sm:$0xff] %v3686
        %3751 = vst [vmem:[#allocation3 + $0x1a0] sm:$0xff] %v3687
        %3752 = vst [vmem:[#allocation3 + $0x1a8] sm:$0xff] %v3688
        %3753 = vst [vmem:[#allocation3 + $0x1b0] sm:$0xff] %v3689
        %3754 = vst [vmem:[#allocation3 + $0x1b8] sm:$0xff] %v3690
        %3755 = vst [vmem:[#allocation3 + $0x1c0] sm:$0xff] %v3691
        %3756 = vst [vmem:[#allocation3 + $0x1c8] sm:$0xff] %v3692
        %3757 = vst [vmem:[#allocation3 + $0x1d0] sm:$0xff] %v3693
        %3758 = vst [vmem:[#allocation3 + $0x1d8] sm:$0xff] %v3694
        %3759 = vst [vmem:[#allocation3 + $0x1e0] sm:$0xff] %v3695
        %3760 = vst [vmem:[#allocation3 + $0x1e8] sm:$0xff] %v3696
        %3761 = vst [vmem:[#allocation3 + $0x1f0] sm:$0xff] %v3697
        %3762 = vst [vmem:[#allocation3 + $0x1f8] sm:$0xff] %v3698
        // Predicated region
        $region49: #{tpu_custom_call.1} parent=43 // pred_check
          %p3763 = pneg %p335
        $region50: #{tpu_custom_call.1} parent=43 // pred_check_branch
          %3765 = sbr.rel (%p3763) target = $region52
        $region51: #{tpu_custom_call.1} parent=43 // pred_region
          %v3766 = vld [vmem:[#allocation3] sm:$0xff]
          %v3767 = vld [vmem:[#allocation3 + $0x8] sm:$0xff]
          %v3768 = vld [vmem:[#allocation3 + $0x10] sm:$0xff]
          %v3769 = vld [vmem:[#allocation3 + $0x18] sm:$0xff]
          %v3770 = vld [vmem:[#allocation3 + $0x20] sm:$0xff]
          %v3771 = vld [vmem:[#allocation3 + $0x28] sm:$0xff]
          %v3772 = vld [vmem:[#allocation3 + $0x30] sm:$0xff]
          %v3773 = vld [vmem:[#allocation3 + $0x38] sm:$0xff]
          %v3774 = vld [vmem:[#allocation3 + $0x40] sm:$0xff]
          %v3775 = vld [vmem:[#allocation3 + $0x48] sm:$0xff]
          %v3776 = vld [vmem:[#allocation3 + $0x50] sm:$0xff]
          %v3777 = vld [vmem:[#allocation3 + $0x58] sm:$0xff]
          %v3778 = vld [vmem:[#allocation3 + $0x60] sm:$0xff]
          %v3779 = vld [vmem:[#allocation3 + $0x68] sm:$0xff]
          %v3780 = vld [vmem:[#allocation3 + $0x70] sm:$0xff]
          %v3781 = vld [vmem:[#allocation3 + $0x78] sm:$0xff]
          %v3782 = vld [vmem:[#allocation3 + $0x80] sm:$0xff]
          %v3783 = vld [vmem:[#allocation3 + $0x88] sm:$0xff]
          %v3784 = vld [vmem:[#allocation3 + $0x90] sm:$0xff]
          %v3785 = vld [vmem:[#allocation3 + $0x98] sm:$0xff]
          %v3786 = vld [vmem:[#allocation3 + $0xa0] sm:$0xff]
          %v3787 = vld [vmem:[#allocation3 + $0xa8] sm:$0xff]
          %v3788 = vld [vmem:[#allocation3 + $0xb0] sm:$0xff]
          %v3789 = vld [vmem:[#allocation3 + $0xb8] sm:$0xff]
          %v3790 = vld [vmem:[#allocation3 + $0xc0] sm:$0xff]
          %v3791 = vld [vmem:[#allocation3 + $0xc8] sm:$0xff]
          %v3792 = vld [vmem:[#allocation3 + $0xd0] sm:$0xff]
          %v3793 = vld [vmem:[#allocation3 + $0xd8] sm:$0xff]
          %v3794 = vld [vmem:[#allocation3 + $0xe0] sm:$0xff]
          %v3795 = vld [vmem:[#allocation3 + $0xe8] sm:$0xff]
          %v3796 = vld [vmem:[#allocation3 + $0xf0] sm:$0xff]
          %v3797 = vld [vmem:[#allocation3 + $0xf8] sm:$0xff]
          %v3798 = vld [vmem:[#allocation3 + $0x100] sm:$0xff]
          %v3799 = vld [vmem:[#allocation3 + $0x108] sm:$0xff]
          %v3800 = vld [vmem:[#allocation3 + $0x110] sm:$0xff]
          %v3801 = vld [vmem:[#allocation3 + $0x118] sm:$0xff]
          %v3802 = vld [vmem:[#allocation3 + $0x120] sm:$0xff]
          %v3803 = vld [vmem:[#allocation3 + $0x128] sm:$0xff]
          %v3804 = vld [vmem:[#allocation3 + $0x130] sm:$0xff]
          %v3805 = vld [vmem:[#allocation3 + $0x138] sm:$0xff]
          %v3806 = vld [vmem:[#allocation3 + $0x140] sm:$0xff]
          %v3807 = vld [vmem:[#allocation3 + $0x148] sm:$0xff]
          %v3808 = vld [vmem:[#allocation3 + $0x150] sm:$0xff]
          %v3809 = vld [vmem:[#allocation3 + $0x158] sm:$0xff]
          %v3810 = vld [vmem:[#allocation3 + $0x160] sm:$0xff]
          %v3811 = vld [vmem:[#allocation3 + $0x168] sm:$0xff]
          %v3812 = vld [vmem:[#allocation3 + $0x170] sm:$0xff]
          %v3813 = vld [vmem:[#allocation3 + $0x178] sm:$0xff]
          %v3814 = vld [vmem:[#allocation3 + $0x180] sm:$0xff]
          %v3815 = vld [vmem:[#allocation3 + $0x188] sm:$0xff]
          %v3816 = vld [vmem:[#allocation3 + $0x190] sm:$0xff]
          %v3817 = vld [vmem:[#allocation3 + $0x198] sm:$0xff]
          %v3818 = vld [vmem:[#allocation3 + $0x1a0] sm:$0xff]
          %v3819 = vld [vmem:[#allocation3 + $0x1a8] sm:$0xff]
          %v3820 = vld [vmem:[#allocation3 + $0x1b0] sm:$0xff]
          %v3821 = vld [vmem:[#allocation3 + $0x1b8] sm:$0xff]
          %v3822 = vld [vmem:[#allocation3 + $0x1c0] sm:$0xff]
          %v3823 = vld [vmem:[#allocation3 + $0x1c8] sm:$0xff]
          %v3824 = vld [vmem:[#allocation3 + $0x1d0] sm:$0xff]
          %v3825 = vld [vmem:[#allocation3 + $0x1d8] sm:$0xff]
          %v3826 = vld [vmem:[#allocation3 + $0x1e0] sm:$0xff]
          %v3827 = vld [vmem:[#allocation3 + $0x1e8] sm:$0xff]
          %v3828 = vld [vmem:[#allocation3 + $0x1f0] sm:$0xff]
          %v3829 = vld [vmem:[#allocation3 + $0x1f8] sm:$0xff]
          %3830 = vst [vmem:[%s307] sm:$0xff] %v3766
          %3831 = vst [vmem:[%s307 + $0x8] sm:$0xff] %v3767
          %3832 = vst [vmem:[%s307 + $0x10] sm:$0xff] %v3768
          %3833 = vst [vmem:[%s307 + $0x18] sm:$0xff] %v3769
          %3834 = vst [vmem:[%s307 + $0x20] sm:$0xff] %v3770
          %3835 = vst [vmem:[%s307 + $0x28] sm:$0xff] %v3771
          %3836 = vst [vmem:[%s307 + $0x30] sm:$0xff] %v3772
          %3837 = vst [vmem:[%s307 + $0x38] sm:$0xff] %v3773
          %3838 = vst [vmem:[%s307 + $0x40] sm:$0xff] %v3774
          %3839 = vst [vmem:[%s307 + $0x48] sm:$0xff] %v3775
          %3840 = vst [vmem:[%s307 + $0x50] sm:$0xff] %v3776
          %3841 = vst [vmem:[%s307 + $0x58] sm:$0xff] %v3777
          %3842 = vst [vmem:[%s307 + $0x60] sm:$0xff] %v3778
          %3843 = vst [vmem:[%s307 + $0x68] sm:$0xff] %v3779
          %3844 = vst [vmem:[%s307 + $0x70] sm:$0xff] %v3780
          %3845 = vst [vmem:[%s307 + $0x78] sm:$0xff] %v3781
          %3846 = vst [vmem:[%s307 + $0x80] sm:$0xff] %v3782
          %3847 = vst [vmem:[%s307 + $0x88] sm:$0xff] %v3783
          %3848 = vst [vmem:[%s307 + $0x90] sm:$0xff] %v3784
          %3849 = vst [vmem:[%s307 + $0x98] sm:$0xff] %v3785
          %3850 = vst [vmem:[%s307 + $0xa0] sm:$0xff] %v3786
          %3851 = vst [vmem:[%s307 + $0xa8] sm:$0xff] %v3787
          %3852 = vst [vmem:[%s307 + $0xb0] sm:$0xff] %v3788
          %3853 = vst [vmem:[%s307 + $0xb8] sm:$0xff] %v3789
          %3854 = vst [vmem:[%s307 + $0xc0] sm:$0xff] %v3790
          %3855 = vst [vmem:[%s307 + $0xc8] sm:$0xff] %v3791
          %3856 = vst [vmem:[%s307 + $0xd0] sm:$0xff] %v3792
          %3857 = vst [vmem:[%s307 + $0xd8] sm:$0xff] %v3793
          %3858 = vst [vmem:[%s307 + $0xe0] sm:$0xff] %v3794
          %3859 = vst [vmem:[%s307 + $0xe8] sm:$0xff] %v3795
          %3860 = vst [vmem:[%s307 + $0xf0] sm:$0xff] %v3796
          %3861 = vst [vmem:[%s307 + $0xf8] sm:$0xff] %v3797
          %3862 = vst [vmem:[%s307 + $0x100] sm:$0xff] %v3798
          %3863 = vst [vmem:[%s307 + $0x108] sm:$0xff] %v3799
          %3864 = vst [vmem:[%s307 + $0x110] sm:$0xff] %v3800
          %3865 = vst [vmem:[%s307 + $0x118] sm:$0xff] %v3801
          %3866 = vst [vmem:[%s307 + $0x120] sm:$0xff] %v3802
          %3867 = vst [vmem:[%s307 + $0x128] sm:$0xff] %v3803
          %3868 = vst [vmem:[%s307 + $0x130] sm:$0xff] %v3804
          %3869 = vst [vmem:[%s307 + $0x138] sm:$0xff] %v3805
          %3870 = vst [vmem:[%s307 + $0x140] sm:$0xff] %v3806
          %3871 = vst [vmem:[%s307 + $0x148] sm:$0xff] %v3807
          %3872 = vst [vmem:[%s307 + $0x150] sm:$0xff] %v3808
          %3873 = vst [vmem:[%s307 + $0x158] sm:$0xff] %v3809
          %3874 = vst [vmem:[%s307 + $0x160] sm:$0xff] %v3810
          %3875 = vst [vmem:[%s307 + $0x168] sm:$0xff] %v3811
          %3876 = vst [vmem:[%s307 + $0x170] sm:$0xff] %v3812
          %3877 = vst [vmem:[%s307 + $0x178] sm:$0xff] %v3813
          %3878 = vst [vmem:[%s307 + $0x180] sm:$0xff] %v3814
          %3879 = vst [vmem:[%s307 + $0x188] sm:$0xff] %v3815
          %3880 = vst [vmem:[%s307 + $0x190] sm:$0xff] %v3816
          %3881 = vst [vmem:[%s307 + $0x198] sm:$0xff] %v3817
          %3882 = vst [vmem:[%s307 + $0x1a0] sm:$0xff] %v3818
          %3883 = vst [vmem:[%s307 + $0x1a8] sm:$0xff] %v3819
          %3884 = vst [vmem:[%s307 + $0x1b0] sm:$0xff] %v3820
          %3885 = vst [vmem:[%s307 + $0x1b8] sm:$0xff] %v3821
          %3886 = vst [vmem:[%s307 + $0x1c0] sm:$0xff] %v3822
          %3887 = vst [vmem:[%s307 + $0x1c8] sm:$0xff] %v3823
          %3888 = vst [vmem:[%s307 + $0x1d0] sm:$0xff] %v3824
          %3889 = vst [vmem:[%s307 + $0x1d8] sm:$0xff] %v3825
          %3890 = vst [vmem:[%s307 + $0x1e0] sm:$0xff] %v3826
          %3891 = vst [vmem:[%s307 + $0x1e8] sm:$0xff] %v3827
          %3892 = vst [vmem:[%s307 + $0x1f0] sm:$0xff] %v3828
          %3893 = vst [vmem:[%s307 + $0x1f8] sm:$0xff] %v3829
        $region52: #{tpu_custom_call.1} parent=43 // pred_fallthru
          _
        %s3894 = sand.u32 %s186, 1
        %s3895 = scalar_lea.sflag [#allocation5], %s3894
        %s3896 = sand.u32 %s186, 1
        %s3897 = smul.addr %s3896, 512
        %s3898 = scalar_lea.vmem [#allocation4], %s3897
        // Predicated region
        $region53: #{tpu_custom_call.1} parent=43 // pred_check
          %p3899 = pneg %p196
        $region54: #{tpu_custom_call.1} parent=43 // pred_check_branch
          %3901 = sbr.rel (%p3899) target = $region56
        $region55: #{tpu_custom_call.1} parent=43 // pred_region
          %s3902 = smul.u32 32, %s24
          %s3904 = ssub.s32 8192, 8192
          %3905 = vsyncadd %s3895, %s3904
          %s3906 = smul.addr %s3902, 2
          %s3907 = smul.addr %s3906, 128
          %s3908 = scalar_lea.hbm %s6, %s3907
          %s3909 = sshll.u32 %s3898, 4
          %s3910 = int_to_ptr.vmem [resolvable:$true] %s3909
          %3915 = dma.vmem_to_hbm [thread:$0]  %s3910, 8192, %s3908, %s3895, 256, 256, 16
        $region56: #{tpu_custom_call.1} parent=43 // pred_fallthru
          _
      $region44: #{tpu_custom_call.1} parent=5 // pred_fallthru
        _
      %p3916 = scmp.le.s32.totalorder 2, %s15
      // Predicated region
      $region57: #{tpu_custom_call.1} parent=5 // pred_check
        %p3917 = pneg %p3916
      $region58: #{tpu_custom_call.1} parent=5 // pred_check_branch
        %3919 = sbr.rel (%p3917) target = $region60
      $region59: #{tpu_custom_call.1} parent=5 // pred_region
        %s3920 = ssub.s32 %s15, 2
        // Predicated region
        $region61: #{tpu_custom_call.1} parent=59 // pred_check
          %p3921 = pneg %p202
        $region62: #{tpu_custom_call.1} parent=59 // pred_check_branch
          %3923 = sbr.rel (%p3921) target = $region64
        $region63: #{tpu_custom_call.1} parent=59 // pred_region
          %s3924 = sand.u32 %s187, 1
          %s3925 = scalar_lea.sflag [#allocation5], %s3924
          %s3926 = sand.u32 %s187, 1
          %s3927 = smul.addr %s3926, 512
          %s3928 = scalar_lea.vmem [#allocation4], %s3927
          %3929 = dma.done %s3925, 8192
        $region64: #{tpu_custom_call.1} parent=59 // pred_fallthru
          _
      $region60: #{tpu_custom_call.1} parent=5 // pred_fallthru
        _
    $region6: #{tpu_custom_call.1} parent=1 // loop_footer
      %s19 = sadd.s32 1, %s15
    $region7: #{tpu_custom_call.1} parent=1 // loop_footer_branch
      %14 = sbr.rel target = $region3
    $region8: #{tpu_custom_call.1} parent=1 // loop_exit
      _
    %3930 = vsyncpa [#allocation5], 1
    %s3931 = scalar_lea.sflag [#allocation5], 1
    %3932 = vsyncpa %s3931, 1

</llo_original>
